<compile_context>
chip_gen: v6e
topology: v6e:2x2x1
jax: 0.10.0
libtpu: 0.0.40
codegen_flags: <defaults>
</compile_context>

<pallas_src>
import functools

import jax
import jax.numpy as jnp
from jax.experimental import pallas as pl
from jax.experimental.pallas import tpu as pltpu


def _siamese_embed_kernel(x1_ref, x2_ref, w_ref, b_ref, o1_ref, o2_ref, *,
                          hw, pack, inv_hw):
    """Pool + project TN samples of both branches in one grid step.

    x*_ref : (TN, C//pack, pack*HW) — lane-dense NCHW feature maps
    w_ref  : (C, E)  fc weight, rows pre-permuted to the packed channel order
    b_ref  : (1, E)  fc bias
    o*_ref : (TN, E) float32 embeddings
    """

    def pool(x_ref):
        # AdaptiveAvgPool2d((1,1)) + flatten(1): each HW-wide lane segment of a
        # packed row is one channel's spatial extent; reduce each segment over
        # the lane axis (XLU) and lay the segment results out along channels.
        segs = [
            jnp.sum(x_ref[:, :, s * hw:(s + 1) * hw].astype(jnp.float32), axis=2)
            for s in range(pack)
        ]
        return segs[0] if pack == 1 else jnp.concatenate(segs, axis=1)  # (TN, C)

    # Fuse the two branch projections into a single MXU matmul:
    # one RHS (weight) push, M = 2*TN rows of occupancy.
    pooled = jnp.concatenate([pool(x1_ref), pool(x2_ref)], axis=0)       # (2*TN, C)
    y = jnp.dot(pooled, w_ref[...], preferred_element_type=jnp.float32)  # (2*TN, E)
    # Fold the 1/HW mean scale into the tiny (2*TN, E) result; bias unscaled.
    y = y * inv_hw + b_ref[...]

    tn = o1_ref.shape[0]
    o1_ref[...] = y[:tn].astype(o1_ref.dtype)
    o2_ref[...] = y[tn:].astype(o2_ref.dtype)


def siamese_forward(x1, x2, w_ce, b_e, *, tile_n=None):
    """Matches SiameseNetwork.forward(x1, x2) -> (emb1, emb2) post-backbone.

    x1, x2 : [N, C, H, W] backbone feature maps (C = 1024 for ConvNeXt-Base)
    w_ce   : [C, E] fc weight (PyTorch's [E, C] stored pre-transposed)
    b_e    : [E]    fc bias
    """
    N, C, H, W = x1.shape
    assert x2.shape == x1.shape
    E = w_ce.shape[1]
    HW = H * W

    # --- lane-dense packing (free, contiguous reshape; no transpose) ---------
    pack = 1
    if HW < 128 and 128 % HW == 0:
        pack = 128 // HW
        while pack > 1 and C % pack:
            pack //= 2
    Cp, L = C // pack, pack * HW
    x1_r = x1.reshape(N, Cp, L)
    x2_r = x2.reshape(N, Cp, L)

    # Permute the weight rows once so the kernel's packed pooling order
    # (segment s of packed row cp == channel cp*pack + s, segments concatenated)
    # matches the weight with no in-kernel shuffling.
    if pack > 1:
        w_k = jnp.concatenate([w_ce[s::pack] for s in range(pack)], axis=0)
    else:
        w_k = w_ce
    b_2d = b_e.reshape(1, E)

    # --- batch tiling ---------------------------------------------------------
    if tile_n is None:
        # 8 samples/step: sublane-dense (8,128) output stores, ~9 MiB of
        # double-buffered f32 inputs + weight (fits v5e's 16 MiB default scoped
        # VMEM; raise tile_n together with vmem_limit_bytes on v6e if desired).
        # For N > 8 this leaves >=2 grid blocks so both v7x TensorCores work.
        tile_n = N if N <= 8 else 8
    tn = tile_n
    Np = ((N + tn - 1) // tn) * tn
    if Np != N:
        pad = [(0, Np - N), (0, 0), (0, 0)]
        x1_r = jnp.pad(x1_r, pad)
        x2_r = jnp.pad(x2_r, pad)

    kernel = functools.partial(_siamese_embed_kernel,
                               hw=HW, pack=pack, inv_hw=1.0 / HW)

    out1, out2 = pl.pallas_call(
        kernel,
        out_shape=(
            jax.ShapeDtypeStruct((Np, E), jnp.float32),
            jax.ShapeDtypeStruct((Np, E), jnp.float32),
        ),
        grid=(Np // tn,),
        in_specs=[
            pl.BlockSpec((tn, Cp, L), lambda i: (i, 0, 0)),
            pl.BlockSpec((tn, Cp, L), lambda i: (i, 0, 0)),
            pl.BlockSpec((C, E), lambda i: (0, 0)),   # constant block -> DMA'd once
            pl.BlockSpec((1, E), lambda i: (0, 0)),   # constant block -> DMA'd once
        ],
        out_specs=(
            pl.BlockSpec((tn, E), lambda i: (i, 0)),
            pl.BlockSpec((tn, E), lambda i: (i, 0)),
        ),
        compiler_params=pltpu.CompilerParams(
            dimension_semantics=("parallel",),
        ),
    )(x1_r, x2_r, w_k, b_2d)

    if Np != N:
        out1 = out1[:N]
        out2 = out2[:N]
    return out1, out2


if __name__ == "__main__":
    # ConvNeXt-Base features have 1024 channels (required by nn.Linear(1024, E));
    # small batch / spatial for the demo.
    N, C, H, W = 2, 1024, 8, 8
    EMB = 128

    key = jax.random.PRNGKey(0)
    k1, k2, kw, kb = jax.random.split(key, 4)

    # Synthetic backbone feature maps (stand-in for convnext_base output).
    x1 = jax.random.normal(k1, (N, C, H, W), dtype=jnp.float32)
    x2 = jax.random.normal(k2, (N, C, H, W), dtype=jnp.float32)

    # Deterministic fc parameters. PyTorch Linear stores weight as [E, C];
    # we keep it pre-transposed as [C, E] for the kernel.
    w_ce = jax.random.normal(kw, (C, EMB), dtype=jnp.float32) * (1.0 / jnp.sqrt(C))
    b_e = jax.random.normal(kb, (EMB,), dtype=jnp.float32) * 0.01

    emb1, emb2 = jax.jit(siamese_forward)(x1, x2, w_ce, b_e)
    jax.block_until_ready((emb1, emb2))

    # Sanity check against plain-JAX reference (pool -> flatten -> linear).
    ref1 = jnp.mean(x1, axis=(2, 3)) @ w_ce + b_e
    ref2 = jnp.mean(x2, axis=(2, 3)) @ w_ce + b_e
    assert emb1.shape == (N, EMB) and emb2.shape == (N, EMB)
    assert jnp.allclose(emb1, ref1, atol=1e-4, rtol=1e-4), "branch-1 mismatch"
    assert jnp.allclose(emb2, ref2, atol=1e-4, rtol=1e-4), "branch-2 mismatch"

    print("KERNEL_OK")
</pallas_src>

<mosaic_0001>
module attributes {stable_mosaic.version = 11 : i64} {
  func.func @_siamese_embed_kernel(%arg0: i32, %arg1: memref<2x512x128xf32, #tpu.memory_space<vmem>>, %arg2: memref<2x512x128xf32, #tpu.memory_space<vmem>>, %arg3: memref<1024x128xf32, #tpu.memory_space<vmem>>, %arg4: memref<1x128xf32, #tpu.memory_space<vmem>>, %arg5: memref<2x128xf32, #tpu.memory_space<vmem>>, %arg6: memref<2x128xf32, #tpu.memory_space<vmem>>) attributes {dimension_semantics = [#tpu.dimension_semantics<parallel>], iteration_bounds = array<i64: 1>, scalar_prefetch = 0 : i64, scratch_operands = 0 : i64, tpu.core_type = #tpu.core_type<tc>, window_params = [{transform_indices = @transform_0, window_bounds = array<i64: 2, 512, 128>}, {transform_indices = @transform_1, window_bounds = array<i64: 2, 512, 128>}, {pipeline_mode = #tpu.pipeline_mode<synchronous>, transform_indices = @transform_2, window_bounds = array<i64: 1024, 128>}, {pipeline_mode = #tpu.pipeline_mode<synchronous>, transform_indices = @transform_3, window_bounds = array<i64: 1, 128>}, {transform_indices = @transform_4, window_bounds = array<i64: 2, 128>}, {transform_indices = @transform_5, window_bounds = array<i64: 2, 128>}]} {
    %c0 = arith.constant 0 : index
    %c0_0 = arith.constant 0 : index
    %c0_1 = arith.constant 0 : index
    %0 = vector.load %arg1[%c0, %c0_0, %c0_1] : memref<2x512x128xf32, #tpu.memory_space<vmem>>, vector<2x512x64xf32>
    %cst = arith.constant dense<0.000000e+00> : vector<2x512xf32>
    %1 = vector.multi_reduction <add>, %0, %cst [2] : vector<2x512x64xf32> to vector<2x512xf32>
    %c0_2 = arith.constant 0 : index
    %c0_3 = arith.constant 0 : index
    %c64 = arith.constant 64 : index
    %2 = vector.load %arg1[%c0_2, %c0_3, %c64] : memref<2x512x128xf32, #tpu.memory_space<vmem>>, vector<2x512x64xf32>
    %cst_4 = arith.constant dense<0.000000e+00> : vector<2x512xf32>
    %3 = vector.multi_reduction <add>, %2, %cst_4 [2] : vector<2x512x64xf32> to vector<2x512xf32>
    %4 = tpu.concatenate %1, %3 in 1 : vector<2x512xf32>, vector<2x512xf32> -> vector<2x1024xf32>
    %c0_5 = arith.constant 0 : index
    %c0_6 = arith.constant 0 : index
    %c0_7 = arith.constant 0 : index
    %5 = vector.load %arg2[%c0_5, %c0_6, %c0_7] : memref<2x512x128xf32, #tpu.memory_space<vmem>>, vector<2x512x64xf32>
    %cst_8 = arith.constant dense<0.000000e+00> : vector<2x512xf32>
    %6 = vector.multi_reduction <add>, %5, %cst_8 [2] : vector<2x512x64xf32> to vector<2x512xf32>
    %c0_9 = arith.constant 0 : index
    %c0_10 = arith.constant 0 : index
    %c64_11 = arith.constant 64 : index
    %7 = vector.load %arg2[%c0_9, %c0_10, %c64_11] : memref<2x512x128xf32, #tpu.memory_space<vmem>>, vector<2x512x64xf32>
    %cst_12 = arith.constant dense<0.000000e+00> : vector<2x512xf32>
    %8 = vector.multi_reduction <add>, %7, %cst_12 [2] : vector<2x512x64xf32> to vector<2x512xf32>
    %9 = tpu.concatenate %6, %8 in 1 : vector<2x512xf32>, vector<2x512xf32> -> vector<2x1024xf32>
    %10 = tpu.concatenate %4, %9 in 0 : vector<2x1024xf32>, vector<2x1024xf32> -> vector<4x1024xf32>
    %c0_13 = arith.constant 0 : index
    %c0_14 = arith.constant 0 : index
    %11 = vector.load %arg3[%c0_13, %c0_14] : memref<1024x128xf32, #tpu.memory_space<vmem>>, vector<1024x128xf32>
    %cst_15 = arith.constant dense<0.000000e+00> : vector<4x128xf32>
    %12 = tpu.matmul %10, %11, %cst_15 {dimension_numbers = #tpu.dot_dimension_numbers<[1], [0], [0], [1], [0, 0, 1, 1], [], []>} : vector<4x1024xf32>, vector<1024x128xf32>, vector<4x128xf32> -> vector<4x128xf32>
    %cst_16 = arith.constant 1.562500e-02 : f32
    %13 = vector.broadcast %cst_16 : f32 to vector<4x128xf32>
    %14 = arith.mulf %12, %13 : vector<4x128xf32>
    %c0_17 = arith.constant 0 : index
    %c0_18 = arith.constant 0 : index
    %15 = vector.load %arg4[%c0_17, %c0_18] : memref<1x128xf32, #tpu.memory_space<vmem>>, vector<1x128xf32>
    %16 = vector.broadcast %15 : vector<1x128xf32> to vector<4x128xf32>
    %17 = arith.addf %14, %16 : vector<4x128xf32>
    %18 = vector.extract_strided_slice %17 {offsets = [0, 0], sizes = [2, 128], strides = [1, 1]} : vector<4x128xf32> to vector<2x128xf32>
    %c0_19 = arith.constant 0 : index
    %c0_20 = arith.constant 0 : index
    %19 = vector.load %arg5[%c0_19, %c0_20] : memref<2x128xf32, #tpu.memory_space<vmem>>, vector<2x128xf32>
    tpu.vector_store %arg5[%c0_19, %c0_20], %18 {strides = array<i32>} : memref<2x128xf32, #tpu.memory_space<vmem>>, vector<2x128xf32>,
    %20 = vector.extract_strided_slice %17 {offsets = [2, 0], sizes = [2, 128], strides = [1, 1]} : vector<4x128xf32> to vector<2x128xf32>
    %c0_21 = arith.constant 0 : index
    %c0_22 = arith.constant 0 : index
    %21 = vector.load %arg6[%c0_21, %c0_22] : memref<2x128xf32, #tpu.memory_space<vmem>>, vector<2x128xf32>
    tpu.vector_store %arg6[%c0_21, %c0_22], %20 {strides = array<i32>} : memref<2x128xf32, #tpu.memory_space<vmem>>, vector<2x128xf32>,
    return
  }
  func.func @transform_0(%arg0: i32) -> (i32, i32, i32) {
    %c0_i32 = arith.constant 0 : i32
    %c0_i32_0 = arith.constant 0 : i32
    %c0_i32_1 = arith.constant 0 : i32
    return %arg0, %c0_i32, %c0_i32_0 : i32, i32, i32
  }
  func.func @transform_1(%arg0: i32) -> (i32, i32, i32) {
    %c0_i32 = arith.constant 0 : i32
    %c0_i32_0 = arith.constant 0 : i32
    %c0_i32_1 = arith.constant 0 : i32
    return %arg0, %c0_i32, %c0_i32_0 : i32, i32, i32
  }
  func.func @transform_2(%arg0: i32) -> (i32, i32) {
    %c0_i32 = arith.constant 0 : i32
    %c0_i32_0 = arith.constant 0 : i32
    %c0_i32_1 = arith.constant 0 : i32
    return %c0_i32, %c0_i32_0 : i32, i32
  }
  func.func @transform_3(%arg0: i32) -> (i32, i32) {
    %c0_i32 = arith.constant 0 : i32
    %c0_i32_0 = arith.constant 0 : i32
    %c0_i32_1 = arith.constant 0 : i32
    return %c0_i32, %c0_i32_0 : i32, i32
  }
  func.func @transform_4(%arg0: i32) -> (i32, i32) {
    %c0_i32 = arith.constant 0 : i32
    %c0_i32_0 = arith.constant 0 : i32
    return %arg0, %c0_i32 : i32, i32
  }
  func.func @transform_5(%arg0: i32) -> (i32, i32) {
    %c0_i32 = arith.constant 0 : i32
    %c0_i32_0 = arith.constant 0 : i32
    return %arg0, %c0_i32 : i32, i32
  }
}

</mosaic_0001>

<llo_original>
// kernel: siamese_forward.1
$region0: #{siamese_forward.1}
  #allocation0 [shape = 'u32[]', space=smem, size = 0x4, offset = 0x4, fixed_abs, tag = 'smem constant byte address 0x4 - core index']
  #allocation1 [shape = 'u32[144,128]{1,0:T(1,128)}', space=vmem, size = 0x12000, scoped, tag = 'internal scratch']
  %s0 = inlined_call_operand.vmem [shape: f32[2,512,128], index: 0, kind: input, shape index: {}]
  %s1 = inlined_call_operand.vmem [shape: f32[2,512,128], index: 1, kind: input, shape index: {}]
  %s2 = inlined_call_operand.vmem [shape: f32[1024,128], index: 2, kind: input, shape index: {}]
  %s3 = inlined_call_operand.vmem [shape: f32[1,128], index: 3, kind: input, shape index: {}]
  %s4 = inlined_call_operand.hbm [shape: f32[2,128], index: 4, kind: output, shape index: {0}]
  %s5 = inlined_call_operand.hbm [shape: f32[2,128], index: 5, kind: output, shape index: {1}]
  %6 = xla_tuple %s4, %s5
  %s7 = sld [smem:[#allocation0]]
  $region34: #{siamese_forward.1} parent=0
    _
  %s9 = ssub.s32 1, %s7
  %s10 = scalar_select 0, %s9, %s7
  $region1: #{siamese_forward.1} parent=0
    #allocation2 [shape = 'u8[1024]{0}', space=vmem, size = 0x400, scoped, tag = 'output window, operand 0, single buffered']
    #allocation3 [shape = 's32[1]{0}', space=sflag, size = 0x4, scoped, tag = 'scoped memory for siamese_forward.1']
    #allocation4 [shape = 'u8[1024]{0}', space=vmem, size = 0x400, scoped, tag = 'output window, operand 1, single buffered']
    #allocation5 [shape = 's32[1]{0}', space=sflag, size = 0x4, scoped, tag = 'scoped memory for siamese_forward.1']
    %11 = vsyncpa [#allocation3], 0
    %12 = vsyncpa [#allocation5], 0
    // Predicated region
    $region2: #{siamese_forward.1} parent=1 // pred_check
      _
    $region3: #{siamese_forward.1} parent=1 // pred_check_branch
      %14 = sbr.rel (0) target = $region5
    $region4: #{siamese_forward.1} parent=1 // pred_region
      _
    $region5: #{siamese_forward.1} parent=1 // pred_fallthru
      _
    // Predicated region
    $region6: #{siamese_forward.1} parent=1 // pred_check
      _
    $region7: #{siamese_forward.1} parent=1 // pred_check_branch
      %16 = sbr.rel (0) target = $region9
    $region8: #{siamese_forward.1} parent=1 // pred_region
      _
    $region9: #{siamese_forward.1} parent=1 // pred_fallthru
      _
    // Predicated region
    $region10: #{siamese_forward.1} parent=1 // pred_check
      _
    $region11: #{siamese_forward.1} parent=1 // pred_check_branch
      %18 = sbr.rel (0) target = $region13
    $region12: #{siamese_forward.1} parent=1 // pred_region
      _
    $region13: #{siamese_forward.1} parent=1 // pred_fallthru
      _
    // Predicated region
    $region14: #{siamese_forward.1} parent=1 // pred_check
      _
    $region15: #{siamese_forward.1} parent=1 // pred_check_branch
      %20 = sbr.rel (0) target = $region17
    $region16: #{siamese_forward.1} parent=1 // pred_region
      _
    $region17: #{siamese_forward.1} parent=1 // pred_fallthru
      _
    %v21 = vld [vmem:[%s0] sm:$0xff]
    %v22 = vld [vmem:[%s0 + $0x8] sm:$0xff]
    %v23 = vld [vmem:[%s0 + $0x10] sm:$0xff]
    %v24 = vld [vmem:[%s0 + $0x18] sm:$0xff]
    %v25 = vld [vmem:[%s0 + $0x20] sm:$0xff]
    %v26 = vld [vmem:[%s0 + $0x28] sm:$0xff]
    %v27 = vld [vmem:[%s0 + $0x30] sm:$0xff]
    %v28 = vld [vmem:[%s0 + $0x38] sm:$0xff]
    %v29 = vld [vmem:[%s0 + $0x40] sm:$0xff]
    %v30 = vld [vmem:[%s0 + $0x48] sm:$0xff]
    %v31 = vld [vmem:[%s0 + $0x50] sm:$0xff]
    %v32 = vld [vmem:[%s0 + $0x58] sm:$0xff]
    %v33 = vld [vmem:[%s0 + $0x60] sm:$0xff]
    %v34 = vld [vmem:[%s0 + $0x68] sm:$0xff]
    %v35 = vld [vmem:[%s0 + $0x70] sm:$0xff]
    %v36 = vld [vmem:[%s0 + $0x78] sm:$0xff]
    %v37 = vld [vmem:[%s0 + $0x80] sm:$0xff]
    %v38 = vld [vmem:[%s0 + $0x88] sm:$0xff]
    %v39 = vld [vmem:[%s0 + $0x90] sm:$0xff]
    %v40 = vld [vmem:[%s0 + $0x98] sm:$0xff]
    %v41 = vld [vmem:[%s0 + $0xa0] sm:$0xff]
    %v42 = vld [vmem:[%s0 + $0xa8] sm:$0xff]
    %v43 = vld [vmem:[%s0 + $0xb0] sm:$0xff]
    %v44 = vld [vmem:[%s0 + $0xb8] sm:$0xff]
    %v45 = vld [vmem:[%s0 + $0xc0] sm:$0xff]
    %v46 = vld [vmem:[%s0 + $0xc8] sm:$0xff]
    %v47 = vld [vmem:[%s0 + $0xd0] sm:$0xff]
    %v48 = vld [vmem:[%s0 + $0xd8] sm:$0xff]
    %v49 = vld [vmem:[%s0 + $0xe0] sm:$0xff]
    %v50 = vld [vmem:[%s0 + $0xe8] sm:$0xff]
    %v51 = vld [vmem:[%s0 + $0xf0] sm:$0xff]
    %v52 = vld [vmem:[%s0 + $0xf8] sm:$0xff]
    %v53 = vld [vmem:[%s0 + $0x100] sm:$0xff]
    %v54 = vld [vmem:[%s0 + $0x108] sm:$0xff]
    %v55 = vld [vmem:[%s0 + $0x110] sm:$0xff]
    %v56 = vld [vmem:[%s0 + $0x118] sm:$0xff]
    %v57 = vld [vmem:[%s0 + $0x120] sm:$0xff]
    %v58 = vld [vmem:[%s0 + $0x128] sm:$0xff]
    %v59 = vld [vmem:[%s0 + $0x130] sm:$0xff]
    %v60 = vld [vmem:[%s0 + $0x138] sm:$0xff]
    %v61 = vld [vmem:[%s0 + $0x140] sm:$0xff]
    %v62 = vld [vmem:[%s0 + $0x148] sm:$0xff]
    %v63 = vld [vmem:[%s0 + $0x150] sm:$0xff]
    %v64 = vld [vmem:[%s0 + $0x158] sm:$0xff]
    %v65 = vld [vmem:[%s0 + $0x160] sm:$0xff]
    %v66 = vld [vmem:[%s0 + $0x168] sm:$0xff]
    %v67 = vld [vmem:[%s0 + $0x170] sm:$0xff]
    %v68 = vld [vmem:[%s0 + $0x178] sm:$0xff]
    %v69 = vld [vmem:[%s0 + $0x180] sm:$0xff]
    %v70 = vld [vmem:[%s0 + $0x188] sm:$0xff]
    %v71 = vld [vmem:[%s0 + $0x190] sm:$0xff]
    %v72 = vld [vmem:[%s0 + $0x198] sm:$0xff]
    %v73 = vld [vmem:[%s0 + $0x1a0] sm:$0xff]
    %v74 = vld [vmem:[%s0 + $0x1a8] sm:$0xff]
    %v75 = vld [vmem:[%s0 + $0x1b0] sm:$0xff]
    %v76 = vld [vmem:[%s0 + $0x1b8] sm:$0xff]
    %v77 = vld [vmem:[%s0 + $0x1c0] sm:$0xff]
    %v78 = vld [vmem:[%s0 + $0x1c8] sm:$0xff]
    %v79 = vld [vmem:[%s0 + $0x1d0] sm:$0xff]
    %v80 = vld [vmem:[%s0 + $0x1d8] sm:$0xff]
    %v81 = vld [vmem:[%s0 + $0x1e0] sm:$0xff]
    %v82 = vld [vmem:[%s0 + $0x1e8] sm:$0xff]
    %v83 = vld [vmem:[%s0 + $0x1f0] sm:$0xff]
    %v84 = vld [vmem:[%s0 + $0x1f8] sm:$0xff]
    %v85 = vld [vmem:[%s0 + $0x200] sm:$0xff]
    %v86 = vld [vmem:[%s0 + $0x208] sm:$0xff]
    %v87 = vld [vmem:[%s0 + $0x210] sm:$0xff]
    %v88 = vld [vmem:[%s0 + $0x218] sm:$0xff]
    %v89 = vld [vmem:[%s0 + $0x220] sm:$0xff]
    %v90 = vld [vmem:[%s0 + $0x228] sm:$0xff]
    %v91 = vld [vmem:[%s0 + $0x230] sm:$0xff]
    %v92 = vld [vmem:[%s0 + $0x238] sm:$0xff]
    %v93 = vld [vmem:[%s0 + $0x240] sm:$0xff]
    %v94 = vld [vmem:[%s0 + $0x248] sm:$0xff]
    %v95 = vld [vmem:[%s0 + $0x250] sm:$0xff]
    %v96 = vld [vmem:[%s0 + $0x258] sm:$0xff]
    %v97 = vld [vmem:[%s0 + $0x260] sm:$0xff]
    %v98 = vld [vmem:[%s0 + $0x268] sm:$0xff]
    %v99 = vld [vmem:[%s0 + $0x270] sm:$0xff]
    %v100 = vld [vmem:[%s0 + $0x278] sm:$0xff]
    %v101 = vld [vmem:[%s0 + $0x280] sm:$0xff]
    %v102 = vld [vmem:[%s0 + $0x288] sm:$0xff]
    %v103 = vld [vmem:[%s0 + $0x290] sm:$0xff]
    %v104 = vld [vmem:[%s0 + $0x298] sm:$0xff]
    %v105 = vld [vmem:[%s0 + $0x2a0] sm:$0xff]
    %v106 = vld [vmem:[%s0 + $0x2a8] sm:$0xff]
    %v107 = vld [vmem:[%s0 + $0x2b0] sm:$0xff]
    %v108 = vld [vmem:[%s0 + $0x2b8] sm:$0xff]
    %v109 = vld [vmem:[%s0 + $0x2c0] sm:$0xff]
    %v110 = vld [vmem:[%s0 + $0x2c8] sm:$0xff]
    %v111 = vld [vmem:[%s0 + $0x2d0] sm:$0xff]
    %v112 = vld [vmem:[%s0 + $0x2d8] sm:$0xff]
    %v113 = vld [vmem:[%s0 + $0x2e0] sm:$0xff]
    %v114 = vld [vmem:[%s0 + $0x2e8] sm:$0xff]
    %v115 = vld [vmem:[%s0 + $0x2f0] sm:$0xff]
    %v116 = vld [vmem:[%s0 + $0x2f8] sm:$0xff]
    %v117 = vld [vmem:[%s0 + $0x300] sm:$0xff]
    %v118 = vld [vmem:[%s0 + $0x308] sm:$0xff]
    %v119 = vld [vmem:[%s0 + $0x310] sm:$0xff]
    %v120 = vld [vmem:[%s0 + $0x318] sm:$0xff]
    %v121 = vld [vmem:[%s0 + $0x320] sm:$0xff]
    %v122 = vld [vmem:[%s0 + $0x328] sm:$0xff]
    %v123 = vld [vmem:[%s0 + $0x330] sm:$0xff]
    %v124 = vld [vmem:[%s0 + $0x338] sm:$0xff]
    %v125 = vld [vmem:[%s0 + $0x340] sm:$0xff]
    %v126 = vld [vmem:[%s0 + $0x348] sm:$0xff]
    %v127 = vld [vmem:[%s0 + $0x350] sm:$0xff]
    %v128 = vld [vmem:[%s0 + $0x358] sm:$0xff]
    %v129 = vld [vmem:[%s0 + $0x360] sm:$0xff]
    %v130 = vld [vmem:[%s0 + $0x368] sm:$0xff]
    %v131 = vld [vmem:[%s0 + $0x370] sm:$0xff]
    %v132 = vld [vmem:[%s0 + $0x378] sm:$0xff]
    %v133 = vld [vmem:[%s0 + $0x380] sm:$0xff]
    %v134 = vld [vmem:[%s0 + $0x388] sm:$0xff]
    %v135 = vld [vmem:[%s0 + $0x390] sm:$0xff]
    %v136 = vld [vmem:[%s0 + $0x398] sm:$0xff]
    %v137 = vld [vmem:[%s0 + $0x3a0] sm:$0xff]
    %v138 = vld [vmem:[%s0 + $0x3a8] sm:$0xff]
    %v139 = vld [vmem:[%s0 + $0x3b0] sm:$0xff]
    %v140 = vld [vmem:[%s0 + $0x3b8] sm:$0xff]
    %v141 = vld [vmem:[%s0 + $0x3c0] sm:$0xff]
    %v142 = vld [vmem:[%s0 + $0x3c8] sm:$0xff]
    %v143 = vld [vmem:[%s0 + $0x3d0] sm:$0xff]
    %v144 = vld [vmem:[%s0 + $0x3d8] sm:$0xff]
    %v145 = vld [vmem:[%s0 + $0x3e0] sm:$0xff]
    %v146 = vld [vmem:[%s0 + $0x3e8] sm:$0xff]
    %v147 = vld [vmem:[%s0 + $0x3f0] sm:$0xff]
    %v148 = vld [vmem:[%s0 + $0x3f8] sm:$0xff]
    %vm149 = vcmask 523264
    %v150 = vsel %vm149, %v21, 0.0
    %151 = vadd.xlane.f32.xlu0 %v150
    %v152 = vpop.xlane.xlu0 %151
    %v153 = vsel %vm149, %v22, 0.0
    %154 = vadd.xlane.f32.xlu0 %v153
    %v155 = vpop.xlane.xlu0 %154
    %v156 = vsel %vm149, %v23, 0.0
    %157 = vadd.xlane.f32.xlu0 %v156
    %v158 = vpop.xlane.xlu0 %157
    %v159 = vsel %vm149, %v24, 0.0
    %160 = vadd.xlane.f32.xlu0 %v159
    %v161 = vpop.xlane.xlu0 %160
    %v162 = vsel %vm149, %v25, 0.0
    %163 = vadd.xlane.f32.xlu0 %v162
    %v164 = vpop.xlane.xlu0 %163
    %v165 = vsel %vm149, %v26, 0.0
    %166 = vadd.xlane.f32.xlu0 %v165
    %v167 = vpop.xlane.xlu0 %166
    %v168 = vsel %vm149, %v27, 0.0
    %169 = vadd.xlane.f32.xlu0 %v168
    %v170 = vpop.xlane.xlu0 %169
    %v171 = vsel %vm149, %v28, 0.0
    %172 = vadd.xlane.f32.xlu0 %v171
    %v173 = vpop.xlane.xlu0 %172
    %v174 = vsel %vm149, %v29, 0.0
    %175 = vadd.xlane.f32.xlu0 %v174
    %v176 = vpop.xlane.xlu0 %175
    %v177 = vsel %vm149, %v30, 0.0
    %178 = vadd.xlane.f32.xlu0 %v177
    %v179 = vpop.xlane.xlu0 %178
    %v180 = vsel %vm149, %v31, 0.0
    %181 = vadd.xlane.f32.xlu0 %v180
    %v182 = vpop.xlane.xlu0 %181
    %v183 = vsel %vm149, %v32, 0.0
    %184 = vadd.xlane.f32.xlu0 %v183
    %v185 = vpop.xlane.xlu0 %184
    %v186 = vsel %vm149, %v33, 0.0
    %187 = vadd.xlane.f32.xlu0 %v186
    %v188 = vpop.xlane.xlu0 %187
    %v189 = vsel %vm149, %v34, 0.0
    %190 = vadd.xlane.f32.xlu0 %v189
    %v191 = vpop.xlane.xlu0 %190
    %v192 = vsel %vm149, %v35, 0.0
    %193 = vadd.xlane.f32.xlu0 %v192
    %v194 = vpop.xlane.xlu0 %193
    %v195 = vsel %vm149, %v36, 0.0
    %196 = vadd.xlane.f32.xlu0 %v195
    %v197 = vpop.xlane.xlu0 %196
    %v198 = vsel %vm149, %v37, 0.0
    %199 = vadd.xlane.f32.xlu0 %v198
    %v200 = vpop.xlane.xlu0 %199
    %v201 = vsel %vm149, %v38, 0.0
    %202 = vadd.xlane.f32.xlu0 %v201
    %v203 = vpop.xlane.xlu0 %202
    %v204 = vsel %vm149, %v39, 0.0
    %205 = vadd.xlane.f32.xlu0 %v204
    %v206 = vpop.xlane.xlu0 %205
    %v207 = vsel %vm149, %v40, 0.0
    %208 = vadd.xlane.f32.xlu0 %v207
    %v209 = vpop.xlane.xlu0 %208
    %v210 = vsel %vm149, %v41, 0.0
    %211 = vadd.xlane.f32.xlu0 %v210
    %v212 = vpop.xlane.xlu0 %211
    %v213 = vsel %vm149, %v42, 0.0
    %214 = vadd.xlane.f32.xlu0 %v213
    %v215 = vpop.xlane.xlu0 %214
    %v216 = vsel %vm149, %v43, 0.0
    %217 = vadd.xlane.f32.xlu0 %v216
    %v218 = vpop.xlane.xlu0 %217
    %v219 = vsel %vm149, %v44, 0.0
    %220 = vadd.xlane.f32.xlu0 %v219
    %v221 = vpop.xlane.xlu0 %220
    %v222 = vsel %vm149, %v45, 0.0
    %223 = vadd.xlane.f32.xlu0 %v222
    %v224 = vpop.xlane.xlu0 %223
    %v225 = vsel %vm149, %v46, 0.0
    %226 = vadd.xlane.f32.xlu0 %v225
    %v227 = vpop.xlane.xlu0 %226
    %v228 = vsel %vm149, %v47, 0.0
    %229 = vadd.xlane.f32.xlu0 %v228
    %v230 = vpop.xlane.xlu0 %229
    %v231 = vsel %vm149, %v48, 0.0
    %232 = vadd.xlane.f32.xlu0 %v231
    %v233 = vpop.xlane.xlu0 %232
    %v234 = vsel %vm149, %v49, 0.0
    %235 = vadd.xlane.f32.xlu0 %v234
    %v236 = vpop.xlane.xlu0 %235
    %v237 = vsel %vm149, %v50, 0.0
    %238 = vadd.xlane.f32.xlu0 %v237
    %v239 = vpop.xlane.xlu0 %238
    %v240 = vsel %vm149, %v51, 0.0
    %241 = vadd.xlane.f32.xlu0 %v240
    %v242 = vpop.xlane.xlu0 %241
    %v243 = vsel %vm149, %v52, 0.0
    %244 = vadd.xlane.f32.xlu0 %v243
    %v245 = vpop.xlane.xlu0 %244
    %v246 = vsel %vm149, %v53, 0.0
    %247 = vadd.xlane.f32.xlu0 %v246
    %v248 = vpop.xlane.xlu0 %247
    %v249 = vsel %vm149, %v54, 0.0
    %250 = vadd.xlane.f32.xlu0 %v249
    %v251 = vpop.xlane.xlu0 %250
    %v252 = vsel %vm149, %v55, 0.0
    %253 = vadd.xlane.f32.xlu0 %v252
    %v254 = vpop.xlane.xlu0 %253
    %v255 = vsel %vm149, %v56, 0.0
    %256 = vadd.xlane.f32.xlu0 %v255
    %v257 = vpop.xlane.xlu0 %256
    %v258 = vsel %vm149, %v57, 0.0
    %259 = vadd.xlane.f32.xlu0 %v258
    %v260 = vpop.xlane.xlu0 %259
    %v261 = vsel %vm149, %v58, 0.0
    %262 = vadd.xlane.f32.xlu0 %v261
    %v263 = vpop.xlane.xlu0 %262
    %v264 = vsel %vm149, %v59, 0.0
    %265 = vadd.xlane.f32.xlu0 %v264
    %v266 = vpop.xlane.xlu0 %265
    %v267 = vsel %vm149, %v60, 0.0
    %268 = vadd.xlane.f32.xlu0 %v267
    %v269 = vpop.xlane.xlu0 %268
    %v270 = vsel %vm149, %v61, 0.0
    %271 = vadd.xlane.f32.xlu0 %v270
    %v272 = vpop.xlane.xlu0 %271
    %v273 = vsel %vm149, %v62, 0.0
    %274 = vadd.xlane.f32.xlu0 %v273
    %v275 = vpop.xlane.xlu0 %274
    %v276 = vsel %vm149, %v63, 0.0
    %277 = vadd.xlane.f32.xlu0 %v276
    %v278 = vpop.xlane.xlu0 %277
    %v279 = vsel %vm149, %v64, 0.0
    %280 = vadd.xlane.f32.xlu0 %v279
    %v281 = vpop.xlane.xlu0 %280
    %v282 = vsel %vm149, %v65, 0.0
    %283 = vadd.xlane.f32.xlu0 %v282
    %v284 = vpop.xlane.xlu0 %283
    %v285 = vsel %vm149, %v66, 0.0
    %286 = vadd.xlane.f32.xlu0 %v285
    %v287 = vpop.xlane.xlu0 %286
    %v288 = vsel %vm149, %v67, 0.0
    %289 = vadd.xlane.f32.xlu0 %v288
    %v290 = vpop.xlane.xlu0 %289
    %v291 = vsel %vm149, %v68, 0.0
    %292 = vadd.xlane.f32.xlu0 %v291
    %v293 = vpop.xlane.xlu0 %292
    %v294 = vsel %vm149, %v69, 0.0
    %295 = vadd.xlane.f32.xlu0 %v294
    %v296 = vpop.xlane.xlu0 %295
    %v297 = vsel %vm149, %v70, 0.0
    %298 = vadd.xlane.f32.xlu0 %v297
    %v299 = vpop.xlane.xlu0 %298
    %v300 = vsel %vm149, %v71, 0.0
    %301 = vadd.xlane.f32.xlu0 %v300
    %v302 = vpop.xlane.xlu0 %301
    %v303 = vsel %vm149, %v72, 0.0
    %304 = vadd.xlane.f32.xlu0 %v303
    %v305 = vpop.xlane.xlu0 %304
    %v306 = vsel %vm149, %v73, 0.0
    %307 = vadd.xlane.f32.xlu0 %v306
    %v308 = vpop.xlane.xlu0 %307
    %v309 = vsel %vm149, %v74, 0.0
    %310 = vadd.xlane.f32.xlu0 %v309
    %v311 = vpop.xlane.xlu0 %310
    %v312 = vsel %vm149, %v75, 0.0
    %313 = vadd.xlane.f32.xlu0 %v312
    %v314 = vpop.xlane.xlu0 %313
    %v315 = vsel %vm149, %v76, 0.0
    %316 = vadd.xlane.f32.xlu0 %v315
    %v317 = vpop.xlane.xlu0 %316
    %v318 = vsel %vm149, %v77, 0.0
    %319 = vadd.xlane.f32.xlu0 %v318
    %v320 = vpop.xlane.xlu0 %319
    %v321 = vsel %vm149, %v78, 0.0
    %322 = vadd.xlane.f32.xlu0 %v321
    %v323 = vpop.xlane.xlu0 %322
    %v324 = vsel %vm149, %v79, 0.0
    %325 = vadd.xlane.f32.xlu0 %v324
    %v326 = vpop.xlane.xlu0 %325
    %v327 = vsel %vm149, %v80, 0.0
    %328 = vadd.xlane.f32.xlu0 %v327
    %v329 = vpop.xlane.xlu0 %328
    %v330 = vsel %vm149, %v81, 0.0
    %331 = vadd.xlane.f32.xlu0 %v330
    %v332 = vpop.xlane.xlu0 %331
    %v333 = vsel %vm149, %v82, 0.0
    %334 = vadd.xlane.f32.xlu0 %v333
    %v335 = vpop.xlane.xlu0 %334
    %v336 = vsel %vm149, %v83, 0.0
    %337 = vadd.xlane.f32.xlu0 %v336
    %v338 = vpop.xlane.xlu0 %337
    %v339 = vsel %vm149, %v84, 0.0
    %340 = vadd.xlane.f32.xlu0 %v339
    %v341 = vpop.xlane.xlu0 %340
    %v342 = vsel %vm149, %v85, 0.0
    %343 = vadd.xlane.f32.xlu0 %v342
    %v344 = vpop.xlane.xlu0 %343
    %v345 = vsel %vm149, %v86, 0.0
    %346 = vadd.xlane.f32.xlu0 %v345
    %v347 = vpop.xlane.xlu0 %346
    %v348 = vsel %vm149, %v87, 0.0
    %349 = vadd.xlane.f32.xlu0 %v348
    %v350 = vpop.xlane.xlu0 %349
    %v351 = vsel %vm149, %v88, 0.0
    %352 = vadd.xlane.f32.xlu0 %v351
    %v353 = vpop.xlane.xlu0 %352
    %v354 = vsel %vm149, %v89, 0.0
    %355 = vadd.xlane.f32.xlu0 %v354
    %v356 = vpop.xlane.xlu0 %355
    %v357 = vsel %vm149, %v90, 0.0
    %358 = vadd.xlane.f32.xlu0 %v357
    %v359 = vpop.xlane.xlu0 %358
    %v360 = vsel %vm149, %v91, 0.0
    %361 = vadd.xlane.f32.xlu0 %v360
    %v362 = vpop.xlane.xlu0 %361
    %v363 = vsel %vm149, %v92, 0.0
    %364 = vadd.xlane.f32.xlu0 %v363
    %v365 = vpop.xlane.xlu0 %364
    %v366 = vsel %vm149, %v93, 0.0
    %367 = vadd.xlane.f32.xlu0 %v366
    %v368 = vpop.xlane.xlu0 %367
    %v369 = vsel %vm149, %v94, 0.0
    %370 = vadd.xlane.f32.xlu0 %v369
    %v371 = vpop.xlane.xlu0 %370
    %v372 = vsel %vm149, %v95, 0.0
    %373 = vadd.xlane.f32.xlu0 %v372
    %v374 = vpop.xlane.xlu0 %373
    %v375 = vsel %vm149, %v96, 0.0
    %376 = vadd.xlane.f32.xlu0 %v375
    %v377 = vpop.xlane.xlu0 %376
    %v378 = vsel %vm149, %v97, 0.0
    %379 = vadd.xlane.f32.xlu0 %v378
    %v380 = vpop.xlane.xlu0 %379
    %v381 = vsel %vm149, %v98, 0.0
    %382 = vadd.xlane.f32.xlu0 %v381
    %v383 = vpop.xlane.xlu0 %382
    %v384 = vsel %vm149, %v99, 0.0
    %385 = vadd.xlane.f32.xlu0 %v384
    %v386 = vpop.xlane.xlu0 %385
    %v387 = vsel %vm149, %v100, 0.0
    %388 = vadd.xlane.f32.xlu0 %v387
    %v389 = vpop.xlane.xlu0 %388
    %v390 = vsel %vm149, %v101, 0.0
    %391 = vadd.xlane.f32.xlu0 %v390
    %v392 = vpop.xlane.xlu0 %391
    %v393 = vsel %vm149, %v102, 0.0
    %394 = vadd.xlane.f32.xlu0 %v393
    %v395 = vpop.xlane.xlu0 %394
    %v396 = vsel %vm149, %v103, 0.0
    %397 = vadd.xlane.f32.xlu0 %v396
    %v398 = vpop.xlane.xlu0 %397
    %v399 = vsel %vm149, %v104, 0.0
    %400 = vadd.xlane.f32.xlu0 %v399
    %v401 = vpop.xlane.xlu0 %400
    %v402 = vsel %vm149, %v105, 0.0
    %403 = vadd.xlane.f32.xlu0 %v402
    %v404 = vpop.xlane.xlu0 %403
    %v405 = vsel %vm149, %v106, 0.0
    %406 = vadd.xlane.f32.xlu0 %v405
    %v407 = vpop.xlane.xlu0 %406
    %v408 = vsel %vm149, %v107, 0.0
    %409 = vadd.xlane.f32.xlu0 %v408
    %v410 = vpop.xlane.xlu0 %409
    %v411 = vsel %vm149, %v108, 0.0
    %412 = vadd.xlane.f32.xlu0 %v411
    %v413 = vpop.xlane.xlu0 %412
    %v414 = vsel %vm149, %v109, 0.0
    %415 = vadd.xlane.f32.xlu0 %v414
    %v416 = vpop.xlane.xlu0 %415
    %v417 = vsel %vm149, %v110, 0.0
    %418 = vadd.xlane.f32.xlu0 %v417
    %v419 = vpop.xlane.xlu0 %418
    %v420 = vsel %vm149, %v111, 0.0
    %421 = vadd.xlane.f32.xlu0 %v420
    %v422 = vpop.xlane.xlu0 %421
    %v423 = vsel %vm149, %v112, 0.0
    %424 = vadd.xlane.f32.xlu0 %v423
    %v425 = vpop.xlane.xlu0 %424
    %v426 = vsel %vm149, %v113, 0.0
    %427 = vadd.xlane.f32.xlu0 %v426
    %v428 = vpop.xlane.xlu0 %427
    %v429 = vsel %vm149, %v114, 0.0
    %430 = vadd.xlane.f32.xlu0 %v429
    %v431 = vpop.xlane.xlu0 %430
    %v432 = vsel %vm149, %v115, 0.0
    %433 = vadd.xlane.f32.xlu0 %v432
    %v434 = vpop.xlane.xlu0 %433
    %v435 = vsel %vm149, %v116, 0.0
    %436 = vadd.xlane.f32.xlu0 %v435
    %v437 = vpop.xlane.xlu0 %436
    %v438 = vsel %vm149, %v117, 0.0
    %439 = vadd.xlane.f32.xlu0 %v438
    %v440 = vpop.xlane.xlu0 %439
    %v441 = vsel %vm149, %v118, 0.0
    %442 = vadd.xlane.f32.xlu0 %v441
    %v443 = vpop.xlane.xlu0 %442
    %v444 = vsel %vm149, %v119, 0.0
    %445 = vadd.xlane.f32.xlu0 %v444
    %v446 = vpop.xlane.xlu0 %445
    %v447 = vsel %vm149, %v120, 0.0
    %448 = vadd.xlane.f32.xlu0 %v447
    %v449 = vpop.xlane.xlu0 %448
    %v450 = vsel %vm149, %v121, 0.0
    %451 = vadd.xlane.f32.xlu0 %v450
    %v452 = vpop.xlane.xlu0 %451
    %v453 = vsel %vm149, %v122, 0.0
    %454 = vadd.xlane.f32.xlu0 %v453
    %v455 = vpop.xlane.xlu0 %454
    %v456 = vsel %vm149, %v123, 0.0
    %457 = vadd.xlane.f32.xlu0 %v456
    %v458 = vpop.xlane.xlu0 %457
    %v459 = vsel %vm149, %v124, 0.0
    %460 = vadd.xlane.f32.xlu0 %v459
    %v461 = vpop.xlane.xlu0 %460
    %v462 = vsel %vm149, %v125, 0.0
    %463 = vadd.xlane.f32.xlu0 %v462
    %v464 = vpop.xlane.xlu0 %463
    %v465 = vsel %vm149, %v126, 0.0
    %466 = vadd.xlane.f32.xlu0 %v465
    %v467 = vpop.xlane.xlu0 %466
    %v468 = vsel %vm149, %v127, 0.0
    %469 = vadd.xlane.f32.xlu0 %v468
    %v470 = vpop.xlane.xlu0 %469
    %v471 = vsel %vm149, %v128, 0.0
    %472 = vadd.xlane.f32.xlu0 %v471
    %v473 = vpop.xlane.xlu0 %472
    %v474 = vsel %vm149, %v129, 0.0
    %475 = vadd.xlane.f32.xlu0 %v474
    %v476 = vpop.xlane.xlu0 %475
    %v477 = vsel %vm149, %v130, 0.0
    %478 = vadd.xlane.f32.xlu0 %v477
    %v479 = vpop.xlane.xlu0 %478
    %v480 = vsel %vm149, %v131, 0.0
    %481 = vadd.xlane.f32.xlu0 %v480
    %v482 = vpop.xlane.xlu0 %481
    %v483 = vsel %vm149, %v132, 0.0
    %484 = vadd.xlane.f32.xlu0 %v483
    %v485 = vpop.xlane.xlu0 %484
    %v486 = vsel %vm149, %v133, 0.0
    %487 = vadd.xlane.f32.xlu0 %v486
    %v488 = vpop.xlane.xlu0 %487
    %v489 = vsel %vm149, %v134, 0.0
    %490 = vadd.xlane.f32.xlu0 %v489
    %v491 = vpop.xlane.xlu0 %490
    %v492 = vsel %vm149, %v135, 0.0
    %493 = vadd.xlane.f32.xlu0 %v492
    %v494 = vpop.xlane.xlu0 %493
    %v495 = vsel %vm149, %v136, 0.0
    %496 = vadd.xlane.f32.xlu0 %v495
    %v497 = vpop.xlane.xlu0 %496
    %v498 = vsel %vm149, %v137, 0.0
    %499 = vadd.xlane.f32.xlu0 %v498
    %v500 = vpop.xlane.xlu0 %499
    %v501 = vsel %vm149, %v138, 0.0
    %502 = vadd.xlane.f32.xlu0 %v501
    %v503 = vpop.xlane.xlu0 %502
    %v504 = vsel %vm149, %v139, 0.0
    %505 = vadd.xlane.f32.xlu0 %v504
    %v506 = vpop.xlane.xlu0 %505
    %v507 = vsel %vm149, %v140, 0.0
    %508 = vadd.xlane.f32.xlu0 %v507
    %v509 = vpop.xlane.xlu0 %508
    %v510 = vsel %vm149, %v141, 0.0
    %511 = vadd.xlane.f32.xlu0 %v510
    %v512 = vpop.xlane.xlu0 %511
    %v513 = vsel %vm149, %v142, 0.0
    %514 = vadd.xlane.f32.xlu0 %v513
    %v515 = vpop.xlane.xlu0 %514
    %v516 = vsel %vm149, %v143, 0.0
    %517 = vadd.xlane.f32.xlu0 %v516
    %v518 = vpop.xlane.xlu0 %517
    %v519 = vsel %vm149, %v144, 0.0
    %520 = vadd.xlane.f32.xlu0 %v519
    %v521 = vpop.xlane.xlu0 %520
    %v522 = vsel %vm149, %v145, 0.0
    %523 = vadd.xlane.f32.xlu0 %v522
    %v524 = vpop.xlane.xlu0 %523
    %v525 = vsel %vm149, %v146, 0.0
    %526 = vadd.xlane.f32.xlu0 %v525
    %v527 = vpop.xlane.xlu0 %526
    %v528 = vsel %vm149, %v147, 0.0
    %529 = vadd.xlane.f32.xlu0 %v528
    %v530 = vpop.xlane.xlu0 %529
    %v531 = vsel %vm149, %v148, 0.0
    %532 = vadd.xlane.f32.xlu0 %v531
    %v533 = vpop.xlane.xlu0 %532
    %662 = vrot.lane.b32.xlu0 %v21, 64
    %v663 = vpop.permute.xlu0 %662
    %664 = vrot.lane.b32.xlu0 %v22, 64
    %v665 = vpop.permute.xlu0 %664
    %666 = vrot.lane.b32.xlu0 %v23, 64
    %v667 = vpop.permute.xlu0 %666
    %668 = vrot.lane.b32.xlu0 %v24, 64
    %v669 = vpop.permute.xlu0 %668
    %670 = vrot.lane.b32.xlu0 %v25, 64
    %v671 = vpop.permute.xlu0 %670
    %672 = vrot.lane.b32.xlu0 %v26, 64
    %v673 = vpop.permute.xlu0 %672
    %674 = vrot.lane.b32.xlu0 %v27, 64
    %v675 = vpop.permute.xlu0 %674
    %676 = vrot.lane.b32.xlu0 %v28, 64
    %v677 = vpop.permute.xlu0 %676
    %678 = vrot.lane.b32.xlu0 %v29, 64
    %v679 = vpop.permute.xlu0 %678
    %680 = vrot.lane.b32.xlu0 %v30, 64
    %v681 = vpop.permute.xlu0 %680
    %682 = vrot.lane.b32.xlu0 %v31, 64
    %v683 = vpop.permute.xlu0 %682
    %684 = vrot.lane.b32.xlu0 %v32, 64
    %v685 = vpop.permute.xlu0 %684
    %686 = vrot.lane.b32.xlu0 %v33, 64
    %v687 = vpop.permute.xlu0 %686
    %688 = vrot.lane.b32.xlu0 %v34, 64
    %v689 = vpop.permute.xlu0 %688
    %690 = vrot.lane.b32.xlu0 %v35, 64
    %v691 = vpop.permute.xlu0 %690
    %692 = vrot.lane.b32.xlu0 %v36, 64
    %v693 = vpop.permute.xlu0 %692
    %694 = vrot.lane.b32.xlu0 %v37, 64
    %v695 = vpop.permute.xlu0 %694
    %696 = vrot.lane.b32.xlu0 %v38, 64
    %v697 = vpop.permute.xlu0 %696
    %698 = vrot.lane.b32.xlu0 %v39, 64
    %v699 = vpop.permute.xlu0 %698
    %700 = vrot.lane.b32.xlu0 %v40, 64
    %v701 = vpop.permute.xlu0 %700
    %702 = vrot.lane.b32.xlu0 %v41, 64
    %v703 = vpop.permute.xlu0 %702
    %704 = vrot.lane.b32.xlu0 %v42, 64
    %v705 = vpop.permute.xlu0 %704
    %706 = vrot.lane.b32.xlu0 %v43, 64
    %v707 = vpop.permute.xlu0 %706
    %708 = vrot.lane.b32.xlu0 %v44, 64
    %v709 = vpop.permute.xlu0 %708
    %710 = vrot.lane.b32.xlu0 %v45, 64
    %v711 = vpop.permute.xlu0 %710
    %712 = vrot.lane.b32.xlu0 %v46, 64
    %v713 = vpop.permute.xlu0 %712
    %714 = vrot.lane.b32.xlu0 %v47, 64
    %v715 = vpop.permute.xlu0 %714
    %716 = vrot.lane.b32.xlu0 %v48, 64
    %v717 = vpop.permute.xlu0 %716
    %718 = vrot.lane.b32.xlu0 %v49, 64
    %v719 = vpop.permute.xlu0 %718
    %720 = vrot.lane.b32.xlu0 %v50, 64
    %v721 = vpop.permute.xlu0 %720
    %722 = vrot.lane.b32.xlu0 %v51, 64
    %v723 = vpop.permute.xlu0 %722
    %724 = vrot.lane.b32.xlu0 %v52, 64
    %v725 = vpop.permute.xlu0 %724
    %726 = vrot.lane.b32.xlu0 %v53, 64
    %v727 = vpop.permute.xlu0 %726
    %728 = vrot.lane.b32.xlu0 %v54, 64
    %v729 = vpop.permute.xlu0 %728
    %730 = vrot.lane.b32.xlu0 %v55, 64
    %v731 = vpop.permute.xlu0 %730
    %732 = vrot.lane.b32.xlu0 %v56, 64
    %v733 = vpop.permute.xlu0 %732
    %734 = vrot.lane.b32.xlu0 %v57, 64
    %v735 = vpop.permute.xlu0 %734
    %736 = vrot.lane.b32.xlu0 %v58, 64
    %v737 = vpop.permute.xlu0 %736
    %738 = vrot.lane.b32.xlu0 %v59, 64
    %v739 = vpop.permute.xlu0 %738
    %740 = vrot.lane.b32.xlu0 %v60, 64
    %v741 = vpop.permute.xlu0 %740
    %742 = vrot.lane.b32.xlu0 %v61, 64
    %v743 = vpop.permute.xlu0 %742
    %744 = vrot.lane.b32.xlu0 %v62, 64
    %v745 = vpop.permute.xlu0 %744
    %746 = vrot.lane.b32.xlu0 %v63, 64
    %v747 = vpop.permute.xlu0 %746
    %748 = vrot.lane.b32.xlu0 %v64, 64
    %v749 = vpop.permute.xlu0 %748
    %750 = vrot.lane.b32.xlu0 %v65, 64
    %v751 = vpop.permute.xlu0 %750
    %752 = vrot.lane.b32.xlu0 %v66, 64
    %v753 = vpop.permute.xlu0 %752
    %754 = vrot.lane.b32.xlu0 %v67, 64
    %v755 = vpop.permute.xlu0 %754
    %756 = vrot.lane.b32.xlu0 %v68, 64
    %v757 = vpop.permute.xlu0 %756
    %758 = vrot.lane.b32.xlu0 %v69, 64
    %v759 = vpop.permute.xlu0 %758
    %760 = vrot.lane.b32.xlu0 %v70, 64
    %v761 = vpop.permute.xlu0 %760
    %762 = vrot.lane.b32.xlu0 %v71, 64
    %v763 = vpop.permute.xlu0 %762
    %764 = vrot.lane.b32.xlu0 %v72, 64
    %v765 = vpop.permute.xlu0 %764
    %766 = vrot.lane.b32.xlu0 %v73, 64
    %v767 = vpop.permute.xlu0 %766
    %768 = vrot.lane.b32.xlu0 %v74, 64
    %v769 = vpop.permute.xlu0 %768
    %770 = vrot.lane.b32.xlu0 %v75, 64
    %v771 = vpop.permute.xlu0 %770
    %772 = vrot.lane.b32.xlu0 %v76, 64
    %v773 = vpop.permute.xlu0 %772
    %774 = vrot.lane.b32.xlu0 %v77, 64
    %v775 = vpop.permute.xlu0 %774
    %776 = vrot.lane.b32.xlu0 %v78, 64
    %v777 = vpop.permute.xlu0 %776
    %778 = vrot.lane.b32.xlu0 %v79, 64
    %v779 = vpop.permute.xlu0 %778
    %780 = vrot.lane.b32.xlu0 %v80, 64
    %v781 = vpop.permute.xlu0 %780
    %782 = vrot.lane.b32.xlu0 %v81, 64
    %v783 = vpop.permute.xlu0 %782
    %784 = vrot.lane.b32.xlu0 %v82, 64
    %v785 = vpop.permute.xlu0 %784
    %786 = vrot.lane.b32.xlu0 %v83, 64
    %v787 = vpop.permute.xlu0 %786
    %788 = vrot.lane.b32.xlu0 %v84, 64
    %v789 = vpop.permute.xlu0 %788
    %790 = vrot.lane.b32.xlu0 %v85, 64
    %v791 = vpop.permute.xlu0 %790
    %792 = vrot.lane.b32.xlu0 %v86, 64
    %v793 = vpop.permute.xlu0 %792
    %794 = vrot.lane.b32.xlu0 %v87, 64
    %v795 = vpop.permute.xlu0 %794
    %796 = vrot.lane.b32.xlu0 %v88, 64
    %v797 = vpop.permute.xlu0 %796
    %798 = vrot.lane.b32.xlu0 %v89, 64
    %v799 = vpop.permute.xlu0 %798
    %800 = vrot.lane.b32.xlu0 %v90, 64
    %v801 = vpop.permute.xlu0 %800
    %802 = vrot.lane.b32.xlu0 %v91, 64
    %v803 = vpop.permute.xlu0 %802
    %804 = vrot.lane.b32.xlu0 %v92, 64
    %v805 = vpop.permute.xlu0 %804
    %806 = vrot.lane.b32.xlu0 %v93, 64
    %v807 = vpop.permute.xlu0 %806
    %808 = vrot.lane.b32.xlu0 %v94, 64
    %v809 = vpop.permute.xlu0 %808
    %810 = vrot.lane.b32.xlu0 %v95, 64
    %v811 = vpop.permute.xlu0 %810
    %812 = vrot.lane.b32.xlu0 %v96, 64
    %v813 = vpop.permute.xlu0 %812
    %814 = vrot.lane.b32.xlu0 %v97, 64
    %v815 = vpop.permute.xlu0 %814
    %816 = vrot.lane.b32.xlu0 %v98, 64
    %v817 = vpop.permute.xlu0 %816
    %818 = vrot.lane.b32.xlu0 %v99, 64
    %v819 = vpop.permute.xlu0 %818
    %820 = vrot.lane.b32.xlu0 %v100, 64
    %v821 = vpop.permute.xlu0 %820
    %822 = vrot.lane.b32.xlu0 %v101, 64
    %v823 = vpop.permute.xlu0 %822
    %824 = vrot.lane.b32.xlu0 %v102, 64
    %v825 = vpop.permute.xlu0 %824
    %826 = vrot.lane.b32.xlu0 %v103, 64
    %v827 = vpop.permute.xlu0 %826
    %828 = vrot.lane.b32.xlu0 %v104, 64
    %v829 = vpop.permute.xlu0 %828
    %830 = vrot.lane.b32.xlu0 %v105, 64
    %v831 = vpop.permute.xlu0 %830
    %832 = vrot.lane.b32.xlu0 %v106, 64
    %v833 = vpop.permute.xlu0 %832
    %834 = vrot.lane.b32.xlu0 %v107, 64
    %v835 = vpop.permute.xlu0 %834
    %836 = vrot.lane.b32.xlu0 %v108, 64
    %v837 = vpop.permute.xlu0 %836
    %838 = vrot.lane.b32.xlu0 %v109, 64
    %v839 = vpop.permute.xlu0 %838
    %840 = vrot.lane.b32.xlu0 %v110, 64
    %v841 = vpop.permute.xlu0 %840
    %842 = vrot.lane.b32.xlu0 %v111, 64
    %v843 = vpop.permute.xlu0 %842
    %844 = vrot.lane.b32.xlu0 %v112, 64
    %v845 = vpop.permute.xlu0 %844
    %846 = vrot.lane.b32.xlu0 %v113, 64
    %v847 = vpop.permute.xlu0 %846
    %848 = vrot.lane.b32.xlu0 %v114, 64
    %v849 = vpop.permute.xlu0 %848
    %850 = vrot.lane.b32.xlu0 %v115, 64
    %v851 = vpop.permute.xlu0 %850
    %852 = vrot.lane.b32.xlu0 %v116, 64
    %v853 = vpop.permute.xlu0 %852
    %854 = vrot.lane.b32.xlu0 %v117, 64
    %v855 = vpop.permute.xlu0 %854
    %856 = vrot.lane.b32.xlu0 %v118, 64
    %v857 = vpop.permute.xlu0 %856
    %858 = vrot.lane.b32.xlu0 %v119, 64
    %v859 = vpop.permute.xlu0 %858
    %860 = vrot.lane.b32.xlu0 %v120, 64
    %v861 = vpop.permute.xlu0 %860
    %862 = vrot.lane.b32.xlu0 %v121, 64
    %v863 = vpop.permute.xlu0 %862
    %864 = vrot.lane.b32.xlu0 %v122, 64
    %v865 = vpop.permute.xlu0 %864
    %866 = vrot.lane.b32.xlu0 %v123, 64
    %v867 = vpop.permute.xlu0 %866
    %868 = vrot.lane.b32.xlu0 %v124, 64
    %v869 = vpop.permute.xlu0 %868
    %870 = vrot.lane.b32.xlu0 %v125, 64
    %v871 = vpop.permute.xlu0 %870
    %872 = vrot.lane.b32.xlu0 %v126, 64
    %v873 = vpop.permute.xlu0 %872
    %874 = vrot.lane.b32.xlu0 %v127, 64
    %v875 = vpop.permute.xlu0 %874
    %876 = vrot.lane.b32.xlu0 %v128, 64
    %v877 = vpop.permute.xlu0 %876
    %878 = vrot.lane.b32.xlu0 %v129, 64
    %v879 = vpop.permute.xlu0 %878
    %880 = vrot.lane.b32.xlu0 %v130, 64
    %v881 = vpop.permute.xlu0 %880
    %882 = vrot.lane.b32.xlu0 %v131, 64
    %v883 = vpop.permute.xlu0 %882
    %884 = vrot.lane.b32.xlu0 %v132, 64
    %v885 = vpop.permute.xlu0 %884
    %886 = vrot.lane.b32.xlu0 %v133, 64
    %v887 = vpop.permute.xlu0 %886
    %888 = vrot.lane.b32.xlu0 %v134, 64
    %v889 = vpop.permute.xlu0 %888
    %890 = vrot.lane.b32.xlu0 %v135, 64
    %v891 = vpop.permute.xlu0 %890
    %892 = vrot.lane.b32.xlu0 %v136, 64
    %v893 = vpop.permute.xlu0 %892
    %894 = vrot.lane.b32.xlu0 %v137, 64
    %v895 = vpop.permute.xlu0 %894
    %896 = vrot.lane.b32.xlu0 %v138, 64
    %v897 = vpop.permute.xlu0 %896
    %898 = vrot.lane.b32.xlu0 %v139, 64
    %v899 = vpop.permute.xlu0 %898
    %900 = vrot.lane.b32.xlu0 %v140, 64
    %v901 = vpop.permute.xlu0 %900
    %902 = vrot.lane.b32.xlu0 %v141, 64
    %v903 = vpop.permute.xlu0 %902
    %904 = vrot.lane.b32.xlu0 %v142, 64
    %v905 = vpop.permute.xlu0 %904
    %906 = vrot.lane.b32.xlu0 %v143, 64
    %v907 = vpop.permute.xlu0 %906
    %908 = vrot.lane.b32.xlu0 %v144, 64
    %v909 = vpop.permute.xlu0 %908
    %910 = vrot.lane.b32.xlu0 %v145, 64
    %v911 = vpop.permute.xlu0 %910
    %912 = vrot.lane.b32.xlu0 %v146, 64
    %v913 = vpop.permute.xlu0 %912
    %914 = vrot.lane.b32.xlu0 %v147, 64
    %v915 = vpop.permute.xlu0 %914
    %916 = vrot.lane.b32.xlu0 %v148, 64
    %v917 = vpop.permute.xlu0 %916
    %v1046 = vsel %vm149, %v663, 0.0
    %1047 = vadd.xlane.f32.xlu0 %v1046
    %v1048 = vpop.xlane.xlu0 %1047
    %v1049 = vsel %vm149, %v665, 0.0
    %1050 = vadd.xlane.f32.xlu0 %v1049
    %v1051 = vpop.xlane.xlu0 %1050
    %v1052 = vsel %vm149, %v667, 0.0
    %1053 = vadd.xlane.f32.xlu0 %v1052
    %v1054 = vpop.xlane.xlu0 %1053
    %v1055 = vsel %vm149, %v669, 0.0
    %1056 = vadd.xlane.f32.xlu0 %v1055
    %v1057 = vpop.xlane.xlu0 %1056
    %v1058 = vsel %vm149, %v671, 0.0
    %1059 = vadd.xlane.f32.xlu0 %v1058
    %v1060 = vpop.xlane.xlu0 %1059
    %v1061 = vsel %vm149, %v673, 0.0
    %1062 = vadd.xlane.f32.xlu0 %v1061
    %v1063 = vpop.xlane.xlu0 %1062
    %v1064 = vsel %vm149, %v675, 0.0
    %1065 = vadd.xlane.f32.xlu0 %v1064
    %v1066 = vpop.xlane.xlu0 %1065
    %v1067 = vsel %vm149, %v677, 0.0
    %1068 = vadd.xlane.f32.xlu0 %v1067
    %v1069 = vpop.xlane.xlu0 %1068
    %v1070 = vsel %vm149, %v679, 0.0
    %1071 = vadd.xlane.f32.xlu0 %v1070
    %v1072 = vpop.xlane.xlu0 %1071
    %v1073 = vsel %vm149, %v681, 0.0
    %1074 = vadd.xlane.f32.xlu0 %v1073
    %v1075 = vpop.xlane.xlu0 %1074
    %v1076 = vsel %vm149, %v683, 0.0
    %1077 = vadd.xlane.f32.xlu0 %v1076
    %v1078 = vpop.xlane.xlu0 %1077
    %v1079 = vsel %vm149, %v685, 0.0
    %1080 = vadd.xlane.f32.xlu0 %v1079
    %v1081 = vpop.xlane.xlu0 %1080
    %v1082 = vsel %vm149, %v687, 0.0
    %1083 = vadd.xlane.f32.xlu0 %v1082
    %v1084 = vpop.xlane.xlu0 %1083
    %v1085 = vsel %vm149, %v689, 0.0
    %1086 = vadd.xlane.f32.xlu0 %v1085
    %v1087 = vpop.xlane.xlu0 %1086
    %v1088 = vsel %vm149, %v691, 0.0
    %1089 = vadd.xlane.f32.xlu0 %v1088
    %v1090 = vpop.xlane.xlu0 %1089
    %v1091 = vsel %vm149, %v693, 0.0
    %1092 = vadd.xlane.f32.xlu0 %v1091
    %v1093 = vpop.xlane.xlu0 %1092
    %v1094 = vsel %vm149, %v695, 0.0
    %1095 = vadd.xlane.f32.xlu0 %v1094
    %v1096 = vpop.xlane.xlu0 %1095
    %v1097 = vsel %vm149, %v697, 0.0
    %1098 = vadd.xlane.f32.xlu0 %v1097
    %v1099 = vpop.xlane.xlu0 %1098
    %v1100 = vsel %vm149, %v699, 0.0
    %1101 = vadd.xlane.f32.xlu0 %v1100
    %v1102 = vpop.xlane.xlu0 %1101
    %v1103 = vsel %vm149, %v701, 0.0
    %1104 = vadd.xlane.f32.xlu0 %v1103
    %v1105 = vpop.xlane.xlu0 %1104
    %v1106 = vsel %vm149, %v703, 0.0
    %1107 = vadd.xlane.f32.xlu0 %v1106
    %v1108 = vpop.xlane.xlu0 %1107
    %v1109 = vsel %vm149, %v705, 0.0
    %1110 = vadd.xlane.f32.xlu0 %v1109
    %v1111 = vpop.xlane.xlu0 %1110
    %v1112 = vsel %vm149, %v707, 0.0
    %1113 = vadd.xlane.f32.xlu0 %v1112
    %v1114 = vpop.xlane.xlu0 %1113
    %v1115 = vsel %vm149, %v709, 0.0
    %1116 = vadd.xlane.f32.xlu0 %v1115
    %v1117 = vpop.xlane.xlu0 %1116
    %v1118 = vsel %vm149, %v711, 0.0
    %1119 = vadd.xlane.f32.xlu0 %v1118
    %v1120 = vpop.xlane.xlu0 %1119
    %v1121 = vsel %vm149, %v713, 0.0
    %1122 = vadd.xlane.f32.xlu0 %v1121
    %v1123 = vpop.xlane.xlu0 %1122
    %v1124 = vsel %vm149, %v715, 0.0
    %1125 = vadd.xlane.f32.xlu0 %v1124
    %v1126 = vpop.xlane.xlu0 %1125
    %v1127 = vsel %vm149, %v717, 0.0
    %1128 = vadd.xlane.f32.xlu0 %v1127
    %v1129 = vpop.xlane.xlu0 %1128
    %v1130 = vsel %vm149, %v719, 0.0
    %1131 = vadd.xlane.f32.xlu0 %v1130
    %v1132 = vpop.xlane.xlu0 %1131
    %v1133 = vsel %vm149, %v721, 0.0
    %1134 = vadd.xlane.f32.xlu0 %v1133
    %v1135 = vpop.xlane.xlu0 %1134
    %v1136 = vsel %vm149, %v723, 0.0
    %1137 = vadd.xlane.f32.xlu0 %v1136
    %v1138 = vpop.xlane.xlu0 %1137
    %v1139 = vsel %vm149, %v725, 0.0
    %1140 = vadd.xlane.f32.xlu0 %v1139
    %v1141 = vpop.xlane.xlu0 %1140
    %v1142 = vsel %vm149, %v727, 0.0
    %1143 = vadd.xlane.f32.xlu0 %v1142
    %v1144 = vpop.xlane.xlu0 %1143
    %v1145 = vsel %vm149, %v729, 0.0
    %1146 = vadd.xlane.f32.xlu0 %v1145
    %v1147 = vpop.xlane.xlu0 %1146
    %v1148 = vsel %vm149, %v731, 0.0
    %1149 = vadd.xlane.f32.xlu0 %v1148
    %v1150 = vpop.xlane.xlu0 %1149
    %v1151 = vsel %vm149, %v733, 0.0
    %1152 = vadd.xlane.f32.xlu0 %v1151
    %v1153 = vpop.xlane.xlu0 %1152
    %v1154 = vsel %vm149, %v735, 0.0
    %1155 = vadd.xlane.f32.xlu0 %v1154
    %v1156 = vpop.xlane.xlu0 %1155
    %v1157 = vsel %vm149, %v737, 0.0
    %1158 = vadd.xlane.f32.xlu0 %v1157
    %v1159 = vpop.xlane.xlu0 %1158
    %v1160 = vsel %vm149, %v739, 0.0
    %1161 = vadd.xlane.f32.xlu0 %v1160
    %v1162 = vpop.xlane.xlu0 %1161
    %v1163 = vsel %vm149, %v741, 0.0
    %1164 = vadd.xlane.f32.xlu0 %v1163
    %v1165 = vpop.xlane.xlu0 %1164
    %v1166 = vsel %vm149, %v743, 0.0
    %1167 = vadd.xlane.f32.xlu0 %v1166
    %v1168 = vpop.xlane.xlu0 %1167
    %v1169 = vsel %vm149, %v745, 0.0
    %1170 = vadd.xlane.f32.xlu0 %v1169
    %v1171 = vpop.xlane.xlu0 %1170
    %v1172 = vsel %vm149, %v747, 0.0
    %1173 = vadd.xlane.f32.xlu0 %v1172
    %v1174 = vpop.xlane.xlu0 %1173
    %v1175 = vsel %vm149, %v749, 0.0
    %1176 = vadd.xlane.f32.xlu0 %v1175
    %v1177 = vpop.xlane.xlu0 %1176
    %v1178 = vsel %vm149, %v751, 0.0
    %1179 = vadd.xlane.f32.xlu0 %v1178
    %v1180 = vpop.xlane.xlu0 %1179
    %v1181 = vsel %vm149, %v753, 0.0
    %1182 = vadd.xlane.f32.xlu0 %v1181
    %v1183 = vpop.xlane.xlu0 %1182
    %v1184 = vsel %vm149, %v755, 0.0
    %1185 = vadd.xlane.f32.xlu0 %v1184
    %v1186 = vpop.xlane.xlu0 %1185
    %v1187 = vsel %vm149, %v757, 0.0
    %1188 = vadd.xlane.f32.xlu0 %v1187
    %v1189 = vpop.xlane.xlu0 %1188
    %v1190 = vsel %vm149, %v759, 0.0
    %1191 = vadd.xlane.f32.xlu0 %v1190
    %v1192 = vpop.xlane.xlu0 %1191
    %v1193 = vsel %vm149, %v761, 0.0
    %1194 = vadd.xlane.f32.xlu0 %v1193
    %v1195 = vpop.xlane.xlu0 %1194
    %v1196 = vsel %vm149, %v763, 0.0
    %1197 = vadd.xlane.f32.xlu0 %v1196
    %v1198 = vpop.xlane.xlu0 %1197
    %v1199 = vsel %vm149, %v765, 0.0
    %1200 = vadd.xlane.f32.xlu0 %v1199
    %v1201 = vpop.xlane.xlu0 %1200
    %v1202 = vsel %vm149, %v767, 0.0
    %1203 = vadd.xlane.f32.xlu0 %v1202
    %v1204 = vpop.xlane.xlu0 %1203
    %v1205 = vsel %vm149, %v769, 0.0
    %1206 = vadd.xlane.f32.xlu0 %v1205
    %v1207 = vpop.xlane.xlu0 %1206
    %v1208 = vsel %vm149, %v771, 0.0
    %1209 = vadd.xlane.f32.xlu0 %v1208
    %v1210 = vpop.xlane.xlu0 %1209
    %v1211 = vsel %vm149, %v773, 0.0
    %1212 = vadd.xlane.f32.xlu0 %v1211
    %v1213 = vpop.xlane.xlu0 %1212
    %v1214 = vsel %vm149, %v775, 0.0
    %1215 = vadd.xlane.f32.xlu0 %v1214
    %v1216 = vpop.xlane.xlu0 %1215
    %v1217 = vsel %vm149, %v777, 0.0
    %1218 = vadd.xlane.f32.xlu0 %v1217
    %v1219 = vpop.xlane.xlu0 %1218
    %v1220 = vsel %vm149, %v779, 0.0
    %1221 = vadd.xlane.f32.xlu0 %v1220
    %v1222 = vpop.xlane.xlu0 %1221
    %v1223 = vsel %vm149, %v781, 0.0
    %1224 = vadd.xlane.f32.xlu0 %v1223
    %v1225 = vpop.xlane.xlu0 %1224
    %v1226 = vsel %vm149, %v783, 0.0
    %1227 = vadd.xlane.f32.xlu0 %v1226
    %v1228 = vpop.xlane.xlu0 %1227
    %v1229 = vsel %vm149, %v785, 0.0
    %1230 = vadd.xlane.f32.xlu0 %v1229
    %v1231 = vpop.xlane.xlu0 %1230
    %v1232 = vsel %vm149, %v787, 0.0
    %1233 = vadd.xlane.f32.xlu0 %v1232
    %v1234 = vpop.xlane.xlu0 %1233
    %v1235 = vsel %vm149, %v789, 0.0
    %1236 = vadd.xlane.f32.xlu0 %v1235
    %v1237 = vpop.xlane.xlu0 %1236
    %v1238 = vsel %vm149, %v791, 0.0
    %1239 = vadd.xlane.f32.xlu0 %v1238
    %v1240 = vpop.xlane.xlu0 %1239
    %v1241 = vsel %vm149, %v793, 0.0
    %1242 = vadd.xlane.f32.xlu0 %v1241
    %v1243 = vpop.xlane.xlu0 %1242
    %v1244 = vsel %vm149, %v795, 0.0
    %1245 = vadd.xlane.f32.xlu0 %v1244
    %v1246 = vpop.xlane.xlu0 %1245
    %v1247 = vsel %vm149, %v797, 0.0
    %1248 = vadd.xlane.f32.xlu0 %v1247
    %v1249 = vpop.xlane.xlu0 %1248
    %v1250 = vsel %vm149, %v799, 0.0
    %1251 = vadd.xlane.f32.xlu0 %v1250
    %v1252 = vpop.xlane.xlu0 %1251
    %v1253 = vsel %vm149, %v801, 0.0
    %1254 = vadd.xlane.f32.xlu0 %v1253
    %v1255 = vpop.xlane.xlu0 %1254
    %v1256 = vsel %vm149, %v803, 0.0
    %1257 = vadd.xlane.f32.xlu0 %v1256
    %v1258 = vpop.xlane.xlu0 %1257
    %v1259 = vsel %vm149, %v805, 0.0
    %1260 = vadd.xlane.f32.xlu0 %v1259
    %v1261 = vpop.xlane.xlu0 %1260
    %v1262 = vsel %vm149, %v807, 0.0
    %1263 = vadd.xlane.f32.xlu0 %v1262
    %v1264 = vpop.xlane.xlu0 %1263
    %v1265 = vsel %vm149, %v809, 0.0
    %1266 = vadd.xlane.f32.xlu0 %v1265
    %v1267 = vpop.xlane.xlu0 %1266
    %v1268 = vsel %vm149, %v811, 0.0
    %1269 = vadd.xlane.f32.xlu0 %v1268
    %v1270 = vpop.xlane.xlu0 %1269
    %v1271 = vsel %vm149, %v813, 0.0
    %1272 = vadd.xlane.f32.xlu0 %v1271
    %v1273 = vpop.xlane.xlu0 %1272
    %v1274 = vsel %vm149, %v815, 0.0
    %1275 = vadd.xlane.f32.xlu0 %v1274
    %v1276 = vpop.xlane.xlu0 %1275
    %v1277 = vsel %vm149, %v817, 0.0
    %1278 = vadd.xlane.f32.xlu0 %v1277
    %v1279 = vpop.xlane.xlu0 %1278
    %v1280 = vsel %vm149, %v819, 0.0
    %1281 = vadd.xlane.f32.xlu0 %v1280
    %v1282 = vpop.xlane.xlu0 %1281
    %v1283 = vsel %vm149, %v821, 0.0
    %1284 = vadd.xlane.f32.xlu0 %v1283
    %v1285 = vpop.xlane.xlu0 %1284
    %v1286 = vsel %vm149, %v823, 0.0
    %1287 = vadd.xlane.f32.xlu0 %v1286
    %v1288 = vpop.xlane.xlu0 %1287
    %v1289 = vsel %vm149, %v825, 0.0
    %1290 = vadd.xlane.f32.xlu0 %v1289
    %v1291 = vpop.xlane.xlu0 %1290
    %v1292 = vsel %vm149, %v827, 0.0
    %1293 = vadd.xlane.f32.xlu0 %v1292
    %v1294 = vpop.xlane.xlu0 %1293
    %v1295 = vsel %vm149, %v829, 0.0
    %1296 = vadd.xlane.f32.xlu0 %v1295
    %v1297 = vpop.xlane.xlu0 %1296
    %v1298 = vsel %vm149, %v831, 0.0
    %1299 = vadd.xlane.f32.xlu0 %v1298
    %v1300 = vpop.xlane.xlu0 %1299
    %v1301 = vsel %vm149, %v833, 0.0
    %1302 = vadd.xlane.f32.xlu0 %v1301
    %v1303 = vpop.xlane.xlu0 %1302
    %v1304 = vsel %vm149, %v835, 0.0
    %1305 = vadd.xlane.f32.xlu0 %v1304
    %v1306 = vpop.xlane.xlu0 %1305
    %v1307 = vsel %vm149, %v837, 0.0
    %1308 = vadd.xlane.f32.xlu0 %v1307
    %v1309 = vpop.xlane.xlu0 %1308
    %v1310 = vsel %vm149, %v839, 0.0
    %1311 = vadd.xlane.f32.xlu0 %v1310
    %v1312 = vpop.xlane.xlu0 %1311
    %v1313 = vsel %vm149, %v841, 0.0
    %1314 = vadd.xlane.f32.xlu0 %v1313
    %v1315 = vpop.xlane.xlu0 %1314
    %v1316 = vsel %vm149, %v843, 0.0
    %1317 = vadd.xlane.f32.xlu0 %v1316
    %v1318 = vpop.xlane.xlu0 %1317
    %v1319 = vsel %vm149, %v845, 0.0
    %1320 = vadd.xlane.f32.xlu0 %v1319
    %v1321 = vpop.xlane.xlu0 %1320
    %v1322 = vsel %vm149, %v847, 0.0
    %1323 = vadd.xlane.f32.xlu0 %v1322
    %v1324 = vpop.xlane.xlu0 %1323
    %v1325 = vsel %vm149, %v849, 0.0
    %1326 = vadd.xlane.f32.xlu0 %v1325
    %v1327 = vpop.xlane.xlu0 %1326
    %v1328 = vsel %vm149, %v851, 0.0
    %1329 = vadd.xlane.f32.xlu0 %v1328
    %v1330 = vpop.xlane.xlu0 %1329
    %v1331 = vsel %vm149, %v853, 0.0
    %1332 = vadd.xlane.f32.xlu0 %v1331
    %v1333 = vpop.xlane.xlu0 %1332
    %v1334 = vsel %vm149, %v855, 0.0
    %1335 = vadd.xlane.f32.xlu0 %v1334
    %v1336 = vpop.xlane.xlu0 %1335
    %v1337 = vsel %vm149, %v857, 0.0
    %1338 = vadd.xlane.f32.xlu0 %v1337
    %v1339 = vpop.xlane.xlu0 %1338
    %v1340 = vsel %vm149, %v859, 0.0
    %1341 = vadd.xlane.f32.xlu0 %v1340
    %v1342 = vpop.xlane.xlu0 %1341
    %v1343 = vsel %vm149, %v861, 0.0
    %1344 = vadd.xlane.f32.xlu0 %v1343
    %v1345 = vpop.xlane.xlu0 %1344
    %v1346 = vsel %vm149, %v863, 0.0
    %1347 = vadd.xlane.f32.xlu0 %v1346
    %v1348 = vpop.xlane.xlu0 %1347
    %v1349 = vsel %vm149, %v865, 0.0
    %1350 = vadd.xlane.f32.xlu0 %v1349
    %v1351 = vpop.xlane.xlu0 %1350
    %v1352 = vsel %vm149, %v867, 0.0
    %1353 = vadd.xlane.f32.xlu0 %v1352
    %v1354 = vpop.xlane.xlu0 %1353
    %v1355 = vsel %vm149, %v869, 0.0
    %1356 = vadd.xlane.f32.xlu0 %v1355
    %v1357 = vpop.xlane.xlu0 %1356
    %v1358 = vsel %vm149, %v871, 0.0
    %1359 = vadd.xlane.f32.xlu0 %v1358
    %v1360 = vpop.xlane.xlu0 %1359
    %v1361 = vsel %vm149, %v873, 0.0
    %1362 = vadd.xlane.f32.xlu0 %v1361
    %v1363 = vpop.xlane.xlu0 %1362
    %v1364 = vsel %vm149, %v875, 0.0
    %1365 = vadd.xlane.f32.xlu0 %v1364
    %v1366 = vpop.xlane.xlu0 %1365
    %v1367 = vsel %vm149, %v877, 0.0
    %1368 = vadd.xlane.f32.xlu0 %v1367
    %v1369 = vpop.xlane.xlu0 %1368
    %v1370 = vsel %vm149, %v879, 0.0
    %1371 = vadd.xlane.f32.xlu0 %v1370
    %v1372 = vpop.xlane.xlu0 %1371
    %v1373 = vsel %vm149, %v881, 0.0
    %1374 = vadd.xlane.f32.xlu0 %v1373
    %v1375 = vpop.xlane.xlu0 %1374
    %v1376 = vsel %vm149, %v883, 0.0
    %1377 = vadd.xlane.f32.xlu0 %v1376
    %v1378 = vpop.xlane.xlu0 %1377
    %v1379 = vsel %vm149, %v885, 0.0
    %1380 = vadd.xlane.f32.xlu0 %v1379
    %v1381 = vpop.xlane.xlu0 %1380
    %v1382 = vsel %vm149, %v887, 0.0
    %1383 = vadd.xlane.f32.xlu0 %v1382
    %v1384 = vpop.xlane.xlu0 %1383
    %v1385 = vsel %vm149, %v889, 0.0
    %1386 = vadd.xlane.f32.xlu0 %v1385
    %v1387 = vpop.xlane.xlu0 %1386
    %v1388 = vsel %vm149, %v891, 0.0
    %1389 = vadd.xlane.f32.xlu0 %v1388
    %v1390 = vpop.xlane.xlu0 %1389
    %v1391 = vsel %vm149, %v893, 0.0
    %1392 = vadd.xlane.f32.xlu0 %v1391
    %v1393 = vpop.xlane.xlu0 %1392
    %v1394 = vsel %vm149, %v895, 0.0
    %1395 = vadd.xlane.f32.xlu0 %v1394
    %v1396 = vpop.xlane.xlu0 %1395
    %v1397 = vsel %vm149, %v897, 0.0
    %1398 = vadd.xlane.f32.xlu0 %v1397
    %v1399 = vpop.xlane.xlu0 %1398
    %v1400 = vsel %vm149, %v899, 0.0
    %1401 = vadd.xlane.f32.xlu0 %v1400
    %v1402 = vpop.xlane.xlu0 %1401
    %v1403 = vsel %vm149, %v901, 0.0
    %1404 = vadd.xlane.f32.xlu0 %v1403
    %v1405 = vpop.xlane.xlu0 %1404
    %v1406 = vsel %vm149, %v903, 0.0
    %1407 = vadd.xlane.f32.xlu0 %v1406
    %v1408 = vpop.xlane.xlu0 %1407
    %v1409 = vsel %vm149, %v905, 0.0
    %1410 = vadd.xlane.f32.xlu0 %v1409
    %v1411 = vpop.xlane.xlu0 %1410
    %v1412 = vsel %vm149, %v907, 0.0
    %1413 = vadd.xlane.f32.xlu0 %v1412
    %v1414 = vpop.xlane.xlu0 %1413
    %v1415 = vsel %vm149, %v909, 0.0
    %1416 = vadd.xlane.f32.xlu0 %v1415
    %v1417 = vpop.xlane.xlu0 %1416
    %v1418 = vsel %vm149, %v911, 0.0
    %1419 = vadd.xlane.f32.xlu0 %v1418
    %v1420 = vpop.xlane.xlu0 %1419
    %v1421 = vsel %vm149, %v913, 0.0
    %1422 = vadd.xlane.f32.xlu0 %v1421
    %v1423 = vpop.xlane.xlu0 %1422
    %v1424 = vsel %vm149, %v915, 0.0
    %1425 = vadd.xlane.f32.xlu0 %v1424
    %v1426 = vpop.xlane.xlu0 %1425
    %v1427 = vsel %vm149, %v917, 0.0
    %1428 = vadd.xlane.f32.xlu0 %v1427
    %v1429 = vpop.xlane.xlu0 %1428
    %v1558 = vlaneseq
    %v1559 = vand.u32 %v1558, 127
    %v1560 = vlaneseq
    %v1561 = vshrl.u32 %v1560, 7
    %v1562 = vsub.s32 %v1559, %v1561
    %v1563 = vrot.slane %v152, %v1562
    %v1564 = vadd.s32 %v1559, 4294967288
    %v1565 = vlaneseq
    %v1566 = vshrl.u32 %v1565, 7
    %v1567 = vsub.s32 %v1564, %v1566
    %v1568 = vrot.slane %v155, %v1567
    %vm1569 = vcmask 130112
    %v1570 = vsel %vm1569, %v1568, %v1563
    %v1571 = vadd.s32 %v1559, 4294967280
    %v1572 = vlaneseq
    %v1573 = vshrl.u32 %v1572, 7
    %v1574 = vsub.s32 %v1571, %v1573
    %v1575 = vrot.slane %v158, %v1574
    %vm1576 = vcmask 195712
    %v1577 = vsel %vm1576, %v1575, %v1570
    %v1578 = vadd.s32 %v1559, 4294967272
    %v1579 = vlaneseq
    %v1580 = vshrl.u32 %v1579, 7
    %v1581 = vsub.s32 %v1578, %v1580
    %v1582 = vrot.slane %v161, %v1581
    %vm1583 = vcmask 261312
    %v1584 = vsel %vm1583, %v1582, %v1577
    %v1585 = vadd.s32 %v1559, 4294967264
    %v1586 = vlaneseq
    %v1587 = vshrl.u32 %v1586, 7
    %v1588 = vsub.s32 %v1585, %v1587
    %v1589 = vrot.slane %v164, %v1588
    %vm1590 = vcmask 326912
    %v1591 = vsel %vm1590, %v1589, %v1584
    %v1592 = vadd.s32 %v1559, 4294967256
    %v1593 = vlaneseq
    %v1594 = vshrl.u32 %v1593, 7
    %v1595 = vsub.s32 %v1592, %v1594
    %v1596 = vrot.slane %v167, %v1595
    %vm1597 = vcmask 392512
    %v1598 = vsel %vm1597, %v1596, %v1591
    %v1599 = vadd.s32 %v1559, 4294967248
    %v1600 = vlaneseq
    %v1601 = vshrl.u32 %v1600, 7
    %v1602 = vsub.s32 %v1599, %v1601
    %v1603 = vrot.slane %v170, %v1602
    %vm1604 = vcmask 458112
    %v1605 = vsel %vm1604, %v1603, %v1598
    %v1606 = vadd.s32 %v1559, 4294967240
    %v1607 = vlaneseq
    %v1608 = vshrl.u32 %v1607, 7
    %v1609 = vsub.s32 %v1606, %v1608
    %v1610 = vrot.slane %v173, %v1609
    %vm1611 = vcmask 523712
    %v1612 = vsel %vm1611, %v1610, %v1605
    %v1613 = vadd.s32 %v1559, 4294967232
    %v1614 = vlaneseq
    %v1615 = vshrl.u32 %v1614, 7
    %v1616 = vsub.s32 %v1613, %v1615
    %v1617 = vrot.slane %v176, %v1616
    %vm1618 = vcmask 589312
    %v1619 = vsel %vm1618, %v1617, %v1612
    %v1620 = vadd.s32 %v1559, 4294967224
    %v1621 = vlaneseq
    %v1622 = vshrl.u32 %v1621, 7
    %v1623 = vsub.s32 %v1620, %v1622
    %v1624 = vrot.slane %v179, %v1623
    %vm1625 = vcmask 654912
    %v1626 = vsel %vm1625, %v1624, %v1619
    %v1627 = vadd.s32 %v1559, 4294967216
    %v1628 = vlaneseq
    %v1629 = vshrl.u32 %v1628, 7
    %v1630 = vsub.s32 %v1627, %v1629
    %v1631 = vrot.slane %v182, %v1630
    %vm1632 = vcmask 720512
    %v1633 = vsel %vm1632, %v1631, %v1626
    %v1634 = vadd.s32 %v1559, 4294967208
    %v1635 = vlaneseq
    %v1636 = vshrl.u32 %v1635, 7
    %v1637 = vsub.s32 %v1634, %v1636
    %v1638 = vrot.slane %v185, %v1637
    %vm1639 = vcmask 786112
    %v1640 = vsel %vm1639, %v1638, %v1633
    %v1641 = vadd.s32 %v1559, 4294967200
    %v1642 = vlaneseq
    %v1643 = vshrl.u32 %v1642, 7
    %v1644 = vsub.s32 %v1641, %v1643
    %v1645 = vrot.slane %v188, %v1644
    %vm1646 = vcmask 851712
    %v1647 = vsel %vm1646, %v1645, %v1640
    %v1648 = vadd.s32 %v1559, 4294967192
    %v1649 = vlaneseq
    %v1650 = vshrl.u32 %v1649, 7
    %v1651 = vsub.s32 %v1648, %v1650
    %v1652 = vrot.slane %v191, %v1651
    %vm1653 = vcmask 917312
    %v1654 = vsel %vm1653, %v1652, %v1647
    %v1655 = vadd.s32 %v1559, 4294967184
    %v1656 = vlaneseq
    %v1657 = vshrl.u32 %v1656, 7
    %v1658 = vsub.s32 %v1655, %v1657
    %v1659 = vrot.slane %v194, %v1658
    %vm1660 = vcmask 982912
    %v1661 = vsel %vm1660, %v1659, %v1654
    %v1662 = vadd.s32 %v1559, 4294967176
    %v1663 = vlaneseq
    %v1664 = vshrl.u32 %v1663, 7
    %v1665 = vsub.s32 %v1662, %v1664
    %v1666 = vrot.slane %v197, %v1665
    %vm1667 = vcmask 1048512
    %v1668 = vsel %vm1667, %v1666, %v1661
    %v1669 = vlaneseq
    %v1670 = vshrl.u32 %v1669, 7
    %v1671 = vsub.s32 %v1559, %v1670
    %v1672 = vrot.slane %v200, %v1671
    %v1673 = vlaneseq
    %v1674 = vshrl.u32 %v1673, 7
    %v1675 = vsub.s32 %v1564, %v1674
    %v1676 = vrot.slane %v203, %v1675
    %v1677 = vsel %vm1569, %v1676, %v1672
    %v1678 = vlaneseq
    %v1679 = vshrl.u32 %v1678, 7
    %v1680 = vsub.s32 %v1571, %v1679
    %v1681 = vrot.slane %v206, %v1680
    %v1682 = vsel %vm1576, %v1681, %v1677
    %v1683 = vlaneseq
    %v1684 = vshrl.u32 %v1683, 7
    %v1685 = vsub.s32 %v1578, %v1684
    %v1686 = vrot.slane %v209, %v1685
    %v1687 = vsel %vm1583, %v1686, %v1682
    %v1688 = vlaneseq
    %v1689 = vshrl.u32 %v1688, 7
    %v1690 = vsub.s32 %v1585, %v1689
    %v1691 = vrot.slane %v212, %v1690
    %v1692 = vsel %vm1590, %v1691, %v1687
    %v1693 = vlaneseq
    %v1694 = vshrl.u32 %v1693, 7
    %v1695 = vsub.s32 %v1592, %v1694
    %v1696 = vrot.slane %v215, %v1695
    %v1697 = vsel %vm1597, %v1696, %v1692
    %v1698 = vlaneseq
    %v1699 = vshrl.u32 %v1698, 7
    %v1700 = vsub.s32 %v1599, %v1699
    %v1701 = vrot.slane %v218, %v1700
    %v1702 = vsel %vm1604, %v1701, %v1697
    %v1703 = vlaneseq
    %v1704 = vshrl.u32 %v1703, 7
    %v1705 = vsub.s32 %v1606, %v1704
    %v1706 = vrot.slane %v221, %v1705
    %v1707 = vsel %vm1611, %v1706, %v1702
    %v1708 = vlaneseq
    %v1709 = vshrl.u32 %v1708, 7
    %v1710 = vsub.s32 %v1613, %v1709
    %v1711 = vrot.slane %v224, %v1710
    %v1712 = vsel %vm1618, %v1711, %v1707
    %v1713 = vlaneseq
    %v1714 = vshrl.u32 %v1713, 7
    %v1715 = vsub.s32 %v1620, %v1714
    %v1716 = vrot.slane %v227, %v1715
    %v1717 = vsel %vm1625, %v1716, %v1712
    %v1718 = vlaneseq
    %v1719 = vshrl.u32 %v1718, 7
    %v1720 = vsub.s32 %v1627, %v1719
    %v1721 = vrot.slane %v230, %v1720
    %v1722 = vsel %vm1632, %v1721, %v1717
    %v1723 = vlaneseq
    %v1724 = vshrl.u32 %v1723, 7
    %v1725 = vsub.s32 %v1634, %v1724
    %v1726 = vrot.slane %v233, %v1725
    %v1727 = vsel %vm1639, %v1726, %v1722
    %v1728 = vlaneseq
    %v1729 = vshrl.u32 %v1728, 7
    %v1730 = vsub.s32 %v1641, %v1729
    %v1731 = vrot.slane %v236, %v1730
    %v1732 = vsel %vm1646, %v1731, %v1727
    %v1733 = vlaneseq
    %v1734 = vshrl.u32 %v1733, 7
    %v1735 = vsub.s32 %v1648, %v1734
    %v1736 = vrot.slane %v239, %v1735
    %v1737 = vsel %vm1653, %v1736, %v1732
    %v1738 = vlaneseq
    %v1739 = vshrl.u32 %v1738, 7
    %v1740 = vsub.s32 %v1655, %v1739
    %v1741 = vrot.slane %v242, %v1740
    %v1742 = vsel %vm1660, %v1741, %v1737
    %v1743 = vlaneseq
    %v1744 = vshrl.u32 %v1743, 7
    %v1745 = vsub.s32 %v1662, %v1744
    %v1746 = vrot.slane %v245, %v1745
    %v1747 = vsel %vm1667, %v1746, %v1742
    %v1748 = vlaneseq
    %v1749 = vshrl.u32 %v1748, 7
    %v1750 = vsub.s32 %v1559, %v1749
    %v1751 = vrot.slane %v248, %v1750
    %v1752 = vlaneseq
    %v1753 = vshrl.u32 %v1752, 7
    %v1754 = vsub.s32 %v1564, %v1753
    %v1755 = vrot.slane %v251, %v1754
    %v1756 = vsel %vm1569, %v1755, %v1751
    %v1757 = vlaneseq
    %v1758 = vshrl.u32 %v1757, 7
    %v1759 = vsub.s32 %v1571, %v1758
    %v1760 = vrot.slane %v254, %v1759
    %v1761 = vsel %vm1576, %v1760, %v1756
    %v1762 = vlaneseq
    %v1763 = vshrl.u32 %v1762, 7
    %v1764 = vsub.s32 %v1578, %v1763
    %v1765 = vrot.slane %v257, %v1764
    %v1766 = vsel %vm1583, %v1765, %v1761
    %v1767 = vlaneseq
    %v1768 = vshrl.u32 %v1767, 7
    %v1769 = vsub.s32 %v1585, %v1768
    %v1770 = vrot.slane %v260, %v1769
    %v1771 = vsel %vm1590, %v1770, %v1766
    %v1772 = vlaneseq
    %v1773 = vshrl.u32 %v1772, 7
    %v1774 = vsub.s32 %v1592, %v1773
    %v1775 = vrot.slane %v263, %v1774
    %v1776 = vsel %vm1597, %v1775, %v1771
    %v1777 = vlaneseq
    %v1778 = vshrl.u32 %v1777, 7
    %v1779 = vsub.s32 %v1599, %v1778
    %v1780 = vrot.slane %v266, %v1779
    %v1781 = vsel %vm1604, %v1780, %v1776
    %v1782 = vlaneseq
    %v1783 = vshrl.u32 %v1782, 7
    %v1784 = vsub.s32 %v1606, %v1783
    %v1785 = vrot.slane %v269, %v1784
    %v1786 = vsel %vm1611, %v1785, %v1781
    %v1787 = vlaneseq
    %v1788 = vshrl.u32 %v1787, 7
    %v1789 = vsub.s32 %v1613, %v1788
    %v1790 = vrot.slane %v272, %v1789
    %v1791 = vsel %vm1618, %v1790, %v1786
    %v1792 = vlaneseq
    %v1793 = vshrl.u32 %v1792, 7
    %v1794 = vsub.s32 %v1620, %v1793
    %v1795 = vrot.slane %v275, %v1794
    %v1796 = vsel %vm1625, %v1795, %v1791
    %v1797 = vlaneseq
    %v1798 = vshrl.u32 %v1797, 7
    %v1799 = vsub.s32 %v1627, %v1798
    %v1800 = vrot.slane %v278, %v1799
    %v1801 = vsel %vm1632, %v1800, %v1796
    %v1802 = vlaneseq
    %v1803 = vshrl.u32 %v1802, 7
    %v1804 = vsub.s32 %v1634, %v1803
    %v1805 = vrot.slane %v281, %v1804
    %v1806 = vsel %vm1639, %v1805, %v1801
    %v1807 = vlaneseq
    %v1808 = vshrl.u32 %v1807, 7
    %v1809 = vsub.s32 %v1641, %v1808
    %v1810 = vrot.slane %v284, %v1809
    %v1811 = vsel %vm1646, %v1810, %v1806
    %v1812 = vlaneseq
    %v1813 = vshrl.u32 %v1812, 7
    %v1814 = vsub.s32 %v1648, %v1813
    %v1815 = vrot.slane %v287, %v1814
    %v1816 = vsel %vm1653, %v1815, %v1811
    %v1817 = vlaneseq
    %v1818 = vshrl.u32 %v1817, 7
    %v1819 = vsub.s32 %v1655, %v1818
    %v1820 = vrot.slane %v290, %v1819
    %v1821 = vsel %vm1660, %v1820, %v1816
    %v1822 = vlaneseq
    %v1823 = vshrl.u32 %v1822, 7
    %v1824 = vsub.s32 %v1662, %v1823
    %v1825 = vrot.slane %v293, %v1824
    %v1826 = vsel %vm1667, %v1825, %v1821
    %v1827 = vlaneseq
    %v1828 = vshrl.u32 %v1827, 7
    %v1829 = vsub.s32 %v1559, %v1828
    %v1830 = vrot.slane %v296, %v1829
    %v1831 = vlaneseq
    %v1832 = vshrl.u32 %v1831, 7
    %v1833 = vsub.s32 %v1564, %v1832
    %v1834 = vrot.slane %v299, %v1833
    %v1835 = vsel %vm1569, %v1834, %v1830
    %v1836 = vlaneseq
    %v1837 = vshrl.u32 %v1836, 7
    %v1838 = vsub.s32 %v1571, %v1837
    %v1839 = vrot.slane %v302, %v1838
    %v1840 = vsel %vm1576, %v1839, %v1835
    %v1841 = vlaneseq
    %v1842 = vshrl.u32 %v1841, 7
    %v1843 = vsub.s32 %v1578, %v1842
    %v1844 = vrot.slane %v305, %v1843
    %v1845 = vsel %vm1583, %v1844, %v1840
    %v1846 = vlaneseq
    %v1847 = vshrl.u32 %v1846, 7
    %v1848 = vsub.s32 %v1585, %v1847
    %v1849 = vrot.slane %v308, %v1848
    %v1850 = vsel %vm1590, %v1849, %v1845
    %v1851 = vlaneseq
    %v1852 = vshrl.u32 %v1851, 7
    %v1853 = vsub.s32 %v1592, %v1852
    %v1854 = vrot.slane %v311, %v1853
    %v1855 = vsel %vm1597, %v1854, %v1850
    %v1856 = vlaneseq
    %v1857 = vshrl.u32 %v1856, 7
    %v1858 = vsub.s32 %v1599, %v1857
    %v1859 = vrot.slane %v314, %v1858
    %v1860 = vsel %vm1604, %v1859, %v1855
    %v1861 = vlaneseq
    %v1862 = vshrl.u32 %v1861, 7
    %v1863 = vsub.s32 %v1606, %v1862
    %v1864 = vrot.slane %v317, %v1863
    %v1865 = vsel %vm1611, %v1864, %v1860
    %v1866 = vlaneseq
    %v1867 = vshrl.u32 %v1866, 7
    %v1868 = vsub.s32 %v1613, %v1867
    %v1869 = vrot.slane %v320, %v1868
    %v1870 = vsel %vm1618, %v1869, %v1865
    %v1871 = vlaneseq
    %v1872 = vshrl.u32 %v1871, 7
    %v1873 = vsub.s32 %v1620, %v1872
    %v1874 = vrot.slane %v323, %v1873
    %v1875 = vsel %vm1625, %v1874, %v1870
    %v1876 = vlaneseq
    %v1877 = vshrl.u32 %v1876, 7
    %v1878 = vsub.s32 %v1627, %v1877
    %v1879 = vrot.slane %v326, %v1878
    %v1880 = vsel %vm1632, %v1879, %v1875
    %v1881 = vlaneseq
    %v1882 = vshrl.u32 %v1881, 7
    %v1883 = vsub.s32 %v1634, %v1882
    %v1884 = vrot.slane %v329, %v1883
    %v1885 = vsel %vm1639, %v1884, %v1880
    %v1886 = vlaneseq
    %v1887 = vshrl.u32 %v1886, 7
    %v1888 = vsub.s32 %v1641, %v1887
    %v1889 = vrot.slane %v332, %v1888
    %v1890 = vsel %vm1646, %v1889, %v1885
    %v1891 = vlaneseq
    %v1892 = vshrl.u32 %v1891, 7
    %v1893 = vsub.s32 %v1648, %v1892
    %v1894 = vrot.slane %v335, %v1893
    %v1895 = vsel %vm1653, %v1894, %v1890
    %v1896 = vlaneseq
    %v1897 = vshrl.u32 %v1896, 7
    %v1898 = vsub.s32 %v1655, %v1897
    %v1899 = vrot.slane %v338, %v1898
    %v1900 = vsel %vm1660, %v1899, %v1895
    %v1901 = vlaneseq
    %v1902 = vshrl.u32 %v1901, 7
    %v1903 = vsub.s32 %v1662, %v1902
    %v1904 = vrot.slane %v341, %v1903
    %v1905 = vsel %vm1667, %v1904, %v1900
    %v1906 = vlaneseq
    %v1907 = vshrl.u32 %v1906, 7
    %v1908 = vsub.s32 %v1559, %v1907
    %v1909 = vrot.slane %v344, %v1908
    %v1910 = vlaneseq
    %v1911 = vshrl.u32 %v1910, 7
    %v1912 = vsub.s32 %v1564, %v1911
    %v1913 = vrot.slane %v347, %v1912
    %v1914 = vsel %vm1569, %v1913, %v1909
    %v1915 = vlaneseq
    %v1916 = vshrl.u32 %v1915, 7
    %v1917 = vsub.s32 %v1571, %v1916
    %v1918 = vrot.slane %v350, %v1917
    %v1919 = vsel %vm1576, %v1918, %v1914
    %v1920 = vlaneseq
    %v1921 = vshrl.u32 %v1920, 7
    %v1922 = vsub.s32 %v1578, %v1921
    %v1923 = vrot.slane %v353, %v1922
    %v1924 = vsel %vm1583, %v1923, %v1919
    %v1925 = vlaneseq
    %v1926 = vshrl.u32 %v1925, 7
    %v1927 = vsub.s32 %v1585, %v1926
    %v1928 = vrot.slane %v356, %v1927
    %v1929 = vsel %vm1590, %v1928, %v1924
    %v1930 = vlaneseq
    %v1931 = vshrl.u32 %v1930, 7
    %v1932 = vsub.s32 %v1592, %v1931
    %v1933 = vrot.slane %v359, %v1932
    %v1934 = vsel %vm1597, %v1933, %v1929
    %v1935 = vlaneseq
    %v1936 = vshrl.u32 %v1935, 7
    %v1937 = vsub.s32 %v1599, %v1936
    %v1938 = vrot.slane %v362, %v1937
    %v1939 = vsel %vm1604, %v1938, %v1934
    %v1940 = vlaneseq
    %v1941 = vshrl.u32 %v1940, 7
    %v1942 = vsub.s32 %v1606, %v1941
    %v1943 = vrot.slane %v365, %v1942
    %v1944 = vsel %vm1611, %v1943, %v1939
    %v1945 = vlaneseq
    %v1946 = vshrl.u32 %v1945, 7
    %v1947 = vsub.s32 %v1613, %v1946
    %v1948 = vrot.slane %v368, %v1947
    %v1949 = vsel %vm1618, %v1948, %v1944
    %v1950 = vlaneseq
    %v1951 = vshrl.u32 %v1950, 7
    %v1952 = vsub.s32 %v1620, %v1951
    %v1953 = vrot.slane %v371, %v1952
    %v1954 = vsel %vm1625, %v1953, %v1949
    %v1955 = vlaneseq
    %v1956 = vshrl.u32 %v1955, 7
    %v1957 = vsub.s32 %v1627, %v1956
    %v1958 = vrot.slane %v374, %v1957
    %v1959 = vsel %vm1632, %v1958, %v1954
    %v1960 = vlaneseq
    %v1961 = vshrl.u32 %v1960, 7
    %v1962 = vsub.s32 %v1634, %v1961
    %v1963 = vrot.slane %v377, %v1962
    %v1964 = vsel %vm1639, %v1963, %v1959
    %v1965 = vlaneseq
    %v1966 = vshrl.u32 %v1965, 7
    %v1967 = vsub.s32 %v1641, %v1966
    %v1968 = vrot.slane %v380, %v1967
    %v1969 = vsel %vm1646, %v1968, %v1964
    %v1970 = vlaneseq
    %v1971 = vshrl.u32 %v1970, 7
    %v1972 = vsub.s32 %v1648, %v1971
    %v1973 = vrot.slane %v383, %v1972
    %v1974 = vsel %vm1653, %v1973, %v1969
    %v1975 = vlaneseq
    %v1976 = vshrl.u32 %v1975, 7
    %v1977 = vsub.s32 %v1655, %v1976
    %v1978 = vrot.slane %v386, %v1977
    %v1979 = vsel %vm1660, %v1978, %v1974
    %v1980 = vlaneseq
    %v1981 = vshrl.u32 %v1980, 7
    %v1982 = vsub.s32 %v1662, %v1981
    %v1983 = vrot.slane %v389, %v1982
    %v1984 = vsel %vm1667, %v1983, %v1979
    %v1985 = vlaneseq
    %v1986 = vshrl.u32 %v1985, 7
    %v1987 = vsub.s32 %v1559, %v1986
    %v1988 = vrot.slane %v392, %v1987
    %v1989 = vlaneseq
    %v1990 = vshrl.u32 %v1989, 7
    %v1991 = vsub.s32 %v1564, %v1990
    %v1992 = vrot.slane %v395, %v1991
    %v1993 = vsel %vm1569, %v1992, %v1988
    %v1994 = vlaneseq
    %v1995 = vshrl.u32 %v1994, 7
    %v1996 = vsub.s32 %v1571, %v1995
    %v1997 = vrot.slane %v398, %v1996
    %v1998 = vsel %vm1576, %v1997, %v1993
    %v1999 = vlaneseq
    %v2000 = vshrl.u32 %v1999, 7
    %v2001 = vsub.s32 %v1578, %v2000
    %v2002 = vrot.slane %v401, %v2001
    %v2003 = vsel %vm1583, %v2002, %v1998
    %v2004 = vlaneseq
    %v2005 = vshrl.u32 %v2004, 7
    %v2006 = vsub.s32 %v1585, %v2005
    %v2007 = vrot.slane %v404, %v2006
    %v2008 = vsel %vm1590, %v2007, %v2003
    %v2009 = vlaneseq
    %v2010 = vshrl.u32 %v2009, 7
    %v2011 = vsub.s32 %v1592, %v2010
    %v2012 = vrot.slane %v407, %v2011
    %v2013 = vsel %vm1597, %v2012, %v2008
    %v2014 = vlaneseq
    %v2015 = vshrl.u32 %v2014, 7
    %v2016 = vsub.s32 %v1599, %v2015
    %v2017 = vrot.slane %v410, %v2016
    %v2018 = vsel %vm1604, %v2017, %v2013
    %v2019 = vlaneseq
    %v2020 = vshrl.u32 %v2019, 7
    %v2021 = vsub.s32 %v1606, %v2020
    %v2022 = vrot.slane %v413, %v2021
    %v2023 = vsel %vm1611, %v2022, %v2018
    %v2024 = vlaneseq
    %v2025 = vshrl.u32 %v2024, 7
    %v2026 = vsub.s32 %v1613, %v2025
    %v2027 = vrot.slane %v416, %v2026
    %v2028 = vsel %vm1618, %v2027, %v2023
    %v2029 = vlaneseq
    %v2030 = vshrl.u32 %v2029, 7
    %v2031 = vsub.s32 %v1620, %v2030
    %v2032 = vrot.slane %v419, %v2031
    %v2033 = vsel %vm1625, %v2032, %v2028
    %v2034 = vlaneseq
    %v2035 = vshrl.u32 %v2034, 7
    %v2036 = vsub.s32 %v1627, %v2035
    %v2037 = vrot.slane %v422, %v2036
    %v2038 = vsel %vm1632, %v2037, %v2033
    %v2039 = vlaneseq
    %v2040 = vshrl.u32 %v2039, 7
    %v2041 = vsub.s32 %v1634, %v2040
    %v2042 = vrot.slane %v425, %v2041
    %v2043 = vsel %vm1639, %v2042, %v2038
    %v2044 = vlaneseq
    %v2045 = vshrl.u32 %v2044, 7
    %v2046 = vsub.s32 %v1641, %v2045
    %v2047 = vrot.slane %v428, %v2046
    %v2048 = vsel %vm1646, %v2047, %v2043
    %v2049 = vlaneseq
    %v2050 = vshrl.u32 %v2049, 7
    %v2051 = vsub.s32 %v1648, %v2050
    %v2052 = vrot.slane %v431, %v2051
    %v2053 = vsel %vm1653, %v2052, %v2048
    %v2054 = vlaneseq
    %v2055 = vshrl.u32 %v2054, 7
    %v2056 = vsub.s32 %v1655, %v2055
    %v2057 = vrot.slane %v434, %v2056
    %v2058 = vsel %vm1660, %v2057, %v2053
    %v2059 = vlaneseq
    %v2060 = vshrl.u32 %v2059, 7
    %v2061 = vsub.s32 %v1662, %v2060
    %v2062 = vrot.slane %v437, %v2061
    %v2063 = vsel %vm1667, %v2062, %v2058
    %v2064 = vlaneseq
    %v2065 = vshrl.u32 %v2064, 7
    %v2066 = vsub.s32 %v1559, %v2065
    %v2067 = vrot.slane %v440, %v2066
    %v2068 = vlaneseq
    %v2069 = vshrl.u32 %v2068, 7
    %v2070 = vsub.s32 %v1564, %v2069
    %v2071 = vrot.slane %v443, %v2070
    %v2072 = vsel %vm1569, %v2071, %v2067
    %v2073 = vlaneseq
    %v2074 = vshrl.u32 %v2073, 7
    %v2075 = vsub.s32 %v1571, %v2074
    %v2076 = vrot.slane %v446, %v2075
    %v2077 = vsel %vm1576, %v2076, %v2072
    %v2078 = vlaneseq
    %v2079 = vshrl.u32 %v2078, 7
    %v2080 = vsub.s32 %v1578, %v2079
    %v2081 = vrot.slane %v449, %v2080
    %v2082 = vsel %vm1583, %v2081, %v2077
    %v2083 = vlaneseq
    %v2084 = vshrl.u32 %v2083, 7
    %v2085 = vsub.s32 %v1585, %v2084
    %v2086 = vrot.slane %v452, %v2085
    %v2087 = vsel %vm1590, %v2086, %v2082
    %v2088 = vlaneseq
    %v2089 = vshrl.u32 %v2088, 7
    %v2090 = vsub.s32 %v1592, %v2089
    %v2091 = vrot.slane %v455, %v2090
    %v2092 = vsel %vm1597, %v2091, %v2087
    %v2093 = vlaneseq
    %v2094 = vshrl.u32 %v2093, 7
    %v2095 = vsub.s32 %v1599, %v2094
    %v2096 = vrot.slane %v458, %v2095
    %v2097 = vsel %vm1604, %v2096, %v2092
    %v2098 = vlaneseq
    %v2099 = vshrl.u32 %v2098, 7
    %v2100 = vsub.s32 %v1606, %v2099
    %v2101 = vrot.slane %v461, %v2100
    %v2102 = vsel %vm1611, %v2101, %v2097
    %v2103 = vlaneseq
    %v2104 = vshrl.u32 %v2103, 7
    %v2105 = vsub.s32 %v1613, %v2104
    %v2106 = vrot.slane %v464, %v2105
    %v2107 = vsel %vm1618, %v2106, %v2102
    %v2108 = vlaneseq
    %v2109 = vshrl.u32 %v2108, 7
    %v2110 = vsub.s32 %v1620, %v2109
    %v2111 = vrot.slane %v467, %v2110
    %v2112 = vsel %vm1625, %v2111, %v2107
    %v2113 = vlaneseq
    %v2114 = vshrl.u32 %v2113, 7
    %v2115 = vsub.s32 %v1627, %v2114
    %v2116 = vrot.slane %v470, %v2115
    %v2117 = vsel %vm1632, %v2116, %v2112
    %v2118 = vlaneseq
    %v2119 = vshrl.u32 %v2118, 7
    %v2120 = vsub.s32 %v1634, %v2119
    %v2121 = vrot.slane %v473, %v2120
    %v2122 = vsel %vm1639, %v2121, %v2117
    %v2123 = vlaneseq
    %v2124 = vshrl.u32 %v2123, 7
    %v2125 = vsub.s32 %v1641, %v2124
    %v2126 = vrot.slane %v476, %v2125
    %v2127 = vsel %vm1646, %v2126, %v2122
    %v2128 = vlaneseq
    %v2129 = vshrl.u32 %v2128, 7
    %v2130 = vsub.s32 %v1648, %v2129
    %v2131 = vrot.slane %v479, %v2130
    %v2132 = vsel %vm1653, %v2131, %v2127
    %v2133 = vlaneseq
    %v2134 = vshrl.u32 %v2133, 7
    %v2135 = vsub.s32 %v1655, %v2134
    %v2136 = vrot.slane %v482, %v2135
    %v2137 = vsel %vm1660, %v2136, %v2132
    %v2138 = vlaneseq
    %v2139 = vshrl.u32 %v2138, 7
    %v2140 = vsub.s32 %v1662, %v2139
    %v2141 = vrot.slane %v485, %v2140
    %v2142 = vsel %vm1667, %v2141, %v2137
    %v2143 = vlaneseq
    %v2144 = vshrl.u32 %v2143, 7
    %v2145 = vsub.s32 %v1559, %v2144
    %v2146 = vrot.slane %v488, %v2145
    %v2147 = vlaneseq
    %v2148 = vshrl.u32 %v2147, 7
    %v2149 = vsub.s32 %v1564, %v2148
    %v2150 = vrot.slane %v491, %v2149
    %v2151 = vsel %vm1569, %v2150, %v2146
    %v2152 = vlaneseq
    %v2153 = vshrl.u32 %v2152, 7
    %v2154 = vsub.s32 %v1571, %v2153
    %v2155 = vrot.slane %v494, %v2154
    %v2156 = vsel %vm1576, %v2155, %v2151
    %v2157 = vlaneseq
    %v2158 = vshrl.u32 %v2157, 7
    %v2159 = vsub.s32 %v1578, %v2158
    %v2160 = vrot.slane %v497, %v2159
    %v2161 = vsel %vm1583, %v2160, %v2156
    %v2162 = vlaneseq
    %v2163 = vshrl.u32 %v2162, 7
    %v2164 = vsub.s32 %v1585, %v2163
    %v2165 = vrot.slane %v500, %v2164
    %v2166 = vsel %vm1590, %v2165, %v2161
    %v2167 = vlaneseq
    %v2168 = vshrl.u32 %v2167, 7
    %v2169 = vsub.s32 %v1592, %v2168
    %v2170 = vrot.slane %v503, %v2169
    %v2171 = vsel %vm1597, %v2170, %v2166
    %v2172 = vlaneseq
    %v2173 = vshrl.u32 %v2172, 7
    %v2174 = vsub.s32 %v1599, %v2173
    %v2175 = vrot.slane %v506, %v2174
    %v2176 = vsel %vm1604, %v2175, %v2171
    %v2177 = vlaneseq
    %v2178 = vshrl.u32 %v2177, 7
    %v2179 = vsub.s32 %v1606, %v2178
    %v2180 = vrot.slane %v509, %v2179
    %v2181 = vsel %vm1611, %v2180, %v2176
    %v2182 = vlaneseq
    %v2183 = vshrl.u32 %v2182, 7
    %v2184 = vsub.s32 %v1613, %v2183
    %v2185 = vrot.slane %v512, %v2184
    %v2186 = vsel %vm1618, %v2185, %v2181
    %v2187 = vlaneseq
    %v2188 = vshrl.u32 %v2187, 7
    %v2189 = vsub.s32 %v1620, %v2188
    %v2190 = vrot.slane %v515, %v2189
    %v2191 = vsel %vm1625, %v2190, %v2186
    %v2192 = vlaneseq
    %v2193 = vshrl.u32 %v2192, 7
    %v2194 = vsub.s32 %v1627, %v2193
    %v2195 = vrot.slane %v518, %v2194
    %v2196 = vsel %vm1632, %v2195, %v2191
    %v2197 = vlaneseq
    %v2198 = vshrl.u32 %v2197, 7
    %v2199 = vsub.s32 %v1634, %v2198
    %v2200 = vrot.slane %v521, %v2199
    %v2201 = vsel %vm1639, %v2200, %v2196
    %v2202 = vlaneseq
    %v2203 = vshrl.u32 %v2202, 7
    %v2204 = vsub.s32 %v1641, %v2203
    %v2205 = vrot.slane %v524, %v2204
    %v2206 = vsel %vm1646, %v2205, %v2201
    %v2207 = vlaneseq
    %v2208 = vshrl.u32 %v2207, 7
    %v2209 = vsub.s32 %v1648, %v2208
    %v2210 = vrot.slane %v527, %v2209
    %v2211 = vsel %vm1653, %v2210, %v2206
    %v2212 = vlaneseq
    %v2213 = vshrl.u32 %v2212, 7
    %v2214 = vsub.s32 %v1655, %v2213
    %v2215 = vrot.slane %v530, %v2214
    %v2216 = vsel %vm1660, %v2215, %v2211
    %v2217 = vlaneseq
    %v2218 = vshrl.u32 %v2217, 7
    %v2219 = vsub.s32 %v1662, %v2218
    %v2220 = vrot.slane %v533, %v2219
    %v2221 = vsel %vm1667, %v2220, %v2216
    %vm2222 = vcmask 1041409
    %v2223 = vsel %vm2222, %v1984, %v1668
    %v2224 = vsel %vm2222, %v2063, %v1747
    %v2225 = vsel %vm2222, %v2142, %v1826
    %v2226 = vsel %vm2222, %v2221, %v1905
    %v2359 = vlaneseq
    %v2360 = vshrl.u32 %v2359, 7
    %v2361 = vsub.s32 %v1559, %v2360
    %v2362 = vrot.slane %v1048, %v2361
    %v2363 = vlaneseq
    %v2364 = vshrl.u32 %v2363, 7
    %v2365 = vsub.s32 %v1564, %v2364
    %v2366 = vrot.slane %v1051, %v2365
    %v2367 = vsel %vm1569, %v2366, %v2362
    %v2368 = vlaneseq
    %v2369 = vshrl.u32 %v2368, 7
    %v2370 = vsub.s32 %v1571, %v2369
    %v2371 = vrot.slane %v1054, %v2370
    %v2372 = vsel %vm1576, %v2371, %v2367
    %v2373 = vlaneseq
    %v2374 = vshrl.u32 %v2373, 7
    %v2375 = vsub.s32 %v1578, %v2374
    %v2376 = vrot.slane %v1057, %v2375
    %v2377 = vsel %vm1583, %v2376, %v2372
    %v2378 = vlaneseq
    %v2379 = vshrl.u32 %v2378, 7
    %v2380 = vsub.s32 %v1585, %v2379
    %v2381 = vrot.slane %v1060, %v2380
    %v2382 = vsel %vm1590, %v2381, %v2377
    %v2383 = vlaneseq
    %v2384 = vshrl.u32 %v2383, 7
    %v2385 = vsub.s32 %v1592, %v2384
    %v2386 = vrot.slane %v1063, %v2385
    %v2387 = vsel %vm1597, %v2386, %v2382
    %v2388 = vlaneseq
    %v2389 = vshrl.u32 %v2388, 7
    %v2390 = vsub.s32 %v1599, %v2389
    %v2391 = vrot.slane %v1066, %v2390
    %v2392 = vsel %vm1604, %v2391, %v2387
    %v2393 = vlaneseq
    %v2394 = vshrl.u32 %v2393, 7
    %v2395 = vsub.s32 %v1606, %v2394
    %v2396 = vrot.slane %v1069, %v2395
    %v2397 = vsel %vm1611, %v2396, %v2392
    %v2398 = vlaneseq
    %v2399 = vshrl.u32 %v2398, 7
    %v2400 = vsub.s32 %v1613, %v2399
    %v2401 = vrot.slane %v1072, %v2400
    %v2402 = vsel %vm1618, %v2401, %v2397
    %v2403 = vlaneseq
    %v2404 = vshrl.u32 %v2403, 7
    %v2405 = vsub.s32 %v1620, %v2404
    %v2406 = vrot.slane %v1075, %v2405
    %v2407 = vsel %vm1625, %v2406, %v2402
    %v2408 = vlaneseq
    %v2409 = vshrl.u32 %v2408, 7
    %v2410 = vsub.s32 %v1627, %v2409
    %v2411 = vrot.slane %v1078, %v2410
    %v2412 = vsel %vm1632, %v2411, %v2407
    %v2413 = vlaneseq
    %v2414 = vshrl.u32 %v2413, 7
    %v2415 = vsub.s32 %v1634, %v2414
    %v2416 = vrot.slane %v1081, %v2415
    %v2417 = vsel %vm1639, %v2416, %v2412
    %v2418 = vlaneseq
    %v2419 = vshrl.u32 %v2418, 7
    %v2420 = vsub.s32 %v1641, %v2419
    %v2421 = vrot.slane %v1084, %v2420
    %v2422 = vsel %vm1646, %v2421, %v2417
    %v2423 = vlaneseq
    %v2424 = vshrl.u32 %v2423, 7
    %v2425 = vsub.s32 %v1648, %v2424
    %v2426 = vrot.slane %v1087, %v2425
    %v2427 = vsel %vm1653, %v2426, %v2422
    %v2428 = vlaneseq
    %v2429 = vshrl.u32 %v2428, 7
    %v2430 = vsub.s32 %v1655, %v2429
    %v2431 = vrot.slane %v1090, %v2430
    %v2432 = vsel %vm1660, %v2431, %v2427
    %v2433 = vlaneseq
    %v2434 = vshrl.u32 %v2433, 7
    %v2435 = vsub.s32 %v1662, %v2434
    %v2436 = vrot.slane %v1093, %v2435
    %v2437 = vsel %vm1667, %v2436, %v2432
    %v2438 = vlaneseq
    %v2439 = vshrl.u32 %v2438, 7
    %v2440 = vsub.s32 %v1559, %v2439
    %v2441 = vrot.slane %v1096, %v2440
    %v2442 = vlaneseq
    %v2443 = vshrl.u32 %v2442, 7
    %v2444 = vsub.s32 %v1564, %v2443
    %v2445 = vrot.slane %v1099, %v2444
    %v2446 = vsel %vm1569, %v2445, %v2441
    %v2447 = vlaneseq
    %v2448 = vshrl.u32 %v2447, 7
    %v2449 = vsub.s32 %v1571, %v2448
    %v2450 = vrot.slane %v1102, %v2449
    %v2451 = vsel %vm1576, %v2450, %v2446
    %v2452 = vlaneseq
    %v2453 = vshrl.u32 %v2452, 7
    %v2454 = vsub.s32 %v1578, %v2453
    %v2455 = vrot.slane %v1105, %v2454
    %v2456 = vsel %vm1583, %v2455, %v2451
    %v2457 = vlaneseq
    %v2458 = vshrl.u32 %v2457, 7
    %v2459 = vsub.s32 %v1585, %v2458
    %v2460 = vrot.slane %v1108, %v2459
    %v2461 = vsel %vm1590, %v2460, %v2456
    %v2462 = vlaneseq
    %v2463 = vshrl.u32 %v2462, 7
    %v2464 = vsub.s32 %v1592, %v2463
    %v2465 = vrot.slane %v1111, %v2464
    %v2466 = vsel %vm1597, %v2465, %v2461
    %v2467 = vlaneseq
    %v2468 = vshrl.u32 %v2467, 7
    %v2469 = vsub.s32 %v1599, %v2468
    %v2470 = vrot.slane %v1114, %v2469
    %v2471 = vsel %vm1604, %v2470, %v2466
    %v2472 = vlaneseq
    %v2473 = vshrl.u32 %v2472, 7
    %v2474 = vsub.s32 %v1606, %v2473
    %v2475 = vrot.slane %v1117, %v2474
    %v2476 = vsel %vm1611, %v2475, %v2471
    %v2477 = vlaneseq
    %v2478 = vshrl.u32 %v2477, 7
    %v2479 = vsub.s32 %v1613, %v2478
    %v2480 = vrot.slane %v1120, %v2479
    %v2481 = vsel %vm1618, %v2480, %v2476
    %v2482 = vlaneseq
    %v2483 = vshrl.u32 %v2482, 7
    %v2484 = vsub.s32 %v1620, %v2483
    %v2485 = vrot.slane %v1123, %v2484
    %v2486 = vsel %vm1625, %v2485, %v2481
    %v2487 = vlaneseq
    %v2488 = vshrl.u32 %v2487, 7
    %v2489 = vsub.s32 %v1627, %v2488
    %v2490 = vrot.slane %v1126, %v2489
    %v2491 = vsel %vm1632, %v2490, %v2486
    %v2492 = vlaneseq
    %v2493 = vshrl.u32 %v2492, 7
    %v2494 = vsub.s32 %v1634, %v2493
    %v2495 = vrot.slane %v1129, %v2494
    %v2496 = vsel %vm1639, %v2495, %v2491
    %v2497 = vlaneseq
    %v2498 = vshrl.u32 %v2497, 7
    %v2499 = vsub.s32 %v1641, %v2498
    %v2500 = vrot.slane %v1132, %v2499
    %v2501 = vsel %vm1646, %v2500, %v2496
    %v2502 = vlaneseq
    %v2503 = vshrl.u32 %v2502, 7
    %v2504 = vsub.s32 %v1648, %v2503
    %v2505 = vrot.slane %v1135, %v2504
    %v2506 = vsel %vm1653, %v2505, %v2501
    %v2507 = vlaneseq
    %v2508 = vshrl.u32 %v2507, 7
    %v2509 = vsub.s32 %v1655, %v2508
    %v2510 = vrot.slane %v1138, %v2509
    %v2511 = vsel %vm1660, %v2510, %v2506
    %v2512 = vlaneseq
    %v2513 = vshrl.u32 %v2512, 7
    %v2514 = vsub.s32 %v1662, %v2513
    %v2515 = vrot.slane %v1141, %v2514
    %v2516 = vsel %vm1667, %v2515, %v2511
    %v2517 = vlaneseq
    %v2518 = vshrl.u32 %v2517, 7
    %v2519 = vsub.s32 %v1559, %v2518
    %v2520 = vrot.slane %v1144, %v2519
    %v2521 = vlaneseq
    %v2522 = vshrl.u32 %v2521, 7
    %v2523 = vsub.s32 %v1564, %v2522
    %v2524 = vrot.slane %v1147, %v2523
    %v2525 = vsel %vm1569, %v2524, %v2520
    %v2526 = vlaneseq
    %v2527 = vshrl.u32 %v2526, 7
    %v2528 = vsub.s32 %v1571, %v2527
    %v2529 = vrot.slane %v1150, %v2528
    %v2530 = vsel %vm1576, %v2529, %v2525
    %v2531 = vlaneseq
    %v2532 = vshrl.u32 %v2531, 7
    %v2533 = vsub.s32 %v1578, %v2532
    %v2534 = vrot.slane %v1153, %v2533
    %v2535 = vsel %vm1583, %v2534, %v2530
    %v2536 = vlaneseq
    %v2537 = vshrl.u32 %v2536, 7
    %v2538 = vsub.s32 %v1585, %v2537
    %v2539 = vrot.slane %v1156, %v2538
    %v2540 = vsel %vm1590, %v2539, %v2535
    %v2541 = vlaneseq
    %v2542 = vshrl.u32 %v2541, 7
    %v2543 = vsub.s32 %v1592, %v2542
    %v2544 = vrot.slane %v1159, %v2543
    %v2545 = vsel %vm1597, %v2544, %v2540
    %v2546 = vlaneseq
    %v2547 = vshrl.u32 %v2546, 7
    %v2548 = vsub.s32 %v1599, %v2547
    %v2549 = vrot.slane %v1162, %v2548
    %v2550 = vsel %vm1604, %v2549, %v2545
    %v2551 = vlaneseq
    %v2552 = vshrl.u32 %v2551, 7
    %v2553 = vsub.s32 %v1606, %v2552
    %v2554 = vrot.slane %v1165, %v2553
    %v2555 = vsel %vm1611, %v2554, %v2550
    %v2556 = vlaneseq
    %v2557 = vshrl.u32 %v2556, 7
    %v2558 = vsub.s32 %v1613, %v2557
    %v2559 = vrot.slane %v1168, %v2558
    %v2560 = vsel %vm1618, %v2559, %v2555
    %v2561 = vlaneseq
    %v2562 = vshrl.u32 %v2561, 7
    %v2563 = vsub.s32 %v1620, %v2562
    %v2564 = vrot.slane %v1171, %v2563
    %v2565 = vsel %vm1625, %v2564, %v2560
    %v2566 = vlaneseq
    %v2567 = vshrl.u32 %v2566, 7
    %v2568 = vsub.s32 %v1627, %v2567
    %v2569 = vrot.slane %v1174, %v2568
    %v2570 = vsel %vm1632, %v2569, %v2565
    %v2571 = vlaneseq
    %v2572 = vshrl.u32 %v2571, 7
    %v2573 = vsub.s32 %v1634, %v2572
    %v2574 = vrot.slane %v1177, %v2573
    %v2575 = vsel %vm1639, %v2574, %v2570
    %v2576 = vlaneseq
    %v2577 = vshrl.u32 %v2576, 7
    %v2578 = vsub.s32 %v1641, %v2577
    %v2579 = vrot.slane %v1180, %v2578
    %v2580 = vsel %vm1646, %v2579, %v2575
    %v2581 = vlaneseq
    %v2582 = vshrl.u32 %v2581, 7
    %v2583 = vsub.s32 %v1648, %v2582
    %v2584 = vrot.slane %v1183, %v2583
    %v2585 = vsel %vm1653, %v2584, %v2580
    %v2586 = vlaneseq
    %v2587 = vshrl.u32 %v2586, 7
    %v2588 = vsub.s32 %v1655, %v2587
    %v2589 = vrot.slane %v1186, %v2588
    %v2590 = vsel %vm1660, %v2589, %v2585
    %v2591 = vlaneseq
    %v2592 = vshrl.u32 %v2591, 7
    %v2593 = vsub.s32 %v1662, %v2592
    %v2594 = vrot.slane %v1189, %v2593
    %v2595 = vsel %vm1667, %v2594, %v2590
    %v2596 = vlaneseq
    %v2597 = vshrl.u32 %v2596, 7
    %v2598 = vsub.s32 %v1559, %v2597
    %v2599 = vrot.slane %v1192, %v2598
    %v2600 = vlaneseq
    %v2601 = vshrl.u32 %v2600, 7
    %v2602 = vsub.s32 %v1564, %v2601
    %v2603 = vrot.slane %v1195, %v2602
    %v2604 = vsel %vm1569, %v2603, %v2599
    %v2605 = vlaneseq
    %v2606 = vshrl.u32 %v2605, 7
    %v2607 = vsub.s32 %v1571, %v2606
    %v2608 = vrot.slane %v1198, %v2607
    %v2609 = vsel %vm1576, %v2608, %v2604
    %v2610 = vlaneseq
    %v2611 = vshrl.u32 %v2610, 7
    %v2612 = vsub.s32 %v1578, %v2611
    %v2613 = vrot.slane %v1201, %v2612
    %v2614 = vsel %vm1583, %v2613, %v2609
    %v2615 = vlaneseq
    %v2616 = vshrl.u32 %v2615, 7
    %v2617 = vsub.s32 %v1585, %v2616
    %v2618 = vrot.slane %v1204, %v2617
    %v2619 = vsel %vm1590, %v2618, %v2614
    %v2620 = vlaneseq
    %v2621 = vshrl.u32 %v2620, 7
    %v2622 = vsub.s32 %v1592, %v2621
    %v2623 = vrot.slane %v1207, %v2622
    %v2624 = vsel %vm1597, %v2623, %v2619
    %v2625 = vlaneseq
    %v2626 = vshrl.u32 %v2625, 7
    %v2627 = vsub.s32 %v1599, %v2626
    %v2628 = vrot.slane %v1210, %v2627
    %v2629 = vsel %vm1604, %v2628, %v2624
    %v2630 = vlaneseq
    %v2631 = vshrl.u32 %v2630, 7
    %v2632 = vsub.s32 %v1606, %v2631
    %v2633 = vrot.slane %v1213, %v2632
    %v2634 = vsel %vm1611, %v2633, %v2629
    %v2635 = vlaneseq
    %v2636 = vshrl.u32 %v2635, 7
    %v2637 = vsub.s32 %v1613, %v2636
    %v2638 = vrot.slane %v1216, %v2637
    %v2639 = vsel %vm1618, %v2638, %v2634
    %v2640 = vlaneseq
    %v2641 = vshrl.u32 %v2640, 7
    %v2642 = vsub.s32 %v1620, %v2641
    %v2643 = vrot.slane %v1219, %v2642
    %v2644 = vsel %vm1625, %v2643, %v2639
    %v2645 = vlaneseq
    %v2646 = vshrl.u32 %v2645, 7
    %v2647 = vsub.s32 %v1627, %v2646
    %v2648 = vrot.slane %v1222, %v2647
    %v2649 = vsel %vm1632, %v2648, %v2644
    %v2650 = vlaneseq
    %v2651 = vshrl.u32 %v2650, 7
    %v2652 = vsub.s32 %v1634, %v2651
    %v2653 = vrot.slane %v1225, %v2652
    %v2654 = vsel %vm1639, %v2653, %v2649
    %v2655 = vlaneseq
    %v2656 = vshrl.u32 %v2655, 7
    %v2657 = vsub.s32 %v1641, %v2656
    %v2658 = vrot.slane %v1228, %v2657
    %v2659 = vsel %vm1646, %v2658, %v2654
    %v2660 = vlaneseq
    %v2661 = vshrl.u32 %v2660, 7
    %v2662 = vsub.s32 %v1648, %v2661
    %v2663 = vrot.slane %v1231, %v2662
    %v2664 = vsel %vm1653, %v2663, %v2659
    %v2665 = vlaneseq
    %v2666 = vshrl.u32 %v2665, 7
    %v2667 = vsub.s32 %v1655, %v2666
    %v2668 = vrot.slane %v1234, %v2667
    %v2669 = vsel %vm1660, %v2668, %v2664
    %v2670 = vlaneseq
    %v2671 = vshrl.u32 %v2670, 7
    %v2672 = vsub.s32 %v1662, %v2671
    %v2673 = vrot.slane %v1237, %v2672
    %v2674 = vsel %vm1667, %v2673, %v2669
    %v2675 = vlaneseq
    %v2676 = vshrl.u32 %v2675, 7
    %v2677 = vsub.s32 %v1559, %v2676
    %v2678 = vrot.slane %v1240, %v2677
    %v2679 = vlaneseq
    %v2680 = vshrl.u32 %v2679, 7
    %v2681 = vsub.s32 %v1564, %v2680
    %v2682 = vrot.slane %v1243, %v2681
    %v2683 = vsel %vm1569, %v2682, %v2678
    %v2684 = vlaneseq
    %v2685 = vshrl.u32 %v2684, 7
    %v2686 = vsub.s32 %v1571, %v2685
    %v2687 = vrot.slane %v1246, %v2686
    %v2688 = vsel %vm1576, %v2687, %v2683
    %v2689 = vlaneseq
    %v2690 = vshrl.u32 %v2689, 7
    %v2691 = vsub.s32 %v1578, %v2690
    %v2692 = vrot.slane %v1249, %v2691
    %v2693 = vsel %vm1583, %v2692, %v2688
    %v2694 = vlaneseq
    %v2695 = vshrl.u32 %v2694, 7
    %v2696 = vsub.s32 %v1585, %v2695
    %v2697 = vrot.slane %v1252, %v2696
    %v2698 = vsel %vm1590, %v2697, %v2693
    %v2699 = vlaneseq
    %v2700 = vshrl.u32 %v2699, 7
    %v2701 = vsub.s32 %v1592, %v2700
    %v2702 = vrot.slane %v1255, %v2701
    %v2703 = vsel %vm1597, %v2702, %v2698
    %v2704 = vlaneseq
    %v2705 = vshrl.u32 %v2704, 7
    %v2706 = vsub.s32 %v1599, %v2705
    %v2707 = vrot.slane %v1258, %v2706
    %v2708 = vsel %vm1604, %v2707, %v2703
    %v2709 = vlaneseq
    %v2710 = vshrl.u32 %v2709, 7
    %v2711 = vsub.s32 %v1606, %v2710
    %v2712 = vrot.slane %v1261, %v2711
    %v2713 = vsel %vm1611, %v2712, %v2708
    %v2714 = vlaneseq
    %v2715 = vshrl.u32 %v2714, 7
    %v2716 = vsub.s32 %v1613, %v2715
    %v2717 = vrot.slane %v1264, %v2716
    %v2718 = vsel %vm1618, %v2717, %v2713
    %v2719 = vlaneseq
    %v2720 = vshrl.u32 %v2719, 7
    %v2721 = vsub.s32 %v1620, %v2720
    %v2722 = vrot.slane %v1267, %v2721
    %v2723 = vsel %vm1625, %v2722, %v2718
    %v2724 = vlaneseq
    %v2725 = vshrl.u32 %v2724, 7
    %v2726 = vsub.s32 %v1627, %v2725
    %v2727 = vrot.slane %v1270, %v2726
    %v2728 = vsel %vm1632, %v2727, %v2723
    %v2729 = vlaneseq
    %v2730 = vshrl.u32 %v2729, 7
    %v2731 = vsub.s32 %v1634, %v2730
    %v2732 = vrot.slane %v1273, %v2731
    %v2733 = vsel %vm1639, %v2732, %v2728
    %v2734 = vlaneseq
    %v2735 = vshrl.u32 %v2734, 7
    %v2736 = vsub.s32 %v1641, %v2735
    %v2737 = vrot.slane %v1276, %v2736
    %v2738 = vsel %vm1646, %v2737, %v2733
    %v2739 = vlaneseq
    %v2740 = vshrl.u32 %v2739, 7
    %v2741 = vsub.s32 %v1648, %v2740
    %v2742 = vrot.slane %v1279, %v2741
    %v2743 = vsel %vm1653, %v2742, %v2738
    %v2744 = vlaneseq
    %v2745 = vshrl.u32 %v2744, 7
    %v2746 = vsub.s32 %v1655, %v2745
    %v2747 = vrot.slane %v1282, %v2746
    %v2748 = vsel %vm1660, %v2747, %v2743
    %v2749 = vlaneseq
    %v2750 = vshrl.u32 %v2749, 7
    %v2751 = vsub.s32 %v1662, %v2750
    %v2752 = vrot.slane %v1285, %v2751
    %v2753 = vsel %vm1667, %v2752, %v2748
    %v2754 = vlaneseq
    %v2755 = vshrl.u32 %v2754, 7
    %v2756 = vsub.s32 %v1559, %v2755
    %v2757 = vrot.slane %v1288, %v2756
    %v2758 = vlaneseq
    %v2759 = vshrl.u32 %v2758, 7
    %v2760 = vsub.s32 %v1564, %v2759
    %v2761 = vrot.slane %v1291, %v2760
    %v2762 = vsel %vm1569, %v2761, %v2757
    %v2763 = vlaneseq
    %v2764 = vshrl.u32 %v2763, 7
    %v2765 = vsub.s32 %v1571, %v2764
    %v2766 = vrot.slane %v1294, %v2765
    %v2767 = vsel %vm1576, %v2766, %v2762
    %v2768 = vlaneseq
    %v2769 = vshrl.u32 %v2768, 7
    %v2770 = vsub.s32 %v1578, %v2769
    %v2771 = vrot.slane %v1297, %v2770
    %v2772 = vsel %vm1583, %v2771, %v2767
    %v2773 = vlaneseq
    %v2774 = vshrl.u32 %v2773, 7
    %v2775 = vsub.s32 %v1585, %v2774
    %v2776 = vrot.slane %v1300, %v2775
    %v2777 = vsel %vm1590, %v2776, %v2772
    %v2778 = vlaneseq
    %v2779 = vshrl.u32 %v2778, 7
    %v2780 = vsub.s32 %v1592, %v2779
    %v2781 = vrot.slane %v1303, %v2780
    %v2782 = vsel %vm1597, %v2781, %v2777
    %v2783 = vlaneseq
    %v2784 = vshrl.u32 %v2783, 7
    %v2785 = vsub.s32 %v1599, %v2784
    %v2786 = vrot.slane %v1306, %v2785
    %v2787 = vsel %vm1604, %v2786, %v2782
    %v2788 = vlaneseq
    %v2789 = vshrl.u32 %v2788, 7
    %v2790 = vsub.s32 %v1606, %v2789
    %v2791 = vrot.slane %v1309, %v2790
    %v2792 = vsel %vm1611, %v2791, %v2787
    %v2793 = vlaneseq
    %v2794 = vshrl.u32 %v2793, 7
    %v2795 = vsub.s32 %v1613, %v2794
    %v2796 = vrot.slane %v1312, %v2795
    %v2797 = vsel %vm1618, %v2796, %v2792
    %v2798 = vlaneseq
    %v2799 = vshrl.u32 %v2798, 7
    %v2800 = vsub.s32 %v1620, %v2799
    %v2801 = vrot.slane %v1315, %v2800
    %v2802 = vsel %vm1625, %v2801, %v2797
    %v2803 = vlaneseq
    %v2804 = vshrl.u32 %v2803, 7
    %v2805 = vsub.s32 %v1627, %v2804
    %v2806 = vrot.slane %v1318, %v2805
    %v2807 = vsel %vm1632, %v2806, %v2802
    %v2808 = vlaneseq
    %v2809 = vshrl.u32 %v2808, 7
    %v2810 = vsub.s32 %v1634, %v2809
    %v2811 = vrot.slane %v1321, %v2810
    %v2812 = vsel %vm1639, %v2811, %v2807
    %v2813 = vlaneseq
    %v2814 = vshrl.u32 %v2813, 7
    %v2815 = vsub.s32 %v1641, %v2814
    %v2816 = vrot.slane %v1324, %v2815
    %v2817 = vsel %vm1646, %v2816, %v2812
    %v2818 = vlaneseq
    %v2819 = vshrl.u32 %v2818, 7
    %v2820 = vsub.s32 %v1648, %v2819
    %v2821 = vrot.slane %v1327, %v2820
    %v2822 = vsel %vm1653, %v2821, %v2817
    %v2823 = vlaneseq
    %v2824 = vshrl.u32 %v2823, 7
    %v2825 = vsub.s32 %v1655, %v2824
    %v2826 = vrot.slane %v1330, %v2825
    %v2827 = vsel %vm1660, %v2826, %v2822
    %v2828 = vlaneseq
    %v2829 = vshrl.u32 %v2828, 7
    %v2830 = vsub.s32 %v1662, %v2829
    %v2831 = vrot.slane %v1333, %v2830
    %v2832 = vsel %vm1667, %v2831, %v2827
    %v2833 = vlaneseq
    %v2834 = vshrl.u32 %v2833, 7
    %v2835 = vsub.s32 %v1559, %v2834
    %v2836 = vrot.slane %v1336, %v2835
    %v2837 = vlaneseq
    %v2838 = vshrl.u32 %v2837, 7
    %v2839 = vsub.s32 %v1564, %v2838
    %v2840 = vrot.slane %v1339, %v2839
    %v2841 = vsel %vm1569, %v2840, %v2836
    %v2842 = vlaneseq
    %v2843 = vshrl.u32 %v2842, 7
    %v2844 = vsub.s32 %v1571, %v2843
    %v2845 = vrot.slane %v1342, %v2844
    %v2846 = vsel %vm1576, %v2845, %v2841
    %v2847 = vlaneseq
    %v2848 = vshrl.u32 %v2847, 7
    %v2849 = vsub.s32 %v1578, %v2848
    %v2850 = vrot.slane %v1345, %v2849
    %v2851 = vsel %vm1583, %v2850, %v2846
    %v2852 = vlaneseq
    %v2853 = vshrl.u32 %v2852, 7
    %v2854 = vsub.s32 %v1585, %v2853
    %v2855 = vrot.slane %v1348, %v2854
    %v2856 = vsel %vm1590, %v2855, %v2851
    %v2857 = vlaneseq
    %v2858 = vshrl.u32 %v2857, 7
    %v2859 = vsub.s32 %v1592, %v2858
    %v2860 = vrot.slane %v1351, %v2859
    %v2861 = vsel %vm1597, %v2860, %v2856
    %v2862 = vlaneseq
    %v2863 = vshrl.u32 %v2862, 7
    %v2864 = vsub.s32 %v1599, %v2863
    %v2865 = vrot.slane %v1354, %v2864
    %v2866 = vsel %vm1604, %v2865, %v2861
    %v2867 = vlaneseq
    %v2868 = vshrl.u32 %v2867, 7
    %v2869 = vsub.s32 %v1606, %v2868
    %v2870 = vrot.slane %v1357, %v2869
    %v2871 = vsel %vm1611, %v2870, %v2866
    %v2872 = vlaneseq
    %v2873 = vshrl.u32 %v2872, 7
    %v2874 = vsub.s32 %v1613, %v2873
    %v2875 = vrot.slane %v1360, %v2874
    %v2876 = vsel %vm1618, %v2875, %v2871
    %v2877 = vlaneseq
    %v2878 = vshrl.u32 %v2877, 7
    %v2879 = vsub.s32 %v1620, %v2878
    %v2880 = vrot.slane %v1363, %v2879
    %v2881 = vsel %vm1625, %v2880, %v2876
    %v2882 = vlaneseq
    %v2883 = vshrl.u32 %v2882, 7
    %v2884 = vsub.s32 %v1627, %v2883
    %v2885 = vrot.slane %v1366, %v2884
    %v2886 = vsel %vm1632, %v2885, %v2881
    %v2887 = vlaneseq
    %v2888 = vshrl.u32 %v2887, 7
    %v2889 = vsub.s32 %v1634, %v2888
    %v2890 = vrot.slane %v1369, %v2889
    %v2891 = vsel %vm1639, %v2890, %v2886
    %v2892 = vlaneseq
    %v2893 = vshrl.u32 %v2892, 7
    %v2894 = vsub.s32 %v1641, %v2893
    %v2895 = vrot.slane %v1372, %v2894
    %v2896 = vsel %vm1646, %v2895, %v2891
    %v2897 = vlaneseq
    %v2898 = vshrl.u32 %v2897, 7
    %v2899 = vsub.s32 %v1648, %v2898
    %v2900 = vrot.slane %v1375, %v2899
    %v2901 = vsel %vm1653, %v2900, %v2896
    %v2902 = vlaneseq
    %v2903 = vshrl.u32 %v2902, 7
    %v2904 = vsub.s32 %v1655, %v2903
    %v2905 = vrot.slane %v1378, %v2904
    %v2906 = vsel %vm1660, %v2905, %v2901
    %v2907 = vlaneseq
    %v2908 = vshrl.u32 %v2907, 7
    %v2909 = vsub.s32 %v1662, %v2908
    %v2910 = vrot.slane %v1381, %v2909
    %v2911 = vsel %vm1667, %v2910, %v2906
    %v2912 = vlaneseq
    %v2913 = vshrl.u32 %v2912, 7
    %v2914 = vsub.s32 %v1559, %v2913
    %v2915 = vrot.slane %v1384, %v2914
    %v2916 = vlaneseq
    %v2917 = vshrl.u32 %v2916, 7
    %v2918 = vsub.s32 %v1564, %v2917
    %v2919 = vrot.slane %v1387, %v2918
    %v2920 = vsel %vm1569, %v2919, %v2915
    %v2921 = vlaneseq
    %v2922 = vshrl.u32 %v2921, 7
    %v2923 = vsub.s32 %v1571, %v2922
    %v2924 = vrot.slane %v1390, %v2923
    %v2925 = vsel %vm1576, %v2924, %v2920
    %v2926 = vlaneseq
    %v2927 = vshrl.u32 %v2926, 7
    %v2928 = vsub.s32 %v1578, %v2927
    %v2929 = vrot.slane %v1393, %v2928
    %v2930 = vsel %vm1583, %v2929, %v2925
    %v2931 = vlaneseq
    %v2932 = vshrl.u32 %v2931, 7
    %v2933 = vsub.s32 %v1585, %v2932
    %v2934 = vrot.slane %v1396, %v2933
    %v2935 = vsel %vm1590, %v2934, %v2930
    %v2936 = vlaneseq
    %v2937 = vshrl.u32 %v2936, 7
    %v2938 = vsub.s32 %v1592, %v2937
    %v2939 = vrot.slane %v1399, %v2938
    %v2940 = vsel %vm1597, %v2939, %v2935
    %v2941 = vlaneseq
    %v2942 = vshrl.u32 %v2941, 7
    %v2943 = vsub.s32 %v1599, %v2942
    %v2944 = vrot.slane %v1402, %v2943
    %v2945 = vsel %vm1604, %v2944, %v2940
    %v2946 = vlaneseq
    %v2947 = vshrl.u32 %v2946, 7
    %v2948 = vsub.s32 %v1606, %v2947
    %v2949 = vrot.slane %v1405, %v2948
    %v2950 = vsel %vm1611, %v2949, %v2945
    %v2951 = vlaneseq
    %v2952 = vshrl.u32 %v2951, 7
    %v2953 = vsub.s32 %v1613, %v2952
    %v2954 = vrot.slane %v1408, %v2953
    %v2955 = vsel %vm1618, %v2954, %v2950
    %v2956 = vlaneseq
    %v2957 = vshrl.u32 %v2956, 7
    %v2958 = vsub.s32 %v1620, %v2957
    %v2959 = vrot.slane %v1411, %v2958
    %v2960 = vsel %vm1625, %v2959, %v2955
    %v2961 = vlaneseq
    %v2962 = vshrl.u32 %v2961, 7
    %v2963 = vsub.s32 %v1627, %v2962
    %v2964 = vrot.slane %v1414, %v2963
    %v2965 = vsel %vm1632, %v2964, %v2960
    %v2966 = vlaneseq
    %v2967 = vshrl.u32 %v2966, 7
    %v2968 = vsub.s32 %v1634, %v2967
    %v2969 = vrot.slane %v1417, %v2968
    %v2970 = vsel %vm1639, %v2969, %v2965
    %v2971 = vlaneseq
    %v2972 = vshrl.u32 %v2971, 7
    %v2973 = vsub.s32 %v1641, %v2972
    %v2974 = vrot.slane %v1420, %v2973
    %v2975 = vsel %vm1646, %v2974, %v2970
    %v2976 = vlaneseq
    %v2977 = vshrl.u32 %v2976, 7
    %v2978 = vsub.s32 %v1648, %v2977
    %v2979 = vrot.slane %v1423, %v2978
    %v2980 = vsel %vm1653, %v2979, %v2975
    %v2981 = vlaneseq
    %v2982 = vshrl.u32 %v2981, 7
    %v2983 = vsub.s32 %v1655, %v2982
    %v2984 = vrot.slane %v1426, %v2983
    %v2985 = vsel %vm1660, %v2984, %v2980
    %v2986 = vlaneseq
    %v2987 = vshrl.u32 %v2986, 7
    %v2988 = vsub.s32 %v1662, %v2987
    %v2989 = vrot.slane %v1429, %v2988
    %v2990 = vsel %vm1667, %v2989, %v2985
    %v2991 = vsel %vm2222, %v2753, %v2437
    %v2992 = vsel %vm2222, %v2832, %v2516
    %v2993 = vsel %vm2222, %v2911, %v2595
    %v2994 = vsel %vm2222, %v2990, %v2674
    %v2999 = vld [vmem:[%s1] sm:$0xff]
    %v3000 = vld [vmem:[%s1 + $0x8] sm:$0xff]
    %v3001 = vld [vmem:[%s1 + $0x10] sm:$0xff]
    %v3002 = vld [vmem:[%s1 + $0x18] sm:$0xff]
    %v3003 = vld [vmem:[%s1 + $0x20] sm:$0xff]
    %v3004 = vld [vmem:[%s1 + $0x28] sm:$0xff]
    %v3005 = vld [vmem:[%s1 + $0x30] sm:$0xff]
    %v3006 = vld [vmem:[%s1 + $0x38] sm:$0xff]
    %v3007 = vld [vmem:[%s1 + $0x40] sm:$0xff]
    %v3008 = vld [vmem:[%s1 + $0x48] sm:$0xff]
    %v3009 = vld [vmem:[%s1 + $0x50] sm:$0xff]
    %v3010 = vld [vmem:[%s1 + $0x58] sm:$0xff]
    %v3011 = vld [vmem:[%s1 + $0x60] sm:$0xff]
    %v3012 = vld [vmem:[%s1 + $0x68] sm:$0xff]
    %v3013 = vld [vmem:[%s1 + $0x70] sm:$0xff]
    %v3014 = vld [vmem:[%s1 + $0x78] sm:$0xff]
    %v3015 = vld [vmem:[%s1 + $0x80] sm:$0xff]
    %v3016 = vld [vmem:[%s1 + $0x88] sm:$0xff]
    %v3017 = vld [vmem:[%s1 + $0x90] sm:$0xff]
    %v3018 = vld [vmem:[%s1 + $0x98] sm:$0xff]
    %v3019 = vld [vmem:[%s1 + $0xa0] sm:$0xff]
    %v3020 = vld [vmem:[%s1 + $0xa8] sm:$0xff]
    %v3021 = vld [vmem:[%s1 + $0xb0] sm:$0xff]
    %v3022 = vld [vmem:[%s1 + $0xb8] sm:$0xff]
    %v3023 = vld [vmem:[%s1 + $0xc0] sm:$0xff]
    %v3024 = vld [vmem:[%s1 + $0xc8] sm:$0xff]
    %v3025 = vld [vmem:[%s1 + $0xd0] sm:$0xff]
    %v3026 = vld [vmem:[%s1 + $0xd8] sm:$0xff]
    %v3027 = vld [vmem:[%s1 + $0xe0] sm:$0xff]
    %v3028 = vld [vmem:[%s1 + $0xe8] sm:$0xff]
    %v3029 = vld [vmem:[%s1 + $0xf0] sm:$0xff]
    %v3030 = vld [vmem:[%s1 + $0xf8] sm:$0xff]
    %v3031 = vld [vmem:[%s1 + $0x100] sm:$0xff]
    %v3032 = vld [vmem:[%s1 + $0x108] sm:$0xff]
    %v3033 = vld [vmem:[%s1 + $0x110] sm:$0xff]
    %v3034 = vld [vmem:[%s1 + $0x118] sm:$0xff]
    %v3035 = vld [vmem:[%s1 + $0x120] sm:$0xff]
    %v3036 = vld [vmem:[%s1 + $0x128] sm:$0xff]
    %v3037 = vld [vmem:[%s1 + $0x130] sm:$0xff]
    %v3038 = vld [vmem:[%s1 + $0x138] sm:$0xff]
    %v3039 = vld [vmem:[%s1 + $0x140] sm:$0xff]
    %v3040 = vld [vmem:[%s1 + $0x148] sm:$0xff]
    %v3041 = vld [vmem:[%s1 + $0x150] sm:$0xff]
    %v3042 = vld [vmem:[%s1 + $0x158] sm:$0xff]
    %v3043 = vld [vmem:[%s1 + $0x160] sm:$0xff]
    %v3044 = vld [vmem:[%s1 + $0x168] sm:$0xff]
    %v3045 = vld [vmem:[%s1 + $0x170] sm:$0xff]
    %v3046 = vld [vmem:[%s1 + $0x178] sm:$0xff]
    %v3047 = vld [vmem:[%s1 + $0x180] sm:$0xff]
    %v3048 = vld [vmem:[%s1 + $0x188] sm:$0xff]
    %v3049 = vld [vmem:[%s1 + $0x190] sm:$0xff]
    %v3050 = vld [vmem:[%s1 + $0x198] sm:$0xff]
    %v3051 = vld [vmem:[%s1 + $0x1a0] sm:$0xff]
    %v3052 = vld [vmem:[%s1 + $0x1a8] sm:$0xff]
    %v3053 = vld [vmem:[%s1 + $0x1b0] sm:$0xff]
    %v3054 = vld [vmem:[%s1 + $0x1b8] sm:$0xff]
    %v3055 = vld [vmem:[%s1 + $0x1c0] sm:$0xff]
    %v3056 = vld [vmem:[%s1 + $0x1c8] sm:$0xff]
    %v3057 = vld [vmem:[%s1 + $0x1d0] sm:$0xff]
    %v3058 = vld [vmem:[%s1 + $0x1d8] sm:$0xff]
    %v3059 = vld [vmem:[%s1 + $0x1e0] sm:$0xff]
    %v3060 = vld [vmem:[%s1 + $0x1e8] sm:$0xff]
    %v3061 = vld [vmem:[%s1 + $0x1f0] sm:$0xff]
    %v3062 = vld [vmem:[%s1 + $0x1f8] sm:$0xff]
    %v3063 = vld [vmem:[%s1 + $0x200] sm:$0xff]
    %v3064 = vld [vmem:[%s1 + $0x208] sm:$0xff]
    %v3065 = vld [vmem:[%s1 + $0x210] sm:$0xff]
    %v3066 = vld [vmem:[%s1 + $0x218] sm:$0xff]
    %v3067 = vld [vmem:[%s1 + $0x220] sm:$0xff]
    %v3068 = vld [vmem:[%s1 + $0x228] sm:$0xff]
    %v3069 = vld [vmem:[%s1 + $0x230] sm:$0xff]
    %v3070 = vld [vmem:[%s1 + $0x238] sm:$0xff]
    %v3071 = vld [vmem:[%s1 + $0x240] sm:$0xff]
    %v3072 = vld [vmem:[%s1 + $0x248] sm:$0xff]
    %v3073 = vld [vmem:[%s1 + $0x250] sm:$0xff]
    %v3074 = vld [vmem:[%s1 + $0x258] sm:$0xff]
    %v3075 = vld [vmem:[%s1 + $0x260] sm:$0xff]
    %v3076 = vld [vmem:[%s1 + $0x268] sm:$0xff]
    %v3077 = vld [vmem:[%s1 + $0x270] sm:$0xff]
    %v3078 = vld [vmem:[%s1 + $0x278] sm:$0xff]
    %v3079 = vld [vmem:[%s1 + $0x280] sm:$0xff]
    %v3080 = vld [vmem:[%s1 + $0x288] sm:$0xff]
    %v3081 = vld [vmem:[%s1 + $0x290] sm:$0xff]
    %v3082 = vld [vmem:[%s1 + $0x298] sm:$0xff]
    %v3083 = vld [vmem:[%s1 + $0x2a0] sm:$0xff]
    %v3084 = vld [vmem:[%s1 + $0x2a8] sm:$0xff]
    %v3085 = vld [vmem:[%s1 + $0x2b0] sm:$0xff]
    %v3086 = vld [vmem:[%s1 + $0x2b8] sm:$0xff]
    %v3087 = vld [vmem:[%s1 + $0x2c0] sm:$0xff]
    %v3088 = vld [vmem:[%s1 + $0x2c8] sm:$0xff]
    %v3089 = vld [vmem:[%s1 + $0x2d0] sm:$0xff]
    %v3090 = vld [vmem:[%s1 + $0x2d8] sm:$0xff]
    %v3091 = vld [vmem:[%s1 + $0x2e0] sm:$0xff]
    %v3092 = vld [vmem:[%s1 + $0x2e8] sm:$0xff]
    %v3093 = vld [vmem:[%s1 + $0x2f0] sm:$0xff]
    %v3094 = vld [vmem:[%s1 + $0x2f8] sm:$0xff]
    %v3095 = vld [vmem:[%s1 + $0x300] sm:$0xff]
    %v3096 = vld [vmem:[%s1 + $0x308] sm:$0xff]
    %v3097 = vld [vmem:[%s1 + $0x310] sm:$0xff]
    %v3098 = vld [vmem:[%s1 + $0x318] sm:$0xff]
    %v3099 = vld [vmem:[%s1 + $0x320] sm:$0xff]
    %v3100 = vld [vmem:[%s1 + $0x328] sm:$0xff]
    %v3101 = vld [vmem:[%s1 + $0x330] sm:$0xff]
    %v3102 = vld [vmem:[%s1 + $0x338] sm:$0xff]
    %v3103 = vld [vmem:[%s1 + $0x340] sm:$0xff]
    %v3104 = vld [vmem:[%s1 + $0x348] sm:$0xff]
    %v3105 = vld [vmem:[%s1 + $0x350] sm:$0xff]
    %v3106 = vld [vmem:[%s1 + $0x358] sm:$0xff]
    %v3107 = vld [vmem:[%s1 + $0x360] sm:$0xff]
    %v3108 = vld [vmem:[%s1 + $0x368] sm:$0xff]
    %v3109 = vld [vmem:[%s1 + $0x370] sm:$0xff]
    %v3110 = vld [vmem:[%s1 + $0x378] sm:$0xff]
    %v3111 = vld [vmem:[%s1 + $0x380] sm:$0xff]
    %v3112 = vld [vmem:[%s1 + $0x388] sm:$0xff]
    %v3113 = vld [vmem:[%s1 + $0x390] sm:$0xff]
    %v3114 = vld [vmem:[%s1 + $0x398] sm:$0xff]
    %v3115 = vld [vmem:[%s1 + $0x3a0] sm:$0xff]
    %v3116 = vld [vmem:[%s1 + $0x3a8] sm:$0xff]
    %v3117 = vld [vmem:[%s1 + $0x3b0] sm:$0xff]
    %v3118 = vld [vmem:[%s1 + $0x3b8] sm:$0xff]
    %v3119 = vld [vmem:[%s1 + $0x3c0] sm:$0xff]
    %v3120 = vld [vmem:[%s1 + $0x3c8] sm:$0xff]
    %v3121 = vld [vmem:[%s1 + $0x3d0] sm:$0xff]
    %v3122 = vld [vmem:[%s1 + $0x3d8] sm:$0xff]
    %v3123 = vld [vmem:[%s1 + $0x3e0] sm:$0xff]
    %v3124 = vld [vmem:[%s1 + $0x3e8] sm:$0xff]
    %v3125 = vld [vmem:[%s1 + $0x3f0] sm:$0xff]
    %v3126 = vld [vmem:[%s1 + $0x3f8] sm:$0xff]
    %v3127 = vsel %vm149, %v2999, 0.0
    %3128 = vadd.xlane.f32.xlu0 %v3127
    %v3129 = vpop.xlane.xlu0 %3128
    %v3130 = vsel %vm149, %v3000, 0.0
    %3131 = vadd.xlane.f32.xlu0 %v3130
    %v3132 = vpop.xlane.xlu0 %3131
    %v3133 = vsel %vm149, %v3001, 0.0
    %3134 = vadd.xlane.f32.xlu0 %v3133
    %v3135 = vpop.xlane.xlu0 %3134
    %v3136 = vsel %vm149, %v3002, 0.0
    %3137 = vadd.xlane.f32.xlu0 %v3136
    %v3138 = vpop.xlane.xlu0 %3137
    %v3139 = vsel %vm149, %v3003, 0.0
    %3140 = vadd.xlane.f32.xlu0 %v3139
    %v3141 = vpop.xlane.xlu0 %3140
    %v3142 = vsel %vm149, %v3004, 0.0
    %3143 = vadd.xlane.f32.xlu0 %v3142
    %v3144 = vpop.xlane.xlu0 %3143
    %v3145 = vsel %vm149, %v3005, 0.0
    %3146 = vadd.xlane.f32.xlu0 %v3145
    %v3147 = vpop.xlane.xlu0 %3146
    %v3148 = vsel %vm149, %v3006, 0.0
    %3149 = vadd.xlane.f32.xlu0 %v3148
    %v3150 = vpop.xlane.xlu0 %3149
    %v3151 = vsel %vm149, %v3007, 0.0
    %3152 = vadd.xlane.f32.xlu0 %v3151
    %v3153 = vpop.xlane.xlu0 %3152
    %v3154 = vsel %vm149, %v3008, 0.0
    %3155 = vadd.xlane.f32.xlu0 %v3154
    %v3156 = vpop.xlane.xlu0 %3155
    %v3157 = vsel %vm149, %v3009, 0.0
    %3158 = vadd.xlane.f32.xlu0 %v3157
    %v3159 = vpop.xlane.xlu0 %3158
    %v3160 = vsel %vm149, %v3010, 0.0
    %3161 = vadd.xlane.f32.xlu0 %v3160
    %v3162 = vpop.xlane.xlu0 %3161
    %v3163 = vsel %vm149, %v3011, 0.0
    %3164 = vadd.xlane.f32.xlu0 %v3163
    %v3165 = vpop.xlane.xlu0 %3164
    %v3166 = vsel %vm149, %v3012, 0.0
    %3167 = vadd.xlane.f32.xlu0 %v3166
    %v3168 = vpop.xlane.xlu0 %3167
    %v3169 = vsel %vm149, %v3013, 0.0
    %3170 = vadd.xlane.f32.xlu0 %v3169
    %v3171 = vpop.xlane.xlu0 %3170
    %v3172 = vsel %vm149, %v3014, 0.0
    %3173 = vadd.xlane.f32.xlu0 %v3172
    %v3174 = vpop.xlane.xlu0 %3173
    %v3175 = vsel %vm149, %v3015, 0.0
    %3176 = vadd.xlane.f32.xlu0 %v3175
    %v3177 = vpop.xlane.xlu0 %3176
    %v3178 = vsel %vm149, %v3016, 0.0
    %3179 = vadd.xlane.f32.xlu0 %v3178
    %v3180 = vpop.xlane.xlu0 %3179
    %v3181 = vsel %vm149, %v3017, 0.0
    %3182 = vadd.xlane.f32.xlu0 %v3181
    %v3183 = vpop.xlane.xlu0 %3182
    %v3184 = vsel %vm149, %v3018, 0.0
    %3185 = vadd.xlane.f32.xlu0 %v3184
    %v3186 = vpop.xlane.xlu0 %3185
    %v3187 = vsel %vm149, %v3019, 0.0
    %3188 = vadd.xlane.f32.xlu0 %v3187
    %v3189 = vpop.xlane.xlu0 %3188
    %v3190 = vsel %vm149, %v3020, 0.0
    %3191 = vadd.xlane.f32.xlu0 %v3190
    %v3192 = vpop.xlane.xlu0 %3191
    %v3193 = vsel %vm149, %v3021, 0.0
    %3194 = vadd.xlane.f32.xlu0 %v3193
    %v3195 = vpop.xlane.xlu0 %3194
    %v3196 = vsel %vm149, %v3022, 0.0
    %3197 = vadd.xlane.f32.xlu0 %v3196
    %v3198 = vpop.xlane.xlu0 %3197
    %v3199 = vsel %vm149, %v3023, 0.0
    %3200 = vadd.xlane.f32.xlu0 %v3199
    %v3201 = vpop.xlane.xlu0 %3200
    %v3202 = vsel %vm149, %v3024, 0.0
    %3203 = vadd.xlane.f32.xlu0 %v3202
    %v3204 = vpop.xlane.xlu0 %3203
    %v3205 = vsel %vm149, %v3025, 0.0
    %3206 = vadd.xlane.f32.xlu0 %v3205
    %v3207 = vpop.xlane.xlu0 %3206
    %v3208 = vsel %vm149, %v3026, 0.0
    %3209 = vadd.xlane.f32.xlu0 %v3208
    %v3210 = vpop.xlane.xlu0 %3209
    %v3211 = vsel %vm149, %v3027, 0.0
    %3212 = vadd.xlane.f32.xlu0 %v3211
    %v3213 = vpop.xlane.xlu0 %3212
    %v3214 = vsel %vm149, %v3028, 0.0
    %3215 = vadd.xlane.f32.xlu0 %v3214
    %v3216 = vpop.xlane.xlu0 %3215
    %v3217 = vsel %vm149, %v3029, 0.0
    %3218 = vadd.xlane.f32.xlu0 %v3217
    %v3219 = vpop.xlane.xlu0 %3218
    %v3220 = vsel %vm149, %v3030, 0.0
    %3221 = vadd.xlane.f32.xlu0 %v3220
    %v3222 = vpop.xlane.xlu0 %3221
    %v3223 = vsel %vm149, %v3031, 0.0
    %3224 = vadd.xlane.f32.xlu0 %v3223
    %v3225 = vpop.xlane.xlu0 %3224
    %v3226 = vsel %vm149, %v3032, 0.0
    %3227 = vadd.xlane.f32.xlu0 %v3226
    %v3228 = vpop.xlane.xlu0 %3227
    %v3229 = vsel %vm149, %v3033, 0.0
    %3230 = vadd.xlane.f32.xlu0 %v3229
    %v3231 = vpop.xlane.xlu0 %3230
    %v3232 = vsel %vm149, %v3034, 0.0
    %3233 = vadd.xlane.f32.xlu0 %v3232
    %v3234 = vpop.xlane.xlu0 %3233
    %v3235 = vsel %vm149, %v3035, 0.0
    %3236 = vadd.xlane.f32.xlu0 %v3235
    %v3237 = vpop.xlane.xlu0 %3236
    %v3238 = vsel %vm149, %v3036, 0.0
    %3239 = vadd.xlane.f32.xlu0 %v3238
    %v3240 = vpop.xlane.xlu0 %3239
    %v3241 = vsel %vm149, %v3037, 0.0
    %3242 = vadd.xlane.f32.xlu0 %v3241
    %v3243 = vpop.xlane.xlu0 %3242
    %v3244 = vsel %vm149, %v3038, 0.0
    %3245 = vadd.xlane.f32.xlu0 %v3244
    %v3246 = vpop.xlane.xlu0 %3245
    %v3247 = vsel %vm149, %v3039, 0.0
    %3248 = vadd.xlane.f32.xlu0 %v3247
    %v3249 = vpop.xlane.xlu0 %3248
    %v3250 = vsel %vm149, %v3040, 0.0
    %3251 = vadd.xlane.f32.xlu0 %v3250
    %v3252 = vpop.xlane.xlu0 %3251
    %v3253 = vsel %vm149, %v3041, 0.0
    %3254 = vadd.xlane.f32.xlu0 %v3253
    %v3255 = vpop.xlane.xlu0 %3254
    %v3256 = vsel %vm149, %v3042, 0.0
    %3257 = vadd.xlane.f32.xlu0 %v3256
    %v3258 = vpop.xlane.xlu0 %3257
    %v3259 = vsel %vm149, %v3043, 0.0
    %3260 = vadd.xlane.f32.xlu0 %v3259
    %v3261 = vpop.xlane.xlu0 %3260
    %v3262 = vsel %vm149, %v3044, 0.0
    %3263 = vadd.xlane.f32.xlu0 %v3262
    %v3264 = vpop.xlane.xlu0 %3263
    %v3265 = vsel %vm149, %v3045, 0.0
    %3266 = vadd.xlane.f32.xlu0 %v3265
    %v3267 = vpop.xlane.xlu0 %3266
    %v3268 = vsel %vm149, %v3046, 0.0
    %3269 = vadd.xlane.f32.xlu0 %v3268
    %v3270 = vpop.xlane.xlu0 %3269
    %v3271 = vsel %vm149, %v3047, 0.0
    %3272 = vadd.xlane.f32.xlu0 %v3271
    %v3273 = vpop.xlane.xlu0 %3272
    %v3274 = vsel %vm149, %v3048, 0.0
    %3275 = vadd.xlane.f32.xlu0 %v3274
    %v3276 = vpop.xlane.xlu0 %3275
    %v3277 = vsel %vm149, %v3049, 0.0
    %3278 = vadd.xlane.f32.xlu0 %v3277
    %v3279 = vpop.xlane.xlu0 %3278
    %v3280 = vsel %vm149, %v3050, 0.0
    %3281 = vadd.xlane.f32.xlu0 %v3280
    %v3282 = vpop.xlane.xlu0 %3281
    %v3283 = vsel %vm149, %v3051, 0.0
    %3284 = vadd.xlane.f32.xlu0 %v3283
    %v3285 = vpop.xlane.xlu0 %3284
    %v3286 = vsel %vm149, %v3052, 0.0
    %3287 = vadd.xlane.f32.xlu0 %v3286
    %v3288 = vpop.xlane.xlu0 %3287
    %v3289 = vsel %vm149, %v3053, 0.0
    %3290 = vadd.xlane.f32.xlu0 %v3289
    %v3291 = vpop.xlane.xlu0 %3290
    %v3292 = vsel %vm149, %v3054, 0.0
    %3293 = vadd.xlane.f32.xlu0 %v3292
    %v3294 = vpop.xlane.xlu0 %3293
    %v3295 = vsel %vm149, %v3055, 0.0
    %3296 = vadd.xlane.f32.xlu0 %v3295
    %v3297 = vpop.xlane.xlu0 %3296
    %v3298 = vsel %vm149, %v3056, 0.0
    %3299 = vadd.xlane.f32.xlu0 %v3298
    %v3300 = vpop.xlane.xlu0 %3299
    %v3301 = vsel %vm149, %v3057, 0.0
    %3302 = vadd.xlane.f32.xlu0 %v3301
    %v3303 = vpop.xlane.xlu0 %3302
    %v3304 = vsel %vm149, %v3058, 0.0
    %3305 = vadd.xlane.f32.xlu0 %v3304
    %v3306 = vpop.xlane.xlu0 %3305
    %v3307 = vsel %vm149, %v3059, 0.0
    %3308 = vadd.xlane.f32.xlu0 %v3307
    %v3309 = vpop.xlane.xlu0 %3308
    %v3310 = vsel %vm149, %v3060, 0.0
    %3311 = vadd.xlane.f32.xlu0 %v3310
    %v3312 = vpop.xlane.xlu0 %3311
    %v3313 = vsel %vm149, %v3061, 0.0
    %3314 = vadd.xlane.f32.xlu0 %v3313
    %v3315 = vpop.xlane.xlu0 %3314
    %v3316 = vsel %vm149, %v3062, 0.0
    %3317 = vadd.xlane.f32.xlu0 %v3316
    %v3318 = vpop.xlane.xlu0 %3317
    %v3319 = vsel %vm149, %v3063, 0.0
    %3320 = vadd.xlane.f32.xlu0 %v3319
    %v3321 = vpop.xlane.xlu0 %3320
    %v3322 = vsel %vm149, %v3064, 0.0
    %3323 = vadd.xlane.f32.xlu0 %v3322
    %v3324 = vpop.xlane.xlu0 %3323
    %v3325 = vsel %vm149, %v3065, 0.0
    %3326 = vadd.xlane.f32.xlu0 %v3325
    %v3327 = vpop.xlane.xlu0 %3326
    %v3328 = vsel %vm149, %v3066, 0.0
    %3329 = vadd.xlane.f32.xlu0 %v3328
    %v3330 = vpop.xlane.xlu0 %3329
    %v3331 = vsel %vm149, %v3067, 0.0
    %3332 = vadd.xlane.f32.xlu0 %v3331
    %v3333 = vpop.xlane.xlu0 %3332
    %v3334 = vsel %vm149, %v3068, 0.0
    %3335 = vadd.xlane.f32.xlu0 %v3334
    %v3336 = vpop.xlane.xlu0 %3335
    %v3337 = vsel %vm149, %v3069, 0.0
    %3338 = vadd.xlane.f32.xlu0 %v3337
    %v3339 = vpop.xlane.xlu0 %3338
    %v3340 = vsel %vm149, %v3070, 0.0
    %3341 = vadd.xlane.f32.xlu0 %v3340
    %v3342 = vpop.xlane.xlu0 %3341
    %v3343 = vsel %vm149, %v3071, 0.0
    %3344 = vadd.xlane.f32.xlu0 %v3343
    %v3345 = vpop.xlane.xlu0 %3344
    %v3346 = vsel %vm149, %v3072, 0.0
    %3347 = vadd.xlane.f32.xlu0 %v3346
    %v3348 = vpop.xlane.xlu0 %3347
    %v3349 = vsel %vm149, %v3073, 0.0
    %3350 = vadd.xlane.f32.xlu0 %v3349
    %v3351 = vpop.xlane.xlu0 %3350
    %v3352 = vsel %vm149, %v3074, 0.0
    %3353 = vadd.xlane.f32.xlu0 %v3352
    %v3354 = vpop.xlane.xlu0 %3353
    %v3355 = vsel %vm149, %v3075, 0.0
    %3356 = vadd.xlane.f32.xlu0 %v3355
    %v3357 = vpop.xlane.xlu0 %3356
    %v3358 = vsel %vm149, %v3076, 0.0
    %3359 = vadd.xlane.f32.xlu0 %v3358
    %v3360 = vpop.xlane.xlu0 %3359
    %v3361 = vsel %vm149, %v3077, 0.0
    %3362 = vadd.xlane.f32.xlu0 %v3361
    %v3363 = vpop.xlane.xlu0 %3362
    %v3364 = vsel %vm149, %v3078, 0.0
    %3365 = vadd.xlane.f32.xlu0 %v3364
    %v3366 = vpop.xlane.xlu0 %3365
    %v3367 = vsel %vm149, %v3079, 0.0
    %3368 = vadd.xlane.f32.xlu0 %v3367
    %v3369 = vpop.xlane.xlu0 %3368
    %v3370 = vsel %vm149, %v3080, 0.0
    %3371 = vadd.xlane.f32.xlu0 %v3370
    %v3372 = vpop.xlane.xlu0 %3371
    %v3373 = vsel %vm149, %v3081, 0.0
    %3374 = vadd.xlane.f32.xlu0 %v3373
    %v3375 = vpop.xlane.xlu0 %3374
    %v3376 = vsel %vm149, %v3082, 0.0
    %3377 = vadd.xlane.f32.xlu0 %v3376
    %v3378 = vpop.xlane.xlu0 %3377
    %v3379 = vsel %vm149, %v3083, 0.0
    %3380 = vadd.xlane.f32.xlu0 %v3379
    %v3381 = vpop.xlane.xlu0 %3380
    %v3382 = vsel %vm149, %v3084, 0.0
    %3383 = vadd.xlane.f32.xlu0 %v3382
    %v3384 = vpop.xlane.xlu0 %3383
    %v3385 = vsel %vm149, %v3085, 0.0
    %3386 = vadd.xlane.f32.xlu0 %v3385
    %v3387 = vpop.xlane.xlu0 %3386
    %v3388 = vsel %vm149, %v3086, 0.0
    %3389 = vadd.xlane.f32.xlu0 %v3388
    %v3390 = vpop.xlane.xlu0 %3389
    %v3391 = vsel %vm149, %v3087, 0.0
    %3392 = vadd.xlane.f32.xlu0 %v3391
    %v3393 = vpop.xlane.xlu0 %3392
    %v3394 = vsel %vm149, %v3088, 0.0
    %3395 = vadd.xlane.f32.xlu0 %v3394
    %v3396 = vpop.xlane.xlu0 %3395
    %v3397 = vsel %vm149, %v3089, 0.0
    %3398 = vadd.xlane.f32.xlu0 %v3397
    %v3399 = vpop.xlane.xlu0 %3398
    %v3400 = vsel %vm149, %v3090, 0.0
    %3401 = vadd.xlane.f32.xlu0 %v3400
    %v3402 = vpop.xlane.xlu0 %3401
    %v3403 = vsel %vm149, %v3091, 0.0
    %3404 = vadd.xlane.f32.xlu0 %v3403
    %v3405 = vpop.xlane.xlu0 %3404
    %v3406 = vsel %vm149, %v3092, 0.0
    %3407 = vadd.xlane.f32.xlu0 %v3406
    %v3408 = vpop.xlane.xlu0 %3407
    %v3409 = vsel %vm149, %v3093, 0.0
    %3410 = vadd.xlane.f32.xlu0 %v3409
    %v3411 = vpop.xlane.xlu0 %3410
    %v3412 = vsel %vm149, %v3094, 0.0
    %3413 = vadd.xlane.f32.xlu0 %v3412
    %v3414 = vpop.xlane.xlu0 %3413
    %v3415 = vsel %vm149, %v3095, 0.0
    %3416 = vadd.xlane.f32.xlu0 %v3415
    %v3417 = vpop.xlane.xlu0 %3416
    %v3418 = vsel %vm149, %v3096, 0.0
    %3419 = vadd.xlane.f32.xlu0 %v3418
    %v3420 = vpop.xlane.xlu0 %3419
    %v3421 = vsel %vm149, %v3097, 0.0
    %3422 = vadd.xlane.f32.xlu0 %v3421
    %v3423 = vpop.xlane.xlu0 %3422
    %v3424 = vsel %vm149, %v3098, 0.0
    %3425 = vadd.xlane.f32.xlu0 %v3424
    %v3426 = vpop.xlane.xlu0 %3425
    %v3427 = vsel %vm149, %v3099, 0.0
    %3428 = vadd.xlane.f32.xlu0 %v3427
    %v3429 = vpop.xlane.xlu0 %3428
    %v3430 = vsel %vm149, %v3100, 0.0
    %3431 = vadd.xlane.f32.xlu0 %v3430
    %v3432 = vpop.xlane.xlu0 %3431
    %v3433 = vsel %vm149, %v3101, 0.0
    %3434 = vadd.xlane.f32.xlu0 %v3433
    %v3435 = vpop.xlane.xlu0 %3434
    %v3436 = vsel %vm149, %v3102, 0.0
    %3437 = vadd.xlane.f32.xlu0 %v3436
    %v3438 = vpop.xlane.xlu0 %3437
    %v3439 = vsel %vm149, %v3103, 0.0
    %3440 = vadd.xlane.f32.xlu0 %v3439
    %v3441 = vpop.xlane.xlu0 %3440
    %v3442 = vsel %vm149, %v3104, 0.0
    %3443 = vadd.xlane.f32.xlu0 %v3442
    %v3444 = vpop.xlane.xlu0 %3443
    %v3445 = vsel %vm149, %v3105, 0.0
    %3446 = vadd.xlane.f32.xlu0 %v3445
    %v3447 = vpop.xlane.xlu0 %3446
    %v3448 = vsel %vm149, %v3106, 0.0
    %3449 = vadd.xlane.f32.xlu0 %v3448
    %v3450 = vpop.xlane.xlu0 %3449
    %v3451 = vsel %vm149, %v3107, 0.0
    %3452 = vadd.xlane.f32.xlu0 %v3451
    %v3453 = vpop.xlane.xlu0 %3452
    %v3454 = vsel %vm149, %v3108, 0.0
    %3455 = vadd.xlane.f32.xlu0 %v3454
    %v3456 = vpop.xlane.xlu0 %3455
    %v3457 = vsel %vm149, %v3109, 0.0
    %3458 = vadd.xlane.f32.xlu0 %v3457
    %v3459 = vpop.xlane.xlu0 %3458
    %v3460 = vsel %vm149, %v3110, 0.0
    %3461 = vadd.xlane.f32.xlu0 %v3460
    %v3462 = vpop.xlane.xlu0 %3461
    %v3463 = vsel %vm149, %v3111, 0.0
    %3464 = vadd.xlane.f32.xlu0 %v3463
    %v3465 = vpop.xlane.xlu0 %3464
    %v3466 = vsel %vm149, %v3112, 0.0
    %3467 = vadd.xlane.f32.xlu0 %v3466
    %v3468 = vpop.xlane.xlu0 %3467
    %v3469 = vsel %vm149, %v3113, 0.0
    %3470 = vadd.xlane.f32.xlu0 %v3469
    %v3471 = vpop.xlane.xlu0 %3470
    %v3472 = vsel %vm149, %v3114, 0.0
    %3473 = vadd.xlane.f32.xlu0 %v3472
    %v3474 = vpop.xlane.xlu0 %3473
    %v3475 = vsel %vm149, %v3115, 0.0
    %3476 = vadd.xlane.f32.xlu0 %v3475
    %v3477 = vpop.xlane.xlu0 %3476
    %v3478 = vsel %vm149, %v3116, 0.0
    %3479 = vadd.xlane.f32.xlu0 %v3478
    %v3480 = vpop.xlane.xlu0 %3479
    %v3481 = vsel %vm149, %v3117, 0.0
    %3482 = vadd.xlane.f32.xlu0 %v3481
    %v3483 = vpop.xlane.xlu0 %3482
    %v3484 = vsel %vm149, %v3118, 0.0
    %3485 = vadd.xlane.f32.xlu0 %v3484
    %v3486 = vpop.xlane.xlu0 %3485
    %v3487 = vsel %vm149, %v3119, 0.0
    %3488 = vadd.xlane.f32.xlu0 %v3487
    %v3489 = vpop.xlane.xlu0 %3488
    %v3490 = vsel %vm149, %v3120, 0.0
    %3491 = vadd.xlane.f32.xlu0 %v3490
    %v3492 = vpop.xlane.xlu0 %3491
    %v3493 = vsel %vm149, %v3121, 0.0
    %3494 = vadd.xlane.f32.xlu0 %v3493
    %v3495 = vpop.xlane.xlu0 %3494
    %v3496 = vsel %vm149, %v3122, 0.0
    %3497 = vadd.xlane.f32.xlu0 %v3496
    %v3498 = vpop.xlane.xlu0 %3497
    %v3499 = vsel %vm149, %v3123, 0.0
    %3500 = vadd.xlane.f32.xlu0 %v3499
    %v3501 = vpop.xlane.xlu0 %3500
    %v3502 = vsel %vm149, %v3124, 0.0
    %3503 = vadd.xlane.f32.xlu0 %v3502
    %v3504 = vpop.xlane.xlu0 %3503
    %v3505 = vsel %vm149, %v3125, 0.0
    %3506 = vadd.xlane.f32.xlu0 %v3505
    %v3507 = vpop.xlane.xlu0 %3506
    %v3508 = vsel %vm149, %v3126, 0.0
    %3509 = vadd.xlane.f32.xlu0 %v3508
    %v3510 = vpop.xlane.xlu0 %3509
    %3639 = vrot.lane.b32.xlu0 %v2999, 64
    %v3640 = vpop.permute.xlu0 %3639
    %3641 = vrot.lane.b32.xlu0 %v3000, 64
    %v3642 = vpop.permute.xlu0 %3641
    %3643 = vrot.lane.b32.xlu0 %v3001, 64
    %v3644 = vpop.permute.xlu0 %3643
    %3645 = vrot.lane.b32.xlu0 %v3002, 64
    %v3646 = vpop.permute.xlu0 %3645
    %3647 = vrot.lane.b32.xlu0 %v3003, 64
    %v3648 = vpop.permute.xlu0 %3647
    %3649 = vrot.lane.b32.xlu0 %v3004, 64
    %v3650 = vpop.permute.xlu0 %3649
    %3651 = vrot.lane.b32.xlu0 %v3005, 64
    %v3652 = vpop.permute.xlu0 %3651
    %3653 = vrot.lane.b32.xlu0 %v3006, 64
    %v3654 = vpop.permute.xlu0 %3653
    %3655 = vrot.lane.b32.xlu0 %v3007, 64
    %v3656 = vpop.permute.xlu0 %3655
    %3657 = vrot.lane.b32.xlu0 %v3008, 64
    %v3658 = vpop.permute.xlu0 %3657
    %3659 = vrot.lane.b32.xlu0 %v3009, 64
    %v3660 = vpop.permute.xlu0 %3659
    %3661 = vrot.lane.b32.xlu0 %v3010, 64
    %v3662 = vpop.permute.xlu0 %3661
    %3663 = vrot.lane.b32.xlu0 %v3011, 64
    %v3664 = vpop.permute.xlu0 %3663
    %3665 = vrot.lane.b32.xlu0 %v3012, 64
    %v3666 = vpop.permute.xlu0 %3665
    %3667 = vrot.lane.b32.xlu0 %v3013, 64
    %v3668 = vpop.permute.xlu0 %3667
    %3669 = vrot.lane.b32.xlu0 %v3014, 64
    %v3670 = vpop.permute.xlu0 %3669
    %3671 = vrot.lane.b32.xlu0 %v3015, 64
    %v3672 = vpop.permute.xlu0 %3671
    %3673 = vrot.lane.b32.xlu0 %v3016, 64
    %v3674 = vpop.permute.xlu0 %3673
    %3675 = vrot.lane.b32.xlu0 %v3017, 64
    %v3676 = vpop.permute.xlu0 %3675
    %3677 = vrot.lane.b32.xlu0 %v3018, 64
    %v3678 = vpop.permute.xlu0 %3677
    %3679 = vrot.lane.b32.xlu0 %v3019, 64
    %v3680 = vpop.permute.xlu0 %3679
    %3681 = vrot.lane.b32.xlu0 %v3020, 64
    %v3682 = vpop.permute.xlu0 %3681
    %3683 = vrot.lane.b32.xlu0 %v3021, 64
    %v3684 = vpop.permute.xlu0 %3683
    %3685 = vrot.lane.b32.xlu0 %v3022, 64
    %v3686 = vpop.permute.xlu0 %3685
    %3687 = vrot.lane.b32.xlu0 %v3023, 64
    %v3688 = vpop.permute.xlu0 %3687
    %3689 = vrot.lane.b32.xlu0 %v3024, 64
    %v3690 = vpop.permute.xlu0 %3689
    %3691 = vrot.lane.b32.xlu0 %v3025, 64
    %v3692 = vpop.permute.xlu0 %3691
    %3693 = vrot.lane.b32.xlu0 %v3026, 64
    %v3694 = vpop.permute.xlu0 %3693
    %3695 = vrot.lane.b32.xlu0 %v3027, 64
    %v3696 = vpop.permute.xlu0 %3695
    %3697 = vrot.lane.b32.xlu0 %v3028, 64
    %v3698 = vpop.permute.xlu0 %3697
    %3699 = vrot.lane.b32.xlu0 %v3029, 64
    %v3700 = vpop.permute.xlu0 %3699
    %3701 = vrot.lane.b32.xlu0 %v3030, 64
    %v3702 = vpop.permute.xlu0 %3701
    %3703 = vrot.lane.b32.xlu0 %v3031, 64
    %v3704 = vpop.permute.xlu0 %3703
    %3705 = vrot.lane.b32.xlu0 %v3032, 64
    %v3706 = vpop.permute.xlu0 %3705
    %3707 = vrot.lane.b32.xlu0 %v3033, 64
    %v3708 = vpop.permute.xlu0 %3707
    %3709 = vrot.lane.b32.xlu0 %v3034, 64
    %v3710 = vpop.permute.xlu0 %3709
    %3711 = vrot.lane.b32.xlu0 %v3035, 64
    %v3712 = vpop.permute.xlu0 %3711
    %3713 = vrot.lane.b32.xlu0 %v3036, 64
    %v3714 = vpop.permute.xlu0 %3713
    %3715 = vrot.lane.b32.xlu0 %v3037, 64
    %v3716 = vpop.permute.xlu0 %3715
    %3717 = vrot.lane.b32.xlu0 %v3038, 64
    %v3718 = vpop.permute.xlu0 %3717
    %3719 = vrot.lane.b32.xlu0 %v3039, 64
    %v3720 = vpop.permute.xlu0 %3719
    %3721 = vrot.lane.b32.xlu0 %v3040, 64
    %v3722 = vpop.permute.xlu0 %3721
    %3723 = vrot.lane.b32.xlu0 %v3041, 64
    %v3724 = vpop.permute.xlu0 %3723
    %3725 = vrot.lane.b32.xlu0 %v3042, 64
    %v3726 = vpop.permute.xlu0 %3725
    %3727 = vrot.lane.b32.xlu0 %v3043, 64
    %v3728 = vpop.permute.xlu0 %3727
    %3729 = vrot.lane.b32.xlu0 %v3044, 64
    %v3730 = vpop.permute.xlu0 %3729
    %3731 = vrot.lane.b32.xlu0 %v3045, 64
    %v3732 = vpop.permute.xlu0 %3731
    %3733 = vrot.lane.b32.xlu0 %v3046, 64
    %v3734 = vpop.permute.xlu0 %3733
    %3735 = vrot.lane.b32.xlu0 %v3047, 64
    %v3736 = vpop.permute.xlu0 %3735
    %3737 = vrot.lane.b32.xlu0 %v3048, 64
    %v3738 = vpop.permute.xlu0 %3737
    %3739 = vrot.lane.b32.xlu0 %v3049, 64
    %v3740 = vpop.permute.xlu0 %3739
    %3741 = vrot.lane.b32.xlu0 %v3050, 64
    %v3742 = vpop.permute.xlu0 %3741
    %3743 = vrot.lane.b32.xlu0 %v3051, 64
    %v3744 = vpop.permute.xlu0 %3743
    %3745 = vrot.lane.b32.xlu0 %v3052, 64
    %v3746 = vpop.permute.xlu0 %3745
    %3747 = vrot.lane.b32.xlu0 %v3053, 64
    %v3748 = vpop.permute.xlu0 %3747
    %3749 = vrot.lane.b32.xlu0 %v3054, 64
    %v3750 = vpop.permute.xlu0 %3749
    %3751 = vrot.lane.b32.xlu0 %v3055, 64
    %v3752 = vpop.permute.xlu0 %3751
    %3753 = vrot.lane.b32.xlu0 %v3056, 64
    %v3754 = vpop.permute.xlu0 %3753
    %3755 = vrot.lane.b32.xlu0 %v3057, 64
    %v3756 = vpop.permute.xlu0 %3755
    %3757 = vrot.lane.b32.xlu0 %v3058, 64
    %v3758 = vpop.permute.xlu0 %3757
    %3759 = vrot.lane.b32.xlu0 %v3059, 64
    %v3760 = vpop.permute.xlu0 %3759
    %3761 = vrot.lane.b32.xlu0 %v3060, 64
    %v3762 = vpop.permute.xlu0 %3761
    %3763 = vrot.lane.b32.xlu0 %v3061, 64
    %v3764 = vpop.permute.xlu0 %3763
    %3765 = vrot.lane.b32.xlu0 %v3062, 64
    %v3766 = vpop.permute.xlu0 %3765
    %3767 = vrot.lane.b32.xlu0 %v3063, 64
    %v3768 = vpop.permute.xlu0 %3767
    %3769 = vrot.lane.b32.xlu0 %v3064, 64
    %v3770 = vpop.permute.xlu0 %3769
    %3771 = vrot.lane.b32.xlu0 %v3065, 64
    %v3772 = vpop.permute.xlu0 %3771
    %3773 = vrot.lane.b32.xlu0 %v3066, 64
    %v3774 = vpop.permute.xlu0 %3773
    %3775 = vrot.lane.b32.xlu0 %v3067, 64
    %v3776 = vpop.permute.xlu0 %3775
    %3777 = vrot.lane.b32.xlu0 %v3068, 64
    %v3778 = vpop.permute.xlu0 %3777
    %3779 = vrot.lane.b32.xlu0 %v3069, 64
    %v3780 = vpop.permute.xlu0 %3779
    %3781 = vrot.lane.b32.xlu0 %v3070, 64
    %v3782 = vpop.permute.xlu0 %3781
    %3783 = vrot.lane.b32.xlu0 %v3071, 64
    %v3784 = vpop.permute.xlu0 %3783
    %3785 = vrot.lane.b32.xlu0 %v3072, 64
    %v3786 = vpop.permute.xlu0 %3785
    %3787 = vrot.lane.b32.xlu0 %v3073, 64
    %v3788 = vpop.permute.xlu0 %3787
    %3789 = vrot.lane.b32.xlu0 %v3074, 64
    %v3790 = vpop.permute.xlu0 %3789
    %3791 = vrot.lane.b32.xlu0 %v3075, 64
    %v3792 = vpop.permute.xlu0 %3791
    %3793 = vrot.lane.b32.xlu0 %v3076, 64
    %v3794 = vpop.permute.xlu0 %3793
    %3795 = vrot.lane.b32.xlu0 %v3077, 64
    %v3796 = vpop.permute.xlu0 %3795
    %3797 = vrot.lane.b32.xlu0 %v3078, 64
    %v3798 = vpop.permute.xlu0 %3797
    %3799 = vrot.lane.b32.xlu0 %v3079, 64
    %v3800 = vpop.permute.xlu0 %3799
    %3801 = vrot.lane.b32.xlu0 %v3080, 64
    %v3802 = vpop.permute.xlu0 %3801
    %3803 = vrot.lane.b32.xlu0 %v3081, 64
    %v3804 = vpop.permute.xlu0 %3803
    %3805 = vrot.lane.b32.xlu0 %v3082, 64
    %v3806 = vpop.permute.xlu0 %3805
    %3807 = vrot.lane.b32.xlu0 %v3083, 64
    %v3808 = vpop.permute.xlu0 %3807
    %3809 = vrot.lane.b32.xlu0 %v3084, 64
    %v3810 = vpop.permute.xlu0 %3809
    %3811 = vrot.lane.b32.xlu0 %v3085, 64
    %v3812 = vpop.permute.xlu0 %3811
    %3813 = vrot.lane.b32.xlu0 %v3086, 64
    %v3814 = vpop.permute.xlu0 %3813
    %3815 = vrot.lane.b32.xlu0 %v3087, 64
    %v3816 = vpop.permute.xlu0 %3815
    %3817 = vrot.lane.b32.xlu0 %v3088, 64
    %v3818 = vpop.permute.xlu0 %3817
    %3819 = vrot.lane.b32.xlu0 %v3089, 64
    %v3820 = vpop.permute.xlu0 %3819
    %3821 = vrot.lane.b32.xlu0 %v3090, 64
    %v3822 = vpop.permute.xlu0 %3821
    %3823 = vrot.lane.b32.xlu0 %v3091, 64
    %v3824 = vpop.permute.xlu0 %3823
    %3825 = vrot.lane.b32.xlu0 %v3092, 64
    %v3826 = vpop.permute.xlu0 %3825
    %3827 = vrot.lane.b32.xlu0 %v3093, 64
    %v3828 = vpop.permute.xlu0 %3827
    %3829 = vrot.lane.b32.xlu0 %v3094, 64
    %v3830 = vpop.permute.xlu0 %3829
    %3831 = vrot.lane.b32.xlu0 %v3095, 64
    %v3832 = vpop.permute.xlu0 %3831
    %3833 = vrot.lane.b32.xlu0 %v3096, 64
    %v3834 = vpop.permute.xlu0 %3833
    %3835 = vrot.lane.b32.xlu0 %v3097, 64
    %v3836 = vpop.permute.xlu0 %3835
    %3837 = vrot.lane.b32.xlu0 %v3098, 64
    %v3838 = vpop.permute.xlu0 %3837
    %3839 = vrot.lane.b32.xlu0 %v3099, 64
    %v3840 = vpop.permute.xlu0 %3839
    %3841 = vrot.lane.b32.xlu0 %v3100, 64
    %v3842 = vpop.permute.xlu0 %3841
    %3843 = vrot.lane.b32.xlu0 %v3101, 64
    %v3844 = vpop.permute.xlu0 %3843
    %3845 = vrot.lane.b32.xlu0 %v3102, 64
    %v3846 = vpop.permute.xlu0 %3845
    %3847 = vrot.lane.b32.xlu0 %v3103, 64
    %v3848 = vpop.permute.xlu0 %3847
    %3849 = vrot.lane.b32.xlu0 %v3104, 64
    %v3850 = vpop.permute.xlu0 %3849
    %3851 = vrot.lane.b32.xlu0 %v3105, 64
    %v3852 = vpop.permute.xlu0 %3851
    %3853 = vrot.lane.b32.xlu0 %v3106, 64
    %v3854 = vpop.permute.xlu0 %3853
    %3855 = vrot.lane.b32.xlu0 %v3107, 64
    %v3856 = vpop.permute.xlu0 %3855
    %3857 = vrot.lane.b32.xlu0 %v3108, 64
    %v3858 = vpop.permute.xlu0 %3857
    %3859 = vrot.lane.b32.xlu0 %v3109, 64
    %v3860 = vpop.permute.xlu0 %3859
    %3861 = vrot.lane.b32.xlu0 %v3110, 64
    %v3862 = vpop.permute.xlu0 %3861
    %3863 = vrot.lane.b32.xlu0 %v3111, 64
    %v3864 = vpop.permute.xlu0 %3863
    %3865 = vrot.lane.b32.xlu0 %v3112, 64
    %v3866 = vpop.permute.xlu0 %3865
    %3867 = vrot.lane.b32.xlu0 %v3113, 64
    %v3868 = vpop.permute.xlu0 %3867
    %3869 = vrot.lane.b32.xlu0 %v3114, 64
    %v3870 = vpop.permute.xlu0 %3869
    %3871 = vrot.lane.b32.xlu0 %v3115, 64
    %v3872 = vpop.permute.xlu0 %3871
    %3873 = vrot.lane.b32.xlu0 %v3116, 64
    %v3874 = vpop.permute.xlu0 %3873
    %3875 = vrot.lane.b32.xlu0 %v3117, 64
    %v3876 = vpop.permute.xlu0 %3875
    %3877 = vrot.lane.b32.xlu0 %v3118, 64
    %v3878 = vpop.permute.xlu0 %3877
    %3879 = vrot.lane.b32.xlu0 %v3119, 64
    %v3880 = vpop.permute.xlu0 %3879
    %3881 = vrot.lane.b32.xlu0 %v3120, 64
    %v3882 = vpop.permute.xlu0 %3881
    %3883 = vrot.lane.b32.xlu0 %v3121, 64
    %v3884 = vpop.permute.xlu0 %3883
    %3885 = vrot.lane.b32.xlu0 %v3122, 64
    %v3886 = vpop.permute.xlu0 %3885
    %3887 = vrot.lane.b32.xlu0 %v3123, 64
    %v3888 = vpop.permute.xlu0 %3887
    %3889 = vrot.lane.b32.xlu0 %v3124, 64
    %v3890 = vpop.permute.xlu0 %3889
    %3891 = vrot.lane.b32.xlu0 %v3125, 64
    %v3892 = vpop.permute.xlu0 %3891
    %3893 = vrot.lane.b32.xlu0 %v3126, 64
    %v3894 = vpop.permute.xlu0 %3893
    %v4023 = vsel %vm149, %v3640, 0.0
    %4024 = vadd.xlane.f32.xlu0 %v4023
    %v4025 = vpop.xlane.xlu0 %4024
    %v4026 = vsel %vm149, %v3642, 0.0
    %4027 = vadd.xlane.f32.xlu0 %v4026
    %v4028 = vpop.xlane.xlu0 %4027
    %v4029 = vsel %vm149, %v3644, 0.0
    %4030 = vadd.xlane.f32.xlu0 %v4029
    %v4031 = vpop.xlane.xlu0 %4030
    %v4032 = vsel %vm149, %v3646, 0.0
    %4033 = vadd.xlane.f32.xlu0 %v4032
    %v4034 = vpop.xlane.xlu0 %4033
    %v4035 = vsel %vm149, %v3648, 0.0
    %4036 = vadd.xlane.f32.xlu0 %v4035
    %v4037 = vpop.xlane.xlu0 %4036
    %v4038 = vsel %vm149, %v3650, 0.0
    %4039 = vadd.xlane.f32.xlu0 %v4038
    %v4040 = vpop.xlane.xlu0 %4039
    %v4041 = vsel %vm149, %v3652, 0.0
    %4042 = vadd.xlane.f32.xlu0 %v4041
    %v4043 = vpop.xlane.xlu0 %4042
    %v4044 = vsel %vm149, %v3654, 0.0
    %4045 = vadd.xlane.f32.xlu0 %v4044
    %v4046 = vpop.xlane.xlu0 %4045
    %v4047 = vsel %vm149, %v3656, 0.0
    %4048 = vadd.xlane.f32.xlu0 %v4047
    %v4049 = vpop.xlane.xlu0 %4048
    %v4050 = vsel %vm149, %v3658, 0.0
    %4051 = vadd.xlane.f32.xlu0 %v4050
    %v4052 = vpop.xlane.xlu0 %4051
    %v4053 = vsel %vm149, %v3660, 0.0
    %4054 = vadd.xlane.f32.xlu0 %v4053
    %v4055 = vpop.xlane.xlu0 %4054
    %v4056 = vsel %vm149, %v3662, 0.0
    %4057 = vadd.xlane.f32.xlu0 %v4056
    %v4058 = vpop.xlane.xlu0 %4057
    %v4059 = vsel %vm149, %v3664, 0.0
    %4060 = vadd.xlane.f32.xlu0 %v4059
    %v4061 = vpop.xlane.xlu0 %4060
    %v4062 = vsel %vm149, %v3666, 0.0
    %4063 = vadd.xlane.f32.xlu0 %v4062
    %v4064 = vpop.xlane.xlu0 %4063
    %v4065 = vsel %vm149, %v3668, 0.0
    %4066 = vadd.xlane.f32.xlu0 %v4065
    %v4067 = vpop.xlane.xlu0 %4066
    %v4068 = vsel %vm149, %v3670, 0.0
    %4069 = vadd.xlane.f32.xlu0 %v4068
    %v4070 = vpop.xlane.xlu0 %4069
    %v4071 = vsel %vm149, %v3672, 0.0
    %4072 = vadd.xlane.f32.xlu0 %v4071
    %v4073 = vpop.xlane.xlu0 %4072
    %v4074 = vsel %vm149, %v3674, 0.0
    %4075 = vadd.xlane.f32.xlu0 %v4074
    %v4076 = vpop.xlane.xlu0 %4075
    %v4077 = vsel %vm149, %v3676, 0.0
    %4078 = vadd.xlane.f32.xlu0 %v4077
    %v4079 = vpop.xlane.xlu0 %4078
    %v4080 = vsel %vm149, %v3678, 0.0
    %4081 = vadd.xlane.f32.xlu0 %v4080
    %v4082 = vpop.xlane.xlu0 %4081
    %v4083 = vsel %vm149, %v3680, 0.0
    %4084 = vadd.xlane.f32.xlu0 %v4083
    %v4085 = vpop.xlane.xlu0 %4084
    %v4086 = vsel %vm149, %v3682, 0.0
    %4087 = vadd.xlane.f32.xlu0 %v4086
    %v4088 = vpop.xlane.xlu0 %4087
    %v4089 = vsel %vm149, %v3684, 0.0
    %4090 = vadd.xlane.f32.xlu0 %v4089
    %v4091 = vpop.xlane.xlu0 %4090
    %v4092 = vsel %vm149, %v3686, 0.0
    %4093 = vadd.xlane.f32.xlu0 %v4092
    %v4094 = vpop.xlane.xlu0 %4093
    %v4095 = vsel %vm149, %v3688, 0.0
    %4096 = vadd.xlane.f32.xlu0 %v4095
    %v4097 = vpop.xlane.xlu0 %4096
    %v4098 = vsel %vm149, %v3690, 0.0
    %4099 = vadd.xlane.f32.xlu0 %v4098
    %v4100 = vpop.xlane.xlu0 %4099
    %v4101 = vsel %vm149, %v3692, 0.0
    %4102 = vadd.xlane.f32.xlu0 %v4101
    %v4103 = vpop.xlane.xlu0 %4102
    %v4104 = vsel %vm149, %v3694, 0.0
    %4105 = vadd.xlane.f32.xlu0 %v4104
    %v4106 = vpop.xlane.xlu0 %4105
    %v4107 = vsel %vm149, %v3696, 0.0
    %4108 = vadd.xlane.f32.xlu0 %v4107
    %v4109 = vpop.xlane.xlu0 %4108
    %v4110 = vsel %vm149, %v3698, 0.0
    %4111 = vadd.xlane.f32.xlu0 %v4110
    %v4112 = vpop.xlane.xlu0 %4111
    %v4113 = vsel %vm149, %v3700, 0.0
    %4114 = vadd.xlane.f32.xlu0 %v4113
    %v4115 = vpop.xlane.xlu0 %4114
    %v4116 = vsel %vm149, %v3702, 0.0
    %4117 = vadd.xlane.f32.xlu0 %v4116
    %v4118 = vpop.xlane.xlu0 %4117
    %v4119 = vsel %vm149, %v3704, 0.0
    %4120 = vadd.xlane.f32.xlu0 %v4119
    %v4121 = vpop.xlane.xlu0 %4120
    %v4122 = vsel %vm149, %v3706, 0.0
    %4123 = vadd.xlane.f32.xlu0 %v4122
    %v4124 = vpop.xlane.xlu0 %4123
    %v4125 = vsel %vm149, %v3708, 0.0
    %4126 = vadd.xlane.f32.xlu0 %v4125
    %v4127 = vpop.xlane.xlu0 %4126
    %v4128 = vsel %vm149, %v3710, 0.0
    %4129 = vadd.xlane.f32.xlu0 %v4128
    %v4130 = vpop.xlane.xlu0 %4129
    %v4131 = vsel %vm149, %v3712, 0.0
    %4132 = vadd.xlane.f32.xlu0 %v4131
    %v4133 = vpop.xlane.xlu0 %4132
    %v4134 = vsel %vm149, %v3714, 0.0
    %4135 = vadd.xlane.f32.xlu0 %v4134
    %v4136 = vpop.xlane.xlu0 %4135
    %v4137 = vsel %vm149, %v3716, 0.0
    %4138 = vadd.xlane.f32.xlu0 %v4137
    %v4139 = vpop.xlane.xlu0 %4138
    %v4140 = vsel %vm149, %v3718, 0.0
    %4141 = vadd.xlane.f32.xlu0 %v4140
    %v4142 = vpop.xlane.xlu0 %4141
    %v4143 = vsel %vm149, %v3720, 0.0
    %4144 = vadd.xlane.f32.xlu0 %v4143
    %v4145 = vpop.xlane.xlu0 %4144
    %v4146 = vsel %vm149, %v3722, 0.0
    %4147 = vadd.xlane.f32.xlu0 %v4146
    %v4148 = vpop.xlane.xlu0 %4147
    %v4149 = vsel %vm149, %v3724, 0.0
    %4150 = vadd.xlane.f32.xlu0 %v4149
    %v4151 = vpop.xlane.xlu0 %4150
    %v4152 = vsel %vm149, %v3726, 0.0
    %4153 = vadd.xlane.f32.xlu0 %v4152
    %v4154 = vpop.xlane.xlu0 %4153
    %v4155 = vsel %vm149, %v3728, 0.0
    %4156 = vadd.xlane.f32.xlu0 %v4155
    %v4157 = vpop.xlane.xlu0 %4156
    %v4158 = vsel %vm149, %v3730, 0.0
    %4159 = vadd.xlane.f32.xlu0 %v4158
    %v4160 = vpop.xlane.xlu0 %4159
    %v4161 = vsel %vm149, %v3732, 0.0
    %4162 = vadd.xlane.f32.xlu0 %v4161
    %v4163 = vpop.xlane.xlu0 %4162
    %v4164 = vsel %vm149, %v3734, 0.0
    %4165 = vadd.xlane.f32.xlu0 %v4164
    %v4166 = vpop.xlane.xlu0 %4165
    %v4167 = vsel %vm149, %v3736, 0.0
    %4168 = vadd.xlane.f32.xlu0 %v4167
    %v4169 = vpop.xlane.xlu0 %4168
    %v4170 = vsel %vm149, %v3738, 0.0
    %4171 = vadd.xlane.f32.xlu0 %v4170
    %v4172 = vpop.xlane.xlu0 %4171
    %v4173 = vsel %vm149, %v3740, 0.0
    %4174 = vadd.xlane.f32.xlu0 %v4173
    %v4175 = vpop.xlane.xlu0 %4174
    %v4176 = vsel %vm149, %v3742, 0.0
    %4177 = vadd.xlane.f32.xlu0 %v4176
    %v4178 = vpop.xlane.xlu0 %4177
    %v4179 = vsel %vm149, %v3744, 0.0
    %4180 = vadd.xlane.f32.xlu0 %v4179
    %v4181 = vpop.xlane.xlu0 %4180
    %v4182 = vsel %vm149, %v3746, 0.0
    %4183 = vadd.xlane.f32.xlu0 %v4182
    %v4184 = vpop.xlane.xlu0 %4183
    %v4185 = vsel %vm149, %v3748, 0.0
    %4186 = vadd.xlane.f32.xlu0 %v4185
    %v4187 = vpop.xlane.xlu0 %4186
    %v4188 = vsel %vm149, %v3750, 0.0
    %4189 = vadd.xlane.f32.xlu0 %v4188
    %v4190 = vpop.xlane.xlu0 %4189
    %v4191 = vsel %vm149, %v3752, 0.0
    %4192 = vadd.xlane.f32.xlu0 %v4191
    %v4193 = vpop.xlane.xlu0 %4192
    %v4194 = vsel %vm149, %v3754, 0.0
    %4195 = vadd.xlane.f32.xlu0 %v4194
    %v4196 = vpop.xlane.xlu0 %4195
    %v4197 = vsel %vm149, %v3756, 0.0
    %4198 = vadd.xlane.f32.xlu0 %v4197
    %v4199 = vpop.xlane.xlu0 %4198
    %v4200 = vsel %vm149, %v3758, 0.0
    %4201 = vadd.xlane.f32.xlu0 %v4200
    %v4202 = vpop.xlane.xlu0 %4201
    %v4203 = vsel %vm149, %v3760, 0.0
    %4204 = vadd.xlane.f32.xlu0 %v4203
    %v4205 = vpop.xlane.xlu0 %4204
    %v4206 = vsel %vm149, %v3762, 0.0
    %4207 = vadd.xlane.f32.xlu0 %v4206
    %v4208 = vpop.xlane.xlu0 %4207
    %v4209 = vsel %vm149, %v3764, 0.0
    %4210 = vadd.xlane.f32.xlu0 %v4209
    %v4211 = vpop.xlane.xlu0 %4210
    %v4212 = vsel %vm149, %v3766, 0.0
    %4213 = vadd.xlane.f32.xlu0 %v4212
    %v4214 = vpop.xlane.xlu0 %4213
    %v4215 = vsel %vm149, %v3768, 0.0
    %4216 = vadd.xlane.f32.xlu0 %v4215
    %v4217 = vpop.xlane.xlu0 %4216
    %v4218 = vsel %vm149, %v3770, 0.0
    %4219 = vadd.xlane.f32.xlu0 %v4218
    %v4220 = vpop.xlane.xlu0 %4219
    %v4221 = vsel %vm149, %v3772, 0.0
    %4222 = vadd.xlane.f32.xlu0 %v4221
    %v4223 = vpop.xlane.xlu0 %4222
    %v4224 = vsel %vm149, %v3774, 0.0
    %4225 = vadd.xlane.f32.xlu0 %v4224
    %v4226 = vpop.xlane.xlu0 %4225
    %v4227 = vsel %vm149, %v3776, 0.0
    %4228 = vadd.xlane.f32.xlu0 %v4227
    %v4229 = vpop.xlane.xlu0 %4228
    %v4230 = vsel %vm149, %v3778, 0.0
    %4231 = vadd.xlane.f32.xlu0 %v4230
    %v4232 = vpop.xlane.xlu0 %4231
    %v4233 = vsel %vm149, %v3780, 0.0
    %4234 = vadd.xlane.f32.xlu0 %v4233
    %v4235 = vpop.xlane.xlu0 %4234
    %v4236 = vsel %vm149, %v3782, 0.0
    %4237 = vadd.xlane.f32.xlu0 %v4236
    %v4238 = vpop.xlane.xlu0 %4237
    %v4239 = vsel %vm149, %v3784, 0.0
    %4240 = vadd.xlane.f32.xlu0 %v4239
    %v4241 = vpop.xlane.xlu0 %4240
    %v4242 = vsel %vm149, %v3786, 0.0
    %4243 = vadd.xlane.f32.xlu0 %v4242
    %v4244 = vpop.xlane.xlu0 %4243
    %v4245 = vsel %vm149, %v3788, 0.0
    %4246 = vadd.xlane.f32.xlu0 %v4245
    %v4247 = vpop.xlane.xlu0 %4246
    %v4248 = vsel %vm149, %v3790, 0.0
    %4249 = vadd.xlane.f32.xlu0 %v4248
    %v4250 = vpop.xlane.xlu0 %4249
    %v4251 = vsel %vm149, %v3792, 0.0
    %4252 = vadd.xlane.f32.xlu0 %v4251
    %v4253 = vpop.xlane.xlu0 %4252
    %v4254 = vsel %vm149, %v3794, 0.0
    %4255 = vadd.xlane.f32.xlu0 %v4254
    %v4256 = vpop.xlane.xlu0 %4255
    %v4257 = vsel %vm149, %v3796, 0.0
    %4258 = vadd.xlane.f32.xlu0 %v4257
    %v4259 = vpop.xlane.xlu0 %4258
    %v4260 = vsel %vm149, %v3798, 0.0
    %4261 = vadd.xlane.f32.xlu0 %v4260
    %v4262 = vpop.xlane.xlu0 %4261
    %v4263 = vsel %vm149, %v3800, 0.0
    %4264 = vadd.xlane.f32.xlu0 %v4263
    %v4265 = vpop.xlane.xlu0 %4264
    %v4266 = vsel %vm149, %v3802, 0.0
    %4267 = vadd.xlane.f32.xlu0 %v4266
    %v4268 = vpop.xlane.xlu0 %4267
    %v4269 = vsel %vm149, %v3804, 0.0
    %4270 = vadd.xlane.f32.xlu0 %v4269
    %v4271 = vpop.xlane.xlu0 %4270
    %v4272 = vsel %vm149, %v3806, 0.0
    %4273 = vadd.xlane.f32.xlu0 %v4272
    %v4274 = vpop.xlane.xlu0 %4273
    %v4275 = vsel %vm149, %v3808, 0.0
    %4276 = vadd.xlane.f32.xlu0 %v4275
    %v4277 = vpop.xlane.xlu0 %4276
    %v4278 = vsel %vm149, %v3810, 0.0
    %4279 = vadd.xlane.f32.xlu0 %v4278
    %v4280 = vpop.xlane.xlu0 %4279
    %v4281 = vsel %vm149, %v3812, 0.0
    %4282 = vadd.xlane.f32.xlu0 %v4281
    %v4283 = vpop.xlane.xlu0 %4282
    %v4284 = vsel %vm149, %v3814, 0.0
    %4285 = vadd.xlane.f32.xlu0 %v4284
    %v4286 = vpop.xlane.xlu0 %4285
    %v4287 = vsel %vm149, %v3816, 0.0
    %4288 = vadd.xlane.f32.xlu0 %v4287
    %v4289 = vpop.xlane.xlu0 %4288
    %v4290 = vsel %vm149, %v3818, 0.0
    %4291 = vadd.xlane.f32.xlu0 %v4290
    %v4292 = vpop.xlane.xlu0 %4291
    %v4293 = vsel %vm149, %v3820, 0.0
    %4294 = vadd.xlane.f32.xlu0 %v4293
    %v4295 = vpop.xlane.xlu0 %4294
    %v4296 = vsel %vm149, %v3822, 0.0
    %4297 = vadd.xlane.f32.xlu0 %v4296
    %v4298 = vpop.xlane.xlu0 %4297
    %v4299 = vsel %vm149, %v3824, 0.0
    %4300 = vadd.xlane.f32.xlu0 %v4299
    %v4301 = vpop.xlane.xlu0 %4300
    %v4302 = vsel %vm149, %v3826, 0.0
    %4303 = vadd.xlane.f32.xlu0 %v4302
    %v4304 = vpop.xlane.xlu0 %4303
    %v4305 = vsel %vm149, %v3828, 0.0
    %4306 = vadd.xlane.f32.xlu0 %v4305
    %v4307 = vpop.xlane.xlu0 %4306
    %v4308 = vsel %vm149, %v3830, 0.0
    %4309 = vadd.xlane.f32.xlu0 %v4308
    %v4310 = vpop.xlane.xlu0 %4309
    %v4311 = vsel %vm149, %v3832, 0.0
    %4312 = vadd.xlane.f32.xlu0 %v4311
    %v4313 = vpop.xlane.xlu0 %4312
    %v4314 = vsel %vm149, %v3834, 0.0
    %4315 = vadd.xlane.f32.xlu0 %v4314
    %v4316 = vpop.xlane.xlu0 %4315
    %v4317 = vsel %vm149, %v3836, 0.0
    %4318 = vadd.xlane.f32.xlu0 %v4317
    %v4319 = vpop.xlane.xlu0 %4318
    %v4320 = vsel %vm149, %v3838, 0.0
    %4321 = vadd.xlane.f32.xlu0 %v4320
    %v4322 = vpop.xlane.xlu0 %4321
    %v4323 = vsel %vm149, %v3840, 0.0
    %4324 = vadd.xlane.f32.xlu0 %v4323
    %v4325 = vpop.xlane.xlu0 %4324
    %v4326 = vsel %vm149, %v3842, 0.0
    %4327 = vadd.xlane.f32.xlu0 %v4326
    %v4328 = vpop.xlane.xlu0 %4327
    %v4329 = vsel %vm149, %v3844, 0.0
    %4330 = vadd.xlane.f32.xlu0 %v4329
    %v4331 = vpop.xlane.xlu0 %4330
    %v4332 = vsel %vm149, %v3846, 0.0
    %4333 = vadd.xlane.f32.xlu0 %v4332
    %v4334 = vpop.xlane.xlu0 %4333
    %v4335 = vsel %vm149, %v3848, 0.0
    %4336 = vadd.xlane.f32.xlu0 %v4335
    %v4337 = vpop.xlane.xlu0 %4336
    %v4338 = vsel %vm149, %v3850, 0.0
    %4339 = vadd.xlane.f32.xlu0 %v4338
    %v4340 = vpop.xlane.xlu0 %4339
    %v4341 = vsel %vm149, %v3852, 0.0
    %4342 = vadd.xlane.f32.xlu0 %v4341
    %v4343 = vpop.xlane.xlu0 %4342
    %v4344 = vsel %vm149, %v3854, 0.0
    %4345 = vadd.xlane.f32.xlu0 %v4344
    %v4346 = vpop.xlane.xlu0 %4345
    %v4347 = vsel %vm149, %v3856, 0.0
    %4348 = vadd.xlane.f32.xlu0 %v4347
    %v4349 = vpop.xlane.xlu0 %4348
    %v4350 = vsel %vm149, %v3858, 0.0
    %4351 = vadd.xlane.f32.xlu0 %v4350
    %v4352 = vpop.xlane.xlu0 %4351
    %v4353 = vsel %vm149, %v3860, 0.0
    %4354 = vadd.xlane.f32.xlu0 %v4353
    %v4355 = vpop.xlane.xlu0 %4354
    %v4356 = vsel %vm149, %v3862, 0.0
    %4357 = vadd.xlane.f32.xlu0 %v4356
    %v4358 = vpop.xlane.xlu0 %4357
    %v4359 = vsel %vm149, %v3864, 0.0
    %4360 = vadd.xlane.f32.xlu0 %v4359
    %v4361 = vpop.xlane.xlu0 %4360
    %v4362 = vsel %vm149, %v3866, 0.0
    %4363 = vadd.xlane.f32.xlu0 %v4362
    %v4364 = vpop.xlane.xlu0 %4363
    %v4365 = vsel %vm149, %v3868, 0.0
    %4366 = vadd.xlane.f32.xlu0 %v4365
    %v4367 = vpop.xlane.xlu0 %4366
    %v4368 = vsel %vm149, %v3870, 0.0
    %4369 = vadd.xlane.f32.xlu0 %v4368
    %v4370 = vpop.xlane.xlu0 %4369
    %v4371 = vsel %vm149, %v3872, 0.0
    %4372 = vadd.xlane.f32.xlu0 %v4371
    %v4373 = vpop.xlane.xlu0 %4372
    %v4374 = vsel %vm149, %v3874, 0.0
    %4375 = vadd.xlane.f32.xlu0 %v4374
    %v4376 = vpop.xlane.xlu0 %4375
    %v4377 = vsel %vm149, %v3876, 0.0
    %4378 = vadd.xlane.f32.xlu0 %v4377
    %v4379 = vpop.xlane.xlu0 %4378
    %v4380 = vsel %vm149, %v3878, 0.0
    %4381 = vadd.xlane.f32.xlu0 %v4380
    %v4382 = vpop.xlane.xlu0 %4381
    %v4383 = vsel %vm149, %v3880, 0.0
    %4384 = vadd.xlane.f32.xlu0 %v4383
    %v4385 = vpop.xlane.xlu0 %4384
    %v4386 = vsel %vm149, %v3882, 0.0
    %4387 = vadd.xlane.f32.xlu0 %v4386
    %v4388 = vpop.xlane.xlu0 %4387
    %v4389 = vsel %vm149, %v3884, 0.0
    %4390 = vadd.xlane.f32.xlu0 %v4389
    %v4391 = vpop.xlane.xlu0 %4390
    %v4392 = vsel %vm149, %v3886, 0.0
    %4393 = vadd.xlane.f32.xlu0 %v4392
    %v4394 = vpop.xlane.xlu0 %4393
    %v4395 = vsel %vm149, %v3888, 0.0
    %4396 = vadd.xlane.f32.xlu0 %v4395
    %v4397 = vpop.xlane.xlu0 %4396
    %v4398 = vsel %vm149, %v3890, 0.0
    %4399 = vadd.xlane.f32.xlu0 %v4398
    %v4400 = vpop.xlane.xlu0 %4399
    %v4401 = vsel %vm149, %v3892, 0.0
    %4402 = vadd.xlane.f32.xlu0 %v4401
    %v4403 = vpop.xlane.xlu0 %4402
    %v4404 = vsel %vm149, %v3894, 0.0
    %4405 = vadd.xlane.f32.xlu0 %v4404
    %v4406 = vpop.xlane.xlu0 %4405
    %v4535 = vlaneseq
    %v4536 = vshrl.u32 %v4535, 7
    %v4537 = vsub.s32 %v1559, %v4536
    %v4538 = vrot.slane %v3129, %v4537
    %v4539 = vlaneseq
    %v4540 = vshrl.u32 %v4539, 7
    %v4541 = vsub.s32 %v1564, %v4540
    %v4542 = vrot.slane %v3132, %v4541
    %v4543 = vsel %vm1569, %v4542, %v4538
    %v4544 = vlaneseq
    %v4545 = vshrl.u32 %v4544, 7
    %v4546 = vsub.s32 %v1571, %v4545
    %v4547 = vrot.slane %v3135, %v4546
    %v4548 = vsel %vm1576, %v4547, %v4543
    %v4549 = vlaneseq
    %v4550 = vshrl.u32 %v4549, 7
    %v4551 = vsub.s32 %v1578, %v4550
    %v4552 = vrot.slane %v3138, %v4551
    %v4553 = vsel %vm1583, %v4552, %v4548
    %v4554 = vlaneseq
    %v4555 = vshrl.u32 %v4554, 7
    %v4556 = vsub.s32 %v1585, %v4555
    %v4557 = vrot.slane %v3141, %v4556
    %v4558 = vsel %vm1590, %v4557, %v4553
    %v4559 = vlaneseq
    %v4560 = vshrl.u32 %v4559, 7
    %v4561 = vsub.s32 %v1592, %v4560
    %v4562 = vrot.slane %v3144, %v4561
    %v4563 = vsel %vm1597, %v4562, %v4558
    %v4564 = vlaneseq
    %v4565 = vshrl.u32 %v4564, 7
    %v4566 = vsub.s32 %v1599, %v4565
    %v4567 = vrot.slane %v3147, %v4566
    %v4568 = vsel %vm1604, %v4567, %v4563
    %v4569 = vlaneseq
    %v4570 = vshrl.u32 %v4569, 7
    %v4571 = vsub.s32 %v1606, %v4570
    %v4572 = vrot.slane %v3150, %v4571
    %v4573 = vsel %vm1611, %v4572, %v4568
    %v4574 = vlaneseq
    %v4575 = vshrl.u32 %v4574, 7
    %v4576 = vsub.s32 %v1613, %v4575
    %v4577 = vrot.slane %v3153, %v4576
    %v4578 = vsel %vm1618, %v4577, %v4573
    %v4579 = vlaneseq
    %v4580 = vshrl.u32 %v4579, 7
    %v4581 = vsub.s32 %v1620, %v4580
    %v4582 = vrot.slane %v3156, %v4581
    %v4583 = vsel %vm1625, %v4582, %v4578
    %v4584 = vlaneseq
    %v4585 = vshrl.u32 %v4584, 7
    %v4586 = vsub.s32 %v1627, %v4585
    %v4587 = vrot.slane %v3159, %v4586
    %v4588 = vsel %vm1632, %v4587, %v4583
    %v4589 = vlaneseq
    %v4590 = vshrl.u32 %v4589, 7
    %v4591 = vsub.s32 %v1634, %v4590
    %v4592 = vrot.slane %v3162, %v4591
    %v4593 = vsel %vm1639, %v4592, %v4588
    %v4594 = vlaneseq
    %v4595 = vshrl.u32 %v4594, 7
    %v4596 = vsub.s32 %v1641, %v4595
    %v4597 = vrot.slane %v3165, %v4596
    %v4598 = vsel %vm1646, %v4597, %v4593
    %v4599 = vlaneseq
    %v4600 = vshrl.u32 %v4599, 7
    %v4601 = vsub.s32 %v1648, %v4600
    %v4602 = vrot.slane %v3168, %v4601
    %v4603 = vsel %vm1653, %v4602, %v4598
    %v4604 = vlaneseq
    %v4605 = vshrl.u32 %v4604, 7
    %v4606 = vsub.s32 %v1655, %v4605
    %v4607 = vrot.slane %v3171, %v4606
    %v4608 = vsel %vm1660, %v4607, %v4603
    %v4609 = vlaneseq
    %v4610 = vshrl.u32 %v4609, 7
    %v4611 = vsub.s32 %v1662, %v4610
    %v4612 = vrot.slane %v3174, %v4611
    %v4613 = vsel %vm1667, %v4612, %v4608
    %v4614 = vlaneseq
    %v4615 = vshrl.u32 %v4614, 7
    %v4616 = vsub.s32 %v1559, %v4615
    %v4617 = vrot.slane %v3177, %v4616
    %v4618 = vlaneseq
    %v4619 = vshrl.u32 %v4618, 7
    %v4620 = vsub.s32 %v1564, %v4619
    %v4621 = vrot.slane %v3180, %v4620
    %v4622 = vsel %vm1569, %v4621, %v4617
    %v4623 = vlaneseq
    %v4624 = vshrl.u32 %v4623, 7
    %v4625 = vsub.s32 %v1571, %v4624
    %v4626 = vrot.slane %v3183, %v4625
    %v4627 = vsel %vm1576, %v4626, %v4622
    %v4628 = vlaneseq
    %v4629 = vshrl.u32 %v4628, 7
    %v4630 = vsub.s32 %v1578, %v4629
    %v4631 = vrot.slane %v3186, %v4630
    %v4632 = vsel %vm1583, %v4631, %v4627
    %v4633 = vlaneseq
    %v4634 = vshrl.u32 %v4633, 7
    %v4635 = vsub.s32 %v1585, %v4634
    %v4636 = vrot.slane %v3189, %v4635
    %v4637 = vsel %vm1590, %v4636, %v4632
    %v4638 = vlaneseq
    %v4639 = vshrl.u32 %v4638, 7
    %v4640 = vsub.s32 %v1592, %v4639
    %v4641 = vrot.slane %v3192, %v4640
    %v4642 = vsel %vm1597, %v4641, %v4637
    %v4643 = vlaneseq
    %v4644 = vshrl.u32 %v4643, 7
    %v4645 = vsub.s32 %v1599, %v4644
    %v4646 = vrot.slane %v3195, %v4645
    %v4647 = vsel %vm1604, %v4646, %v4642
    %v4648 = vlaneseq
    %v4649 = vshrl.u32 %v4648, 7
    %v4650 = vsub.s32 %v1606, %v4649
    %v4651 = vrot.slane %v3198, %v4650
    %v4652 = vsel %vm1611, %v4651, %v4647
    %v4653 = vlaneseq
    %v4654 = vshrl.u32 %v4653, 7
    %v4655 = vsub.s32 %v1613, %v4654
    %v4656 = vrot.slane %v3201, %v4655
    %v4657 = vsel %vm1618, %v4656, %v4652
    %v4658 = vlaneseq
    %v4659 = vshrl.u32 %v4658, 7
    %v4660 = vsub.s32 %v1620, %v4659
    %v4661 = vrot.slane %v3204, %v4660
    %v4662 = vsel %vm1625, %v4661, %v4657
    %v4663 = vlaneseq
    %v4664 = vshrl.u32 %v4663, 7
    %v4665 = vsub.s32 %v1627, %v4664
    %v4666 = vrot.slane %v3207, %v4665
    %v4667 = vsel %vm1632, %v4666, %v4662
    %v4668 = vlaneseq
    %v4669 = vshrl.u32 %v4668, 7
    %v4670 = vsub.s32 %v1634, %v4669
    %v4671 = vrot.slane %v3210, %v4670
    %v4672 = vsel %vm1639, %v4671, %v4667
    %v4673 = vlaneseq
    %v4674 = vshrl.u32 %v4673, 7
    %v4675 = vsub.s32 %v1641, %v4674
    %v4676 = vrot.slane %v3213, %v4675
    %v4677 = vsel %vm1646, %v4676, %v4672
    %v4678 = vlaneseq
    %v4679 = vshrl.u32 %v4678, 7
    %v4680 = vsub.s32 %v1648, %v4679
    %v4681 = vrot.slane %v3216, %v4680
    %v4682 = vsel %vm1653, %v4681, %v4677
    %v4683 = vlaneseq
    %v4684 = vshrl.u32 %v4683, 7
    %v4685 = vsub.s32 %v1655, %v4684
    %v4686 = vrot.slane %v3219, %v4685
    %v4687 = vsel %vm1660, %v4686, %v4682
    %v4688 = vlaneseq
    %v4689 = vshrl.u32 %v4688, 7
    %v4690 = vsub.s32 %v1662, %v4689
    %v4691 = vrot.slane %v3222, %v4690
    %v4692 = vsel %vm1667, %v4691, %v4687
    %v4693 = vlaneseq
    %v4694 = vshrl.u32 %v4693, 7
    %v4695 = vsub.s32 %v1559, %v4694
    %v4696 = vrot.slane %v3225, %v4695
    %v4697 = vlaneseq
    %v4698 = vshrl.u32 %v4697, 7
    %v4699 = vsub.s32 %v1564, %v4698
    %v4700 = vrot.slane %v3228, %v4699
    %v4701 = vsel %vm1569, %v4700, %v4696
    %v4702 = vlaneseq
    %v4703 = vshrl.u32 %v4702, 7
    %v4704 = vsub.s32 %v1571, %v4703
    %v4705 = vrot.slane %v3231, %v4704
    %v4706 = vsel %vm1576, %v4705, %v4701
    %v4707 = vlaneseq
    %v4708 = vshrl.u32 %v4707, 7
    %v4709 = vsub.s32 %v1578, %v4708
    %v4710 = vrot.slane %v3234, %v4709
    %v4711 = vsel %vm1583, %v4710, %v4706
    %v4712 = vlaneseq
    %v4713 = vshrl.u32 %v4712, 7
    %v4714 = vsub.s32 %v1585, %v4713
    %v4715 = vrot.slane %v3237, %v4714
    %v4716 = vsel %vm1590, %v4715, %v4711
    %v4717 = vlaneseq
    %v4718 = vshrl.u32 %v4717, 7
    %v4719 = vsub.s32 %v1592, %v4718
    %v4720 = vrot.slane %v3240, %v4719
    %v4721 = vsel %vm1597, %v4720, %v4716
    %v4722 = vlaneseq
    %v4723 = vshrl.u32 %v4722, 7
    %v4724 = vsub.s32 %v1599, %v4723
    %v4725 = vrot.slane %v3243, %v4724
    %v4726 = vsel %vm1604, %v4725, %v4721
    %v4727 = vlaneseq
    %v4728 = vshrl.u32 %v4727, 7
    %v4729 = vsub.s32 %v1606, %v4728
    %v4730 = vrot.slane %v3246, %v4729
    %v4731 = vsel %vm1611, %v4730, %v4726
    %v4732 = vlaneseq
    %v4733 = vshrl.u32 %v4732, 7
    %v4734 = vsub.s32 %v1613, %v4733
    %v4735 = vrot.slane %v3249, %v4734
    %v4736 = vsel %vm1618, %v4735, %v4731
    %v4737 = vlaneseq
    %v4738 = vshrl.u32 %v4737, 7
    %v4739 = vsub.s32 %v1620, %v4738
    %v4740 = vrot.slane %v3252, %v4739
    %v4741 = vsel %vm1625, %v4740, %v4736
    %v4742 = vlaneseq
    %v4743 = vshrl.u32 %v4742, 7
    %v4744 = vsub.s32 %v1627, %v4743
    %v4745 = vrot.slane %v3255, %v4744
    %v4746 = vsel %vm1632, %v4745, %v4741
    %v4747 = vlaneseq
    %v4748 = vshrl.u32 %v4747, 7
    %v4749 = vsub.s32 %v1634, %v4748
    %v4750 = vrot.slane %v3258, %v4749
    %v4751 = vsel %vm1639, %v4750, %v4746
    %v4752 = vlaneseq
    %v4753 = vshrl.u32 %v4752, 7
    %v4754 = vsub.s32 %v1641, %v4753
    %v4755 = vrot.slane %v3261, %v4754
    %v4756 = vsel %vm1646, %v4755, %v4751
    %v4757 = vlaneseq
    %v4758 = vshrl.u32 %v4757, 7
    %v4759 = vsub.s32 %v1648, %v4758
    %v4760 = vrot.slane %v3264, %v4759
    %v4761 = vsel %vm1653, %v4760, %v4756
    %v4762 = vlaneseq
    %v4763 = vshrl.u32 %v4762, 7
    %v4764 = vsub.s32 %v1655, %v4763
    %v4765 = vrot.slane %v3267, %v4764
    %v4766 = vsel %vm1660, %v4765, %v4761
    %v4767 = vlaneseq
    %v4768 = vshrl.u32 %v4767, 7
    %v4769 = vsub.s32 %v1662, %v4768
    %v4770 = vrot.slane %v3270, %v4769
    %v4771 = vsel %vm1667, %v4770, %v4766
    %v4772 = vlaneseq
    %v4773 = vshrl.u32 %v4772, 7
    %v4774 = vsub.s32 %v1559, %v4773
    %v4775 = vrot.slane %v3273, %v4774
    %v4776 = vlaneseq
    %v4777 = vshrl.u32 %v4776, 7
    %v4778 = vsub.s32 %v1564, %v4777
    %v4779 = vrot.slane %v3276, %v4778
    %v4780 = vsel %vm1569, %v4779, %v4775
    %v4781 = vlaneseq
    %v4782 = vshrl.u32 %v4781, 7
    %v4783 = vsub.s32 %v1571, %v4782
    %v4784 = vrot.slane %v3279, %v4783
    %v4785 = vsel %vm1576, %v4784, %v4780
    %v4786 = vlaneseq
    %v4787 = vshrl.u32 %v4786, 7
    %v4788 = vsub.s32 %v1578, %v4787
    %v4789 = vrot.slane %v3282, %v4788
    %v4790 = vsel %vm1583, %v4789, %v4785
    %v4791 = vlaneseq
    %v4792 = vshrl.u32 %v4791, 7
    %v4793 = vsub.s32 %v1585, %v4792
    %v4794 = vrot.slane %v3285, %v4793
    %v4795 = vsel %vm1590, %v4794, %v4790
    %v4796 = vlaneseq
    %v4797 = vshrl.u32 %v4796, 7
    %v4798 = vsub.s32 %v1592, %v4797
    %v4799 = vrot.slane %v3288, %v4798
    %v4800 = vsel %vm1597, %v4799, %v4795
    %v4801 = vlaneseq
    %v4802 = vshrl.u32 %v4801, 7
    %v4803 = vsub.s32 %v1599, %v4802
    %v4804 = vrot.slane %v3291, %v4803
    %v4805 = vsel %vm1604, %v4804, %v4800
    %v4806 = vlaneseq
    %v4807 = vshrl.u32 %v4806, 7
    %v4808 = vsub.s32 %v1606, %v4807
    %v4809 = vrot.slane %v3294, %v4808
    %v4810 = vsel %vm1611, %v4809, %v4805
    %v4811 = vlaneseq
    %v4812 = vshrl.u32 %v4811, 7
    %v4813 = vsub.s32 %v1613, %v4812
    %v4814 = vrot.slane %v3297, %v4813
    %v4815 = vsel %vm1618, %v4814, %v4810
    %v4816 = vlaneseq
    %v4817 = vshrl.u32 %v4816, 7
    %v4818 = vsub.s32 %v1620, %v4817
    %v4819 = vrot.slane %v3300, %v4818
    %v4820 = vsel %vm1625, %v4819, %v4815
    %v4821 = vlaneseq
    %v4822 = vshrl.u32 %v4821, 7
    %v4823 = vsub.s32 %v1627, %v4822
    %v4824 = vrot.slane %v3303, %v4823
    %v4825 = vsel %vm1632, %v4824, %v4820
    %v4826 = vlaneseq
    %v4827 = vshrl.u32 %v4826, 7
    %v4828 = vsub.s32 %v1634, %v4827
    %v4829 = vrot.slane %v3306, %v4828
    %v4830 = vsel %vm1639, %v4829, %v4825
    %v4831 = vlaneseq
    %v4832 = vshrl.u32 %v4831, 7
    %v4833 = vsub.s32 %v1641, %v4832
    %v4834 = vrot.slane %v3309, %v4833
    %v4835 = vsel %vm1646, %v4834, %v4830
    %v4836 = vlaneseq
    %v4837 = vshrl.u32 %v4836, 7
    %v4838 = vsub.s32 %v1648, %v4837
    %v4839 = vrot.slane %v3312, %v4838
    %v4840 = vsel %vm1653, %v4839, %v4835
    %v4841 = vlaneseq
    %v4842 = vshrl.u32 %v4841, 7
    %v4843 = vsub.s32 %v1655, %v4842
    %v4844 = vrot.slane %v3315, %v4843
    %v4845 = vsel %vm1660, %v4844, %v4840
    %v4846 = vlaneseq
    %v4847 = vshrl.u32 %v4846, 7
    %v4848 = vsub.s32 %v1662, %v4847
    %v4849 = vrot.slane %v3318, %v4848
    %v4850 = vsel %vm1667, %v4849, %v4845
    %v4851 = vlaneseq
    %v4852 = vshrl.u32 %v4851, 7
    %v4853 = vsub.s32 %v1559, %v4852
    %v4854 = vrot.slane %v3321, %v4853
    %v4855 = vlaneseq
    %v4856 = vshrl.u32 %v4855, 7
    %v4857 = vsub.s32 %v1564, %v4856
    %v4858 = vrot.slane %v3324, %v4857
    %v4859 = vsel %vm1569, %v4858, %v4854
    %v4860 = vlaneseq
    %v4861 = vshrl.u32 %v4860, 7
    %v4862 = vsub.s32 %v1571, %v4861
    %v4863 = vrot.slane %v3327, %v4862
    %v4864 = vsel %vm1576, %v4863, %v4859
    %v4865 = vlaneseq
    %v4866 = vshrl.u32 %v4865, 7
    %v4867 = vsub.s32 %v1578, %v4866
    %v4868 = vrot.slane %v3330, %v4867
    %v4869 = vsel %vm1583, %v4868, %v4864
    %v4870 = vlaneseq
    %v4871 = vshrl.u32 %v4870, 7
    %v4872 = vsub.s32 %v1585, %v4871
    %v4873 = vrot.slane %v3333, %v4872
    %v4874 = vsel %vm1590, %v4873, %v4869
    %v4875 = vlaneseq
    %v4876 = vshrl.u32 %v4875, 7
    %v4877 = vsub.s32 %v1592, %v4876
    %v4878 = vrot.slane %v3336, %v4877
    %v4879 = vsel %vm1597, %v4878, %v4874
    %v4880 = vlaneseq
    %v4881 = vshrl.u32 %v4880, 7
    %v4882 = vsub.s32 %v1599, %v4881
    %v4883 = vrot.slane %v3339, %v4882
    %v4884 = vsel %vm1604, %v4883, %v4879
    %v4885 = vlaneseq
    %v4886 = vshrl.u32 %v4885, 7
    %v4887 = vsub.s32 %v1606, %v4886
    %v4888 = vrot.slane %v3342, %v4887
    %v4889 = vsel %vm1611, %v4888, %v4884
    %v4890 = vlaneseq
    %v4891 = vshrl.u32 %v4890, 7
    %v4892 = vsub.s32 %v1613, %v4891
    %v4893 = vrot.slane %v3345, %v4892
    %v4894 = vsel %vm1618, %v4893, %v4889
    %v4895 = vlaneseq
    %v4896 = vshrl.u32 %v4895, 7
    %v4897 = vsub.s32 %v1620, %v4896
    %v4898 = vrot.slane %v3348, %v4897
    %v4899 = vsel %vm1625, %v4898, %v4894
    %v4900 = vlaneseq
    %v4901 = vshrl.u32 %v4900, 7
    %v4902 = vsub.s32 %v1627, %v4901
    %v4903 = vrot.slane %v3351, %v4902
    %v4904 = vsel %vm1632, %v4903, %v4899
    %v4905 = vlaneseq
    %v4906 = vshrl.u32 %v4905, 7
    %v4907 = vsub.s32 %v1634, %v4906
    %v4908 = vrot.slane %v3354, %v4907
    %v4909 = vsel %vm1639, %v4908, %v4904
    %v4910 = vlaneseq
    %v4911 = vshrl.u32 %v4910, 7
    %v4912 = vsub.s32 %v1641, %v4911
    %v4913 = vrot.slane %v3357, %v4912
    %v4914 = vsel %vm1646, %v4913, %v4909
    %v4915 = vlaneseq
    %v4916 = vshrl.u32 %v4915, 7
    %v4917 = vsub.s32 %v1648, %v4916
    %v4918 = vrot.slane %v3360, %v4917
    %v4919 = vsel %vm1653, %v4918, %v4914
    %v4920 = vlaneseq
    %v4921 = vshrl.u32 %v4920, 7
    %v4922 = vsub.s32 %v1655, %v4921
    %v4923 = vrot.slane %v3363, %v4922
    %v4924 = vsel %vm1660, %v4923, %v4919
    %v4925 = vlaneseq
    %v4926 = vshrl.u32 %v4925, 7
    %v4927 = vsub.s32 %v1662, %v4926
    %v4928 = vrot.slane %v3366, %v4927
    %v4929 = vsel %vm1667, %v4928, %v4924
    %v4930 = vlaneseq
    %v4931 = vshrl.u32 %v4930, 7
    %v4932 = vsub.s32 %v1559, %v4931
    %v4933 = vrot.slane %v3369, %v4932
    %v4934 = vlaneseq
    %v4935 = vshrl.u32 %v4934, 7
    %v4936 = vsub.s32 %v1564, %v4935
    %v4937 = vrot.slane %v3372, %v4936
    %v4938 = vsel %vm1569, %v4937, %v4933
    %v4939 = vlaneseq
    %v4940 = vshrl.u32 %v4939, 7
    %v4941 = vsub.s32 %v1571, %v4940
    %v4942 = vrot.slane %v3375, %v4941
    %v4943 = vsel %vm1576, %v4942, %v4938
    %v4944 = vlaneseq
    %v4945 = vshrl.u32 %v4944, 7
    %v4946 = vsub.s32 %v1578, %v4945
    %v4947 = vrot.slane %v3378, %v4946
    %v4948 = vsel %vm1583, %v4947, %v4943
    %v4949 = vlaneseq
    %v4950 = vshrl.u32 %v4949, 7
    %v4951 = vsub.s32 %v1585, %v4950
    %v4952 = vrot.slane %v3381, %v4951
    %v4953 = vsel %vm1590, %v4952, %v4948
    %v4954 = vlaneseq
    %v4955 = vshrl.u32 %v4954, 7
    %v4956 = vsub.s32 %v1592, %v4955
    %v4957 = vrot.slane %v3384, %v4956
    %v4958 = vsel %vm1597, %v4957, %v4953
    %v4959 = vlaneseq
    %v4960 = vshrl.u32 %v4959, 7
    %v4961 = vsub.s32 %v1599, %v4960
    %v4962 = vrot.slane %v3387, %v4961
    %v4963 = vsel %vm1604, %v4962, %v4958
    %v4964 = vlaneseq
    %v4965 = vshrl.u32 %v4964, 7
    %v4966 = vsub.s32 %v1606, %v4965
    %v4967 = vrot.slane %v3390, %v4966
    %v4968 = vsel %vm1611, %v4967, %v4963
    %v4969 = vlaneseq
    %v4970 = vshrl.u32 %v4969, 7
    %v4971 = vsub.s32 %v1613, %v4970
    %v4972 = vrot.slane %v3393, %v4971
    %v4973 = vsel %vm1618, %v4972, %v4968
    %v4974 = vlaneseq
    %v4975 = vshrl.u32 %v4974, 7
    %v4976 = vsub.s32 %v1620, %v4975
    %v4977 = vrot.slane %v3396, %v4976
    %v4978 = vsel %vm1625, %v4977, %v4973
    %v4979 = vlaneseq
    %v4980 = vshrl.u32 %v4979, 7
    %v4981 = vsub.s32 %v1627, %v4980
    %v4982 = vrot.slane %v3399, %v4981
    %v4983 = vsel %vm1632, %v4982, %v4978
    %v4984 = vlaneseq
    %v4985 = vshrl.u32 %v4984, 7
    %v4986 = vsub.s32 %v1634, %v4985
    %v4987 = vrot.slane %v3402, %v4986
    %v4988 = vsel %vm1639, %v4987, %v4983
    %v4989 = vlaneseq
    %v4990 = vshrl.u32 %v4989, 7
    %v4991 = vsub.s32 %v1641, %v4990
    %v4992 = vrot.slane %v3405, %v4991
    %v4993 = vsel %vm1646, %v4992, %v4988
    %v4994 = vlaneseq
    %v4995 = vshrl.u32 %v4994, 7
    %v4996 = vsub.s32 %v1648, %v4995
    %v4997 = vrot.slane %v3408, %v4996
    %v4998 = vsel %vm1653, %v4997, %v4993
    %v4999 = vlaneseq
    %v5000 = vshrl.u32 %v4999, 7
    %v5001 = vsub.s32 %v1655, %v5000
    %v5002 = vrot.slane %v3411, %v5001
    %v5003 = vsel %vm1660, %v5002, %v4998
    %v5004 = vlaneseq
    %v5005 = vshrl.u32 %v5004, 7
    %v5006 = vsub.s32 %v1662, %v5005
    %v5007 = vrot.slane %v3414, %v5006
    %v5008 = vsel %vm1667, %v5007, %v5003
    %v5009 = vlaneseq
    %v5010 = vshrl.u32 %v5009, 7
    %v5011 = vsub.s32 %v1559, %v5010
    %v5012 = vrot.slane %v3417, %v5011
    %v5013 = vlaneseq
    %v5014 = vshrl.u32 %v5013, 7
    %v5015 = vsub.s32 %v1564, %v5014
    %v5016 = vrot.slane %v3420, %v5015
    %v5017 = vsel %vm1569, %v5016, %v5012
    %v5018 = vlaneseq
    %v5019 = vshrl.u32 %v5018, 7
    %v5020 = vsub.s32 %v1571, %v5019
    %v5021 = vrot.slane %v3423, %v5020
    %v5022 = vsel %vm1576, %v5021, %v5017
    %v5023 = vlaneseq
    %v5024 = vshrl.u32 %v5023, 7
    %v5025 = vsub.s32 %v1578, %v5024
    %v5026 = vrot.slane %v3426, %v5025
    %v5027 = vsel %vm1583, %v5026, %v5022
    %v5028 = vlaneseq
    %v5029 = vshrl.u32 %v5028, 7
    %v5030 = vsub.s32 %v1585, %v5029
    %v5031 = vrot.slane %v3429, %v5030
    %v5032 = vsel %vm1590, %v5031, %v5027
    %v5033 = vlaneseq
    %v5034 = vshrl.u32 %v5033, 7
    %v5035 = vsub.s32 %v1592, %v5034
    %v5036 = vrot.slane %v3432, %v5035
    %v5037 = vsel %vm1597, %v5036, %v5032
    %v5038 = vlaneseq
    %v5039 = vshrl.u32 %v5038, 7
    %v5040 = vsub.s32 %v1599, %v5039
    %v5041 = vrot.slane %v3435, %v5040
    %v5042 = vsel %vm1604, %v5041, %v5037
    %v5043 = vlaneseq
    %v5044 = vshrl.u32 %v5043, 7
    %v5045 = vsub.s32 %v1606, %v5044
    %v5046 = vrot.slane %v3438, %v5045
    %v5047 = vsel %vm1611, %v5046, %v5042
    %v5048 = vlaneseq
    %v5049 = vshrl.u32 %v5048, 7
    %v5050 = vsub.s32 %v1613, %v5049
    %v5051 = vrot.slane %v3441, %v5050
    %v5052 = vsel %vm1618, %v5051, %v5047
    %v5053 = vlaneseq
    %v5054 = vshrl.u32 %v5053, 7
    %v5055 = vsub.s32 %v1620, %v5054
    %v5056 = vrot.slane %v3444, %v5055
    %v5057 = vsel %vm1625, %v5056, %v5052
    %v5058 = vlaneseq
    %v5059 = vshrl.u32 %v5058, 7
    %v5060 = vsub.s32 %v1627, %v5059
    %v5061 = vrot.slane %v3447, %v5060
    %v5062 = vsel %vm1632, %v5061, %v5057
    %v5063 = vlaneseq
    %v5064 = vshrl.u32 %v5063, 7
    %v5065 = vsub.s32 %v1634, %v5064
    %v5066 = vrot.slane %v3450, %v5065
    %v5067 = vsel %vm1639, %v5066, %v5062
    %v5068 = vlaneseq
    %v5069 = vshrl.u32 %v5068, 7
    %v5070 = vsub.s32 %v1641, %v5069
    %v5071 = vrot.slane %v3453, %v5070
    %v5072 = vsel %vm1646, %v5071, %v5067
    %v5073 = vlaneseq
    %v5074 = vshrl.u32 %v5073, 7
    %v5075 = vsub.s32 %v1648, %v5074
    %v5076 = vrot.slane %v3456, %v5075
    %v5077 = vsel %vm1653, %v5076, %v5072
    %v5078 = vlaneseq
    %v5079 = vshrl.u32 %v5078, 7
    %v5080 = vsub.s32 %v1655, %v5079
    %v5081 = vrot.slane %v3459, %v5080
    %v5082 = vsel %vm1660, %v5081, %v5077
    %v5083 = vlaneseq
    %v5084 = vshrl.u32 %v5083, 7
    %v5085 = vsub.s32 %v1662, %v5084
    %v5086 = vrot.slane %v3462, %v5085
    %v5087 = vsel %vm1667, %v5086, %v5082
    %v5088 = vlaneseq
    %v5089 = vshrl.u32 %v5088, 7
    %v5090 = vsub.s32 %v1559, %v5089
    %v5091 = vrot.slane %v3465, %v5090
    %v5092 = vlaneseq
    %v5093 = vshrl.u32 %v5092, 7
    %v5094 = vsub.s32 %v1564, %v5093
    %v5095 = vrot.slane %v3468, %v5094
    %v5096 = vsel %vm1569, %v5095, %v5091
    %v5097 = vlaneseq
    %v5098 = vshrl.u32 %v5097, 7
    %v5099 = vsub.s32 %v1571, %v5098
    %v5100 = vrot.slane %v3471, %v5099
    %v5101 = vsel %vm1576, %v5100, %v5096
    %v5102 = vlaneseq
    %v5103 = vshrl.u32 %v5102, 7
    %v5104 = vsub.s32 %v1578, %v5103
    %v5105 = vrot.slane %v3474, %v5104
    %v5106 = vsel %vm1583, %v5105, %v5101
    %v5107 = vlaneseq
    %v5108 = vshrl.u32 %v5107, 7
    %v5109 = vsub.s32 %v1585, %v5108
    %v5110 = vrot.slane %v3477, %v5109
    %v5111 = vsel %vm1590, %v5110, %v5106
    %v5112 = vlaneseq
    %v5113 = vshrl.u32 %v5112, 7
    %v5114 = vsub.s32 %v1592, %v5113
    %v5115 = vrot.slane %v3480, %v5114
    %v5116 = vsel %vm1597, %v5115, %v5111
    %v5117 = vlaneseq
    %v5118 = vshrl.u32 %v5117, 7
    %v5119 = vsub.s32 %v1599, %v5118
    %v5120 = vrot.slane %v3483, %v5119
    %v5121 = vsel %vm1604, %v5120, %v5116
    %v5122 = vlaneseq
    %v5123 = vshrl.u32 %v5122, 7
    %v5124 = vsub.s32 %v1606, %v5123
    %v5125 = vrot.slane %v3486, %v5124
    %v5126 = vsel %vm1611, %v5125, %v5121
    %v5127 = vlaneseq
    %v5128 = vshrl.u32 %v5127, 7
    %v5129 = vsub.s32 %v1613, %v5128
    %v5130 = vrot.slane %v3489, %v5129
    %v5131 = vsel %vm1618, %v5130, %v5126
    %v5132 = vlaneseq
    %v5133 = vshrl.u32 %v5132, 7
    %v5134 = vsub.s32 %v1620, %v5133
    %v5135 = vrot.slane %v3492, %v5134
    %v5136 = vsel %vm1625, %v5135, %v5131
    %v5137 = vlaneseq
    %v5138 = vshrl.u32 %v5137, 7
    %v5139 = vsub.s32 %v1627, %v5138
    %v5140 = vrot.slane %v3495, %v5139
    %v5141 = vsel %vm1632, %v5140, %v5136
    %v5142 = vlaneseq
    %v5143 = vshrl.u32 %v5142, 7
    %v5144 = vsub.s32 %v1634, %v5143
    %v5145 = vrot.slane %v3498, %v5144
    %v5146 = vsel %vm1639, %v5145, %v5141
    %v5147 = vlaneseq
    %v5148 = vshrl.u32 %v5147, 7
    %v5149 = vsub.s32 %v1641, %v5148
    %v5150 = vrot.slane %v3501, %v5149
    %v5151 = vsel %vm1646, %v5150, %v5146
    %v5152 = vlaneseq
    %v5153 = vshrl.u32 %v5152, 7
    %v5154 = vsub.s32 %v1648, %v5153
    %v5155 = vrot.slane %v3504, %v5154
    %v5156 = vsel %vm1653, %v5155, %v5151
    %v5157 = vlaneseq
    %v5158 = vshrl.u32 %v5157, 7
    %v5159 = vsub.s32 %v1655, %v5158
    %v5160 = vrot.slane %v3507, %v5159
    %v5161 = vsel %vm1660, %v5160, %v5156
    %v5162 = vlaneseq
    %v5163 = vshrl.u32 %v5162, 7
    %v5164 = vsub.s32 %v1662, %v5163
    %v5165 = vrot.slane %v3510, %v5164
    %v5166 = vsel %vm1667, %v5165, %v5161
    %v5167 = vsel %vm2222, %v4929, %v4613
    %v5168 = vsel %vm2222, %v5008, %v4692
    %v5169 = vsel %vm2222, %v5087, %v4771
    %v5170 = vsel %vm2222, %v5166, %v4850
    %v5299 = vlaneseq
    %v5300 = vshrl.u32 %v5299, 7
    %v5301 = vsub.s32 %v1559, %v5300
    %v5302 = vrot.slane %v4025, %v5301
    %v5303 = vlaneseq
    %v5304 = vshrl.u32 %v5303, 7
    %v5305 = vsub.s32 %v1564, %v5304
    %v5306 = vrot.slane %v4028, %v5305
    %v5307 = vsel %vm1569, %v5306, %v5302
    %v5308 = vlaneseq
    %v5309 = vshrl.u32 %v5308, 7
    %v5310 = vsub.s32 %v1571, %v5309
    %v5311 = vrot.slane %v4031, %v5310
    %v5312 = vsel %vm1576, %v5311, %v5307
    %v5313 = vlaneseq
    %v5314 = vshrl.u32 %v5313, 7
    %v5315 = vsub.s32 %v1578, %v5314
    %v5316 = vrot.slane %v4034, %v5315
    %v5317 = vsel %vm1583, %v5316, %v5312
    %v5318 = vlaneseq
    %v5319 = vshrl.u32 %v5318, 7
    %v5320 = vsub.s32 %v1585, %v5319
    %v5321 = vrot.slane %v4037, %v5320
    %v5322 = vsel %vm1590, %v5321, %v5317
    %v5323 = vlaneseq
    %v5324 = vshrl.u32 %v5323, 7
    %v5325 = vsub.s32 %v1592, %v5324
    %v5326 = vrot.slane %v4040, %v5325
    %v5327 = vsel %vm1597, %v5326, %v5322
    %v5328 = vlaneseq
    %v5329 = vshrl.u32 %v5328, 7
    %v5330 = vsub.s32 %v1599, %v5329
    %v5331 = vrot.slane %v4043, %v5330
    %v5332 = vsel %vm1604, %v5331, %v5327
    %v5333 = vlaneseq
    %v5334 = vshrl.u32 %v5333, 7
    %v5335 = vsub.s32 %v1606, %v5334
    %v5336 = vrot.slane %v4046, %v5335
    %v5337 = vsel %vm1611, %v5336, %v5332
    %v5338 = vlaneseq
    %v5339 = vshrl.u32 %v5338, 7
    %v5340 = vsub.s32 %v1613, %v5339
    %v5341 = vrot.slane %v4049, %v5340
    %v5342 = vsel %vm1618, %v5341, %v5337
    %v5343 = vlaneseq
    %v5344 = vshrl.u32 %v5343, 7
    %v5345 = vsub.s32 %v1620, %v5344
    %v5346 = vrot.slane %v4052, %v5345
    %v5347 = vsel %vm1625, %v5346, %v5342
    %v5348 = vlaneseq
    %v5349 = vshrl.u32 %v5348, 7
    %v5350 = vsub.s32 %v1627, %v5349
    %v5351 = vrot.slane %v4055, %v5350
    %v5352 = vsel %vm1632, %v5351, %v5347
    %v5353 = vlaneseq
    %v5354 = vshrl.u32 %v5353, 7
    %v5355 = vsub.s32 %v1634, %v5354
    %v5356 = vrot.slane %v4058, %v5355
    %v5357 = vsel %vm1639, %v5356, %v5352
    %v5358 = vlaneseq
    %v5359 = vshrl.u32 %v5358, 7
    %v5360 = vsub.s32 %v1641, %v5359
    %v5361 = vrot.slane %v4061, %v5360
    %v5362 = vsel %vm1646, %v5361, %v5357
    %v5363 = vlaneseq
    %v5364 = vshrl.u32 %v5363, 7
    %v5365 = vsub.s32 %v1648, %v5364
    %v5366 = vrot.slane %v4064, %v5365
    %v5367 = vsel %vm1653, %v5366, %v5362
    %v5368 = vlaneseq
    %v5369 = vshrl.u32 %v5368, 7
    %v5370 = vsub.s32 %v1655, %v5369
    %v5371 = vrot.slane %v4067, %v5370
    %v5372 = vsel %vm1660, %v5371, %v5367
    %v5373 = vlaneseq
    %v5374 = vshrl.u32 %v5373, 7
    %v5375 = vsub.s32 %v1662, %v5374
    %v5376 = vrot.slane %v4070, %v5375
    %v5377 = vsel %vm1667, %v5376, %v5372
    %v5378 = vlaneseq
    %v5379 = vshrl.u32 %v5378, 7
    %v5380 = vsub.s32 %v1559, %v5379
    %v5381 = vrot.slane %v4073, %v5380
    %v5382 = vlaneseq
    %v5383 = vshrl.u32 %v5382, 7
    %v5384 = vsub.s32 %v1564, %v5383
    %v5385 = vrot.slane %v4076, %v5384
    %v5386 = vsel %vm1569, %v5385, %v5381
    %v5387 = vlaneseq
    %v5388 = vshrl.u32 %v5387, 7
    %v5389 = vsub.s32 %v1571, %v5388
    %v5390 = vrot.slane %v4079, %v5389
    %v5391 = vsel %vm1576, %v5390, %v5386
    %v5392 = vlaneseq
    %v5393 = vshrl.u32 %v5392, 7
    %v5394 = vsub.s32 %v1578, %v5393
    %v5395 = vrot.slane %v4082, %v5394
    %v5396 = vsel %vm1583, %v5395, %v5391
    %v5397 = vlaneseq
    %v5398 = vshrl.u32 %v5397, 7
    %v5399 = vsub.s32 %v1585, %v5398
    %v5400 = vrot.slane %v4085, %v5399
    %v5401 = vsel %vm1590, %v5400, %v5396
    %v5402 = vlaneseq
    %v5403 = vshrl.u32 %v5402, 7
    %v5404 = vsub.s32 %v1592, %v5403
    %v5405 = vrot.slane %v4088, %v5404
    %v5406 = vsel %vm1597, %v5405, %v5401
    %v5407 = vlaneseq
    %v5408 = vshrl.u32 %v5407, 7
    %v5409 = vsub.s32 %v1599, %v5408
    %v5410 = vrot.slane %v4091, %v5409
    %v5411 = vsel %vm1604, %v5410, %v5406
    %v5412 = vlaneseq
    %v5413 = vshrl.u32 %v5412, 7
    %v5414 = vsub.s32 %v1606, %v5413
    %v5415 = vrot.slane %v4094, %v5414
    %v5416 = vsel %vm1611, %v5415, %v5411
    %v5417 = vlaneseq
    %v5418 = vshrl.u32 %v5417, 7
    %v5419 = vsub.s32 %v1613, %v5418
    %v5420 = vrot.slane %v4097, %v5419
    %v5421 = vsel %vm1618, %v5420, %v5416
    %v5422 = vlaneseq
    %v5423 = vshrl.u32 %v5422, 7
    %v5424 = vsub.s32 %v1620, %v5423
    %v5425 = vrot.slane %v4100, %v5424
    %v5426 = vsel %vm1625, %v5425, %v5421
    %v5427 = vlaneseq
    %v5428 = vshrl.u32 %v5427, 7
    %v5429 = vsub.s32 %v1627, %v5428
    %v5430 = vrot.slane %v4103, %v5429
    %v5431 = vsel %vm1632, %v5430, %v5426
    %v5432 = vlaneseq
    %v5433 = vshrl.u32 %v5432, 7
    %v5434 = vsub.s32 %v1634, %v5433
    %v5435 = vrot.slane %v4106, %v5434
    %v5436 = vsel %vm1639, %v5435, %v5431
    %v5437 = vlaneseq
    %v5438 = vshrl.u32 %v5437, 7
    %v5439 = vsub.s32 %v1641, %v5438
    %v5440 = vrot.slane %v4109, %v5439
    %v5441 = vsel %vm1646, %v5440, %v5436
    %v5442 = vlaneseq
    %v5443 = vshrl.u32 %v5442, 7
    %v5444 = vsub.s32 %v1648, %v5443
    %v5445 = vrot.slane %v4112, %v5444
    %v5446 = vsel %vm1653, %v5445, %v5441
    %v5447 = vlaneseq
    %v5448 = vshrl.u32 %v5447, 7
    %v5449 = vsub.s32 %v1655, %v5448
    %v5450 = vrot.slane %v4115, %v5449
    %v5451 = vsel %vm1660, %v5450, %v5446
    %v5452 = vlaneseq
    %v5453 = vshrl.u32 %v5452, 7
    %v5454 = vsub.s32 %v1662, %v5453
    %v5455 = vrot.slane %v4118, %v5454
    %v5456 = vsel %vm1667, %v5455, %v5451
    %v5457 = vlaneseq
    %v5458 = vshrl.u32 %v5457, 7
    %v5459 = vsub.s32 %v1559, %v5458
    %v5460 = vrot.slane %v4121, %v5459
    %v5461 = vlaneseq
    %v5462 = vshrl.u32 %v5461, 7
    %v5463 = vsub.s32 %v1564, %v5462
    %v5464 = vrot.slane %v4124, %v5463
    %v5465 = vsel %vm1569, %v5464, %v5460
    %v5466 = vlaneseq
    %v5467 = vshrl.u32 %v5466, 7
    %v5468 = vsub.s32 %v1571, %v5467
    %v5469 = vrot.slane %v4127, %v5468
    %v5470 = vsel %vm1576, %v5469, %v5465
    %v5471 = vlaneseq
    %v5472 = vshrl.u32 %v5471, 7
    %v5473 = vsub.s32 %v1578, %v5472
    %v5474 = vrot.slane %v4130, %v5473
    %v5475 = vsel %vm1583, %v5474, %v5470
    %v5476 = vlaneseq
    %v5477 = vshrl.u32 %v5476, 7
    %v5478 = vsub.s32 %v1585, %v5477
    %v5479 = vrot.slane %v4133, %v5478
    %v5480 = vsel %vm1590, %v5479, %v5475
    %v5481 = vlaneseq
    %v5482 = vshrl.u32 %v5481, 7
    %v5483 = vsub.s32 %v1592, %v5482
    %v5484 = vrot.slane %v4136, %v5483
    %v5485 = vsel %vm1597, %v5484, %v5480
    %v5486 = vlaneseq
    %v5487 = vshrl.u32 %v5486, 7
    %v5488 = vsub.s32 %v1599, %v5487
    %v5489 = vrot.slane %v4139, %v5488
    %v5490 = vsel %vm1604, %v5489, %v5485
    %v5491 = vlaneseq
    %v5492 = vshrl.u32 %v5491, 7
    %v5493 = vsub.s32 %v1606, %v5492
    %v5494 = vrot.slane %v4142, %v5493
    %v5495 = vsel %vm1611, %v5494, %v5490
    %v5496 = vlaneseq
    %v5497 = vshrl.u32 %v5496, 7
    %v5498 = vsub.s32 %v1613, %v5497
    %v5499 = vrot.slane %v4145, %v5498
    %v5500 = vsel %vm1618, %v5499, %v5495
    %v5501 = vlaneseq
    %v5502 = vshrl.u32 %v5501, 7
    %v5503 = vsub.s32 %v1620, %v5502
    %v5504 = vrot.slane %v4148, %v5503
    %v5505 = vsel %vm1625, %v5504, %v5500
    %v5506 = vlaneseq
    %v5507 = vshrl.u32 %v5506, 7
    %v5508 = vsub.s32 %v1627, %v5507
    %v5509 = vrot.slane %v4151, %v5508
    %v5510 = vsel %vm1632, %v5509, %v5505
    %v5511 = vlaneseq
    %v5512 = vshrl.u32 %v5511, 7
    %v5513 = vsub.s32 %v1634, %v5512
    %v5514 = vrot.slane %v4154, %v5513
    %v5515 = vsel %vm1639, %v5514, %v5510
    %v5516 = vlaneseq
    %v5517 = vshrl.u32 %v5516, 7
    %v5518 = vsub.s32 %v1641, %v5517
    %v5519 = vrot.slane %v4157, %v5518
    %v5520 = vsel %vm1646, %v5519, %v5515
    %v5521 = vlaneseq
    %v5522 = vshrl.u32 %v5521, 7
    %v5523 = vsub.s32 %v1648, %v5522
    %v5524 = vrot.slane %v4160, %v5523
    %v5525 = vsel %vm1653, %v5524, %v5520
    %v5526 = vlaneseq
    %v5527 = vshrl.u32 %v5526, 7
    %v5528 = vsub.s32 %v1655, %v5527
    %v5529 = vrot.slane %v4163, %v5528
    %v5530 = vsel %vm1660, %v5529, %v5525
    %v5531 = vlaneseq
    %v5532 = vshrl.u32 %v5531, 7
    %v5533 = vsub.s32 %v1662, %v5532
    %v5534 = vrot.slane %v4166, %v5533
    %v5535 = vsel %vm1667, %v5534, %v5530
    %v5536 = vlaneseq
    %v5537 = vshrl.u32 %v5536, 7
    %v5538 = vsub.s32 %v1559, %v5537
    %v5539 = vrot.slane %v4169, %v5538
    %v5540 = vlaneseq
    %v5541 = vshrl.u32 %v5540, 7
    %v5542 = vsub.s32 %v1564, %v5541
    %v5543 = vrot.slane %v4172, %v5542
    %v5544 = vsel %vm1569, %v5543, %v5539
    %v5545 = vlaneseq
    %v5546 = vshrl.u32 %v5545, 7
    %v5547 = vsub.s32 %v1571, %v5546
    %v5548 = vrot.slane %v4175, %v5547
    %v5549 = vsel %vm1576, %v5548, %v5544
    %v5550 = vlaneseq
    %v5551 = vshrl.u32 %v5550, 7
    %v5552 = vsub.s32 %v1578, %v5551
    %v5553 = vrot.slane %v4178, %v5552
    %v5554 = vsel %vm1583, %v5553, %v5549
    %v5555 = vlaneseq
    %v5556 = vshrl.u32 %v5555, 7
    %v5557 = vsub.s32 %v1585, %v5556
    %v5558 = vrot.slane %v4181, %v5557
    %v5559 = vsel %vm1590, %v5558, %v5554
    %v5560 = vlaneseq
    %v5561 = vshrl.u32 %v5560, 7
    %v5562 = vsub.s32 %v1592, %v5561
    %v5563 = vrot.slane %v4184, %v5562
    %v5564 = vsel %vm1597, %v5563, %v5559
    %v5565 = vlaneseq
    %v5566 = vshrl.u32 %v5565, 7
    %v5567 = vsub.s32 %v1599, %v5566
    %v5568 = vrot.slane %v4187, %v5567
    %v5569 = vsel %vm1604, %v5568, %v5564
    %v5570 = vlaneseq
    %v5571 = vshrl.u32 %v5570, 7
    %v5572 = vsub.s32 %v1606, %v5571
    %v5573 = vrot.slane %v4190, %v5572
    %v5574 = vsel %vm1611, %v5573, %v5569
    %v5575 = vlaneseq
    %v5576 = vshrl.u32 %v5575, 7
    %v5577 = vsub.s32 %v1613, %v5576
    %v5578 = vrot.slane %v4193, %v5577
    %v5579 = vsel %vm1618, %v5578, %v5574
    %v5580 = vlaneseq
    %v5581 = vshrl.u32 %v5580, 7
    %v5582 = vsub.s32 %v1620, %v5581
    %v5583 = vrot.slane %v4196, %v5582
    %v5584 = vsel %vm1625, %v5583, %v5579
    %v5585 = vlaneseq
    %v5586 = vshrl.u32 %v5585, 7
    %v5587 = vsub.s32 %v1627, %v5586
    %v5588 = vrot.slane %v4199, %v5587
    %v5589 = vsel %vm1632, %v5588, %v5584
    %v5590 = vlaneseq
    %v5591 = vshrl.u32 %v5590, 7
    %v5592 = vsub.s32 %v1634, %v5591
    %v5593 = vrot.slane %v4202, %v5592
    %v5594 = vsel %vm1639, %v5593, %v5589
    %v5595 = vlaneseq
    %v5596 = vshrl.u32 %v5595, 7
    %v5597 = vsub.s32 %v1641, %v5596
    %v5598 = vrot.slane %v4205, %v5597
    %v5599 = vsel %vm1646, %v5598, %v5594
    %v5600 = vlaneseq
    %v5601 = vshrl.u32 %v5600, 7
    %v5602 = vsub.s32 %v1648, %v5601
    %v5603 = vrot.slane %v4208, %v5602
    %v5604 = vsel %vm1653, %v5603, %v5599
    %v5605 = vlaneseq
    %v5606 = vshrl.u32 %v5605, 7
    %v5607 = vsub.s32 %v1655, %v5606
    %v5608 = vrot.slane %v4211, %v5607
    %v5609 = vsel %vm1660, %v5608, %v5604
    %v5610 = vlaneseq
    %v5611 = vshrl.u32 %v5610, 7
    %v5612 = vsub.s32 %v1662, %v5611
    %v5613 = vrot.slane %v4214, %v5612
    %v5614 = vsel %vm1667, %v5613, %v5609
    %v5615 = vlaneseq
    %v5616 = vshrl.u32 %v5615, 7
    %v5617 = vsub.s32 %v1559, %v5616
    %v5618 = vrot.slane %v4217, %v5617
    %v5619 = vlaneseq
    %v5620 = vshrl.u32 %v5619, 7
    %v5621 = vsub.s32 %v1564, %v5620
    %v5622 = vrot.slane %v4220, %v5621
    %v5623 = vsel %vm1569, %v5622, %v5618
    %v5624 = vlaneseq
    %v5625 = vshrl.u32 %v5624, 7
    %v5626 = vsub.s32 %v1571, %v5625
    %v5627 = vrot.slane %v4223, %v5626
    %v5628 = vsel %vm1576, %v5627, %v5623
    %v5629 = vlaneseq
    %v5630 = vshrl.u32 %v5629, 7
    %v5631 = vsub.s32 %v1578, %v5630
    %v5632 = vrot.slane %v4226, %v5631
    %v5633 = vsel %vm1583, %v5632, %v5628
    %v5634 = vlaneseq
    %v5635 = vshrl.u32 %v5634, 7
    %v5636 = vsub.s32 %v1585, %v5635
    %v5637 = vrot.slane %v4229, %v5636
    %v5638 = vsel %vm1590, %v5637, %v5633
    %v5639 = vlaneseq
    %v5640 = vshrl.u32 %v5639, 7
    %v5641 = vsub.s32 %v1592, %v5640
    %v5642 = vrot.slane %v4232, %v5641
    %v5643 = vsel %vm1597, %v5642, %v5638
    %v5644 = vlaneseq
    %v5645 = vshrl.u32 %v5644, 7
    %v5646 = vsub.s32 %v1599, %v5645
    %v5647 = vrot.slane %v4235, %v5646
    %v5648 = vsel %vm1604, %v5647, %v5643
    %v5649 = vlaneseq
    %v5650 = vshrl.u32 %v5649, 7
    %v5651 = vsub.s32 %v1606, %v5650
    %v5652 = vrot.slane %v4238, %v5651
    %v5653 = vsel %vm1611, %v5652, %v5648
    %v5654 = vlaneseq
    %v5655 = vshrl.u32 %v5654, 7
    %v5656 = vsub.s32 %v1613, %v5655
    %v5657 = vrot.slane %v4241, %v5656
    %v5658 = vsel %vm1618, %v5657, %v5653
    %v5659 = vlaneseq
    %v5660 = vshrl.u32 %v5659, 7
    %v5661 = vsub.s32 %v1620, %v5660
    %v5662 = vrot.slane %v4244, %v5661
    %v5663 = vsel %vm1625, %v5662, %v5658
    %v5664 = vlaneseq
    %v5665 = vshrl.u32 %v5664, 7
    %v5666 = vsub.s32 %v1627, %v5665
    %v5667 = vrot.slane %v4247, %v5666
    %v5668 = vsel %vm1632, %v5667, %v5663
    %v5669 = vlaneseq
    %v5670 = vshrl.u32 %v5669, 7
    %v5671 = vsub.s32 %v1634, %v5670
    %v5672 = vrot.slane %v4250, %v5671
    %v5673 = vsel %vm1639, %v5672, %v5668
    %v5674 = vlaneseq
    %v5675 = vshrl.u32 %v5674, 7
    %v5676 = vsub.s32 %v1641, %v5675
    %v5677 = vrot.slane %v4253, %v5676
    %v5678 = vsel %vm1646, %v5677, %v5673
    %v5679 = vlaneseq
    %v5680 = vshrl.u32 %v5679, 7
    %v5681 = vsub.s32 %v1648, %v5680
    %v5682 = vrot.slane %v4256, %v5681
    %v5683 = vsel %vm1653, %v5682, %v5678
    %v5684 = vlaneseq
    %v5685 = vshrl.u32 %v5684, 7
    %v5686 = vsub.s32 %v1655, %v5685
    %v5687 = vrot.slane %v4259, %v5686
    %v5688 = vsel %vm1660, %v5687, %v5683
    %v5689 = vlaneseq
    %v5690 = vshrl.u32 %v5689, 7
    %v5691 = vsub.s32 %v1662, %v5690
    %v5692 = vrot.slane %v4262, %v5691
    %v5693 = vsel %vm1667, %v5692, %v5688
    %v5694 = vlaneseq
    %v5695 = vshrl.u32 %v5694, 7
    %v5696 = vsub.s32 %v1559, %v5695
    %v5697 = vrot.slane %v4265, %v5696
    %v5698 = vlaneseq
    %v5699 = vshrl.u32 %v5698, 7
    %v5700 = vsub.s32 %v1564, %v5699
    %v5701 = vrot.slane %v4268, %v5700
    %v5702 = vsel %vm1569, %v5701, %v5697
    %v5703 = vlaneseq
    %v5704 = vshrl.u32 %v5703, 7
    %v5705 = vsub.s32 %v1571, %v5704
    %v5706 = vrot.slane %v4271, %v5705
    %v5707 = vsel %vm1576, %v5706, %v5702
    %v5708 = vlaneseq
    %v5709 = vshrl.u32 %v5708, 7
    %v5710 = vsub.s32 %v1578, %v5709
    %v5711 = vrot.slane %v4274, %v5710
    %v5712 = vsel %vm1583, %v5711, %v5707
    %v5713 = vlaneseq
    %v5714 = vshrl.u32 %v5713, 7
    %v5715 = vsub.s32 %v1585, %v5714
    %v5716 = vrot.slane %v4277, %v5715
    %v5717 = vsel %vm1590, %v5716, %v5712
    %v5718 = vlaneseq
    %v5719 = vshrl.u32 %v5718, 7
    %v5720 = vsub.s32 %v1592, %v5719
    %v5721 = vrot.slane %v4280, %v5720
    %v5722 = vsel %vm1597, %v5721, %v5717
    %v5723 = vlaneseq
    %v5724 = vshrl.u32 %v5723, 7
    %v5725 = vsub.s32 %v1599, %v5724
    %v5726 = vrot.slane %v4283, %v5725
    %v5727 = vsel %vm1604, %v5726, %v5722
    %v5728 = vlaneseq
    %v5729 = vshrl.u32 %v5728, 7
    %v5730 = vsub.s32 %v1606, %v5729
    %v5731 = vrot.slane %v4286, %v5730
    %v5732 = vsel %vm1611, %v5731, %v5727
    %v5733 = vlaneseq
    %v5734 = vshrl.u32 %v5733, 7
    %v5735 = vsub.s32 %v1613, %v5734
    %v5736 = vrot.slane %v4289, %v5735
    %v5737 = vsel %vm1618, %v5736, %v5732
    %v5738 = vlaneseq
    %v5739 = vshrl.u32 %v5738, 7
    %v5740 = vsub.s32 %v1620, %v5739
    %v5741 = vrot.slane %v4292, %v5740
    %v5742 = vsel %vm1625, %v5741, %v5737
    %v5743 = vlaneseq
    %v5744 = vshrl.u32 %v5743, 7
    %v5745 = vsub.s32 %v1627, %v5744
    %v5746 = vrot.slane %v4295, %v5745
    %v5747 = vsel %vm1632, %v5746, %v5742
    %v5748 = vlaneseq
    %v5749 = vshrl.u32 %v5748, 7
    %v5750 = vsub.s32 %v1634, %v5749
    %v5751 = vrot.slane %v4298, %v5750
    %v5752 = vsel %vm1639, %v5751, %v5747
    %v5753 = vlaneseq
    %v5754 = vshrl.u32 %v5753, 7
    %v5755 = vsub.s32 %v1641, %v5754
    %v5756 = vrot.slane %v4301, %v5755
    %v5757 = vsel %vm1646, %v5756, %v5752
    %v5758 = vlaneseq
    %v5759 = vshrl.u32 %v5758, 7
    %v5760 = vsub.s32 %v1648, %v5759
    %v5761 = vrot.slane %v4304, %v5760
    %v5762 = vsel %vm1653, %v5761, %v5757
    %v5763 = vlaneseq
    %v5764 = vshrl.u32 %v5763, 7
    %v5765 = vsub.s32 %v1655, %v5764
    %v5766 = vrot.slane %v4307, %v5765
    %v5767 = vsel %vm1660, %v5766, %v5762
    %v5768 = vlaneseq
    %v5769 = vshrl.u32 %v5768, 7
    %v5770 = vsub.s32 %v1662, %v5769
    %v5771 = vrot.slane %v4310, %v5770
    %v5772 = vsel %vm1667, %v5771, %v5767
    %v5773 = vlaneseq
    %v5774 = vshrl.u32 %v5773, 7
    %v5775 = vsub.s32 %v1559, %v5774
    %v5776 = vrot.slane %v4313, %v5775
    %v5777 = vlaneseq
    %v5778 = vshrl.u32 %v5777, 7
    %v5779 = vsub.s32 %v1564, %v5778
    %v5780 = vrot.slane %v4316, %v5779
    %v5781 = vsel %vm1569, %v5780, %v5776
    %v5782 = vlaneseq
    %v5783 = vshrl.u32 %v5782, 7
    %v5784 = vsub.s32 %v1571, %v5783
    %v5785 = vrot.slane %v4319, %v5784
    %v5786 = vsel %vm1576, %v5785, %v5781
    %v5787 = vlaneseq
    %v5788 = vshrl.u32 %v5787, 7
    %v5789 = vsub.s32 %v1578, %v5788
    %v5790 = vrot.slane %v4322, %v5789
    %v5791 = vsel %vm1583, %v5790, %v5786
    %v5792 = vlaneseq
    %v5793 = vshrl.u32 %v5792, 7
    %v5794 = vsub.s32 %v1585, %v5793
    %v5795 = vrot.slane %v4325, %v5794
    %v5796 = vsel %vm1590, %v5795, %v5791
    %v5797 = vlaneseq
    %v5798 = vshrl.u32 %v5797, 7
    %v5799 = vsub.s32 %v1592, %v5798
    %v5800 = vrot.slane %v4328, %v5799
    %v5801 = vsel %vm1597, %v5800, %v5796
    %v5802 = vlaneseq
    %v5803 = vshrl.u32 %v5802, 7
    %v5804 = vsub.s32 %v1599, %v5803
    %v5805 = vrot.slane %v4331, %v5804
    %v5806 = vsel %vm1604, %v5805, %v5801
    %v5807 = vlaneseq
    %v5808 = vshrl.u32 %v5807, 7
    %v5809 = vsub.s32 %v1606, %v5808
    %v5810 = vrot.slane %v4334, %v5809
    %v5811 = vsel %vm1611, %v5810, %v5806
    %v5812 = vlaneseq
    %v5813 = vshrl.u32 %v5812, 7
    %v5814 = vsub.s32 %v1613, %v5813
    %v5815 = vrot.slane %v4337, %v5814
    %v5816 = vsel %vm1618, %v5815, %v5811
    %v5817 = vlaneseq
    %v5818 = vshrl.u32 %v5817, 7
    %v5819 = vsub.s32 %v1620, %v5818
    %v5820 = vrot.slane %v4340, %v5819
    %v5821 = vsel %vm1625, %v5820, %v5816
    %v5822 = vlaneseq
    %v5823 = vshrl.u32 %v5822, 7
    %v5824 = vsub.s32 %v1627, %v5823
    %v5825 = vrot.slane %v4343, %v5824
    %v5826 = vsel %vm1632, %v5825, %v5821
    %v5827 = vlaneseq
    %v5828 = vshrl.u32 %v5827, 7
    %v5829 = vsub.s32 %v1634, %v5828
    %v5830 = vrot.slane %v4346, %v5829
    %v5831 = vsel %vm1639, %v5830, %v5826
    %v5832 = vlaneseq
    %v5833 = vshrl.u32 %v5832, 7
    %v5834 = vsub.s32 %v1641, %v5833
    %v5835 = vrot.slane %v4349, %v5834
    %v5836 = vsel %vm1646, %v5835, %v5831
    %v5837 = vlaneseq
    %v5838 = vshrl.u32 %v5837, 7
    %v5839 = vsub.s32 %v1648, %v5838
    %v5840 = vrot.slane %v4352, %v5839
    %v5841 = vsel %vm1653, %v5840, %v5836
    %v5842 = vlaneseq
    %v5843 = vshrl.u32 %v5842, 7
    %v5844 = vsub.s32 %v1655, %v5843
    %v5845 = vrot.slane %v4355, %v5844
    %v5846 = vsel %vm1660, %v5845, %v5841
    %v5847 = vlaneseq
    %v5848 = vshrl.u32 %v5847, 7
    %v5849 = vsub.s32 %v1662, %v5848
    %v5850 = vrot.slane %v4358, %v5849
    %v5851 = vsel %vm1667, %v5850, %v5846
    %v5852 = vlaneseq
    %v5853 = vshrl.u32 %v5852, 7
    %v5854 = vsub.s32 %v1559, %v5853
    %v5855 = vrot.slane %v4361, %v5854
    %v5856 = vlaneseq
    %v5857 = vshrl.u32 %v5856, 7
    %v5858 = vsub.s32 %v1564, %v5857
    %v5859 = vrot.slane %v4364, %v5858
    %v5860 = vsel %vm1569, %v5859, %v5855
    %v5861 = vlaneseq
    %v5862 = vshrl.u32 %v5861, 7
    %v5863 = vsub.s32 %v1571, %v5862
    %v5864 = vrot.slane %v4367, %v5863
    %v5865 = vsel %vm1576, %v5864, %v5860
    %v5866 = vlaneseq
    %v5867 = vshrl.u32 %v5866, 7
    %v5868 = vsub.s32 %v1578, %v5867
    %v5869 = vrot.slane %v4370, %v5868
    %v5870 = vsel %vm1583, %v5869, %v5865
    %v5871 = vlaneseq
    %v5872 = vshrl.u32 %v5871, 7
    %v5873 = vsub.s32 %v1585, %v5872
    %v5874 = vrot.slane %v4373, %v5873
    %v5875 = vsel %vm1590, %v5874, %v5870
    %v5876 = vlaneseq
    %v5877 = vshrl.u32 %v5876, 7
    %v5878 = vsub.s32 %v1592, %v5877
    %v5879 = vrot.slane %v4376, %v5878
    %v5880 = vsel %vm1597, %v5879, %v5875
    %v5881 = vlaneseq
    %v5882 = vshrl.u32 %v5881, 7
    %v5883 = vsub.s32 %v1599, %v5882
    %v5884 = vrot.slane %v4379, %v5883
    %v5885 = vsel %vm1604, %v5884, %v5880
    %v5886 = vlaneseq
    %v5887 = vshrl.u32 %v5886, 7
    %v5888 = vsub.s32 %v1606, %v5887
    %v5889 = vrot.slane %v4382, %v5888
    %v5890 = vsel %vm1611, %v5889, %v5885
    %v5891 = vlaneseq
    %v5892 = vshrl.u32 %v5891, 7
    %v5893 = vsub.s32 %v1613, %v5892
    %v5894 = vrot.slane %v4385, %v5893
    %v5895 = vsel %vm1618, %v5894, %v5890
    %v5896 = vlaneseq
    %v5897 = vshrl.u32 %v5896, 7
    %v5898 = vsub.s32 %v1620, %v5897
    %v5899 = vrot.slane %v4388, %v5898
    %v5900 = vsel %vm1625, %v5899, %v5895
    %v5901 = vlaneseq
    %v5902 = vshrl.u32 %v5901, 7
    %v5903 = vsub.s32 %v1627, %v5902
    %v5904 = vrot.slane %v4391, %v5903
    %v5905 = vsel %vm1632, %v5904, %v5900
    %v5906 = vlaneseq
    %v5907 = vshrl.u32 %v5906, 7
    %v5908 = vsub.s32 %v1634, %v5907
    %v5909 = vrot.slane %v4394, %v5908
    %v5910 = vsel %vm1639, %v5909, %v5905
    %v5911 = vlaneseq
    %v5912 = vshrl.u32 %v5911, 7
    %v5913 = vsub.s32 %v1641, %v5912
    %v5914 = vrot.slane %v4397, %v5913
    %v5915 = vsel %vm1646, %v5914, %v5910
    %v5916 = vlaneseq
    %v5917 = vshrl.u32 %v5916, 7
    %v5918 = vsub.s32 %v1648, %v5917
    %v5919 = vrot.slane %v4400, %v5918
    %v5920 = vsel %vm1653, %v5919, %v5915
    %v5921 = vlaneseq
    %v5922 = vshrl.u32 %v5921, 7
    %v5923 = vsub.s32 %v1655, %v5922
    %v5924 = vrot.slane %v4403, %v5923
    %v5925 = vsel %vm1660, %v5924, %v5920
    %v5926 = vlaneseq
    %v5927 = vshrl.u32 %v5926, 7
    %v5928 = vsub.s32 %v1662, %v5927
    %v5929 = vrot.slane %v4406, %v5928
    %v5930 = vsel %vm1667, %v5929, %v5925
    %v5931 = vsel %vm2222, %v5693, %v5377
    %v5932 = vsel %vm2222, %v5772, %v5456
    %v5933 = vsel %vm2222, %v5851, %v5535
    %v5934 = vsel %vm2222, %v5930, %v5614
    %v5935 = vrot.slane %v5167, 6
    %v5936 = vrot.slane %v5168, 6
    %v5937 = vrot.slane %v5169, 6
    %v5938 = vrot.slane %v5170, 6
    %v5939 = vrot.slane %v5931, 6
    %v5940 = vrot.slane %v5932, 6
    %v5941 = vrot.slane %v5933, 6
    %v5942 = vrot.slane %v5934, 6
    %vm5951 = vcmask 1041408
    %v5952 = vsel %vm5951, %v2223, %v5935
    %v5953 = vsel %vm5951, %v2224, %v5936
    %v5954 = vsel %vm5951, %v2225, %v5937
    %v5955 = vsel %vm5951, %v2226, %v5938
    %v5956 = vsel %vm5951, %v2991, %v5939
    %v5957 = vsel %vm5951, %v2992, %v5940
    %v5958 = vsel %vm5951, %v2993, %v5941
    %v5959 = vsel %vm5951, %v2994, %v5942
    %v5960 = vld [vmem:[%s2] sm:$0xff]
    %v5961 = vld [vmem:[%s2 + $0x8] sm:$0xff]
    %v5962 = vld [vmem:[%s2 + $0x10] sm:$0xff]
    %v5963 = vld [vmem:[%s2 + $0x18] sm:$0xff]
    %v5964 = vld [vmem:[%s2 + $0x20] sm:$0xff]
    %v5965 = vld [vmem:[%s2 + $0x28] sm:$0xff]
    %v5966 = vld [vmem:[%s2 + $0x30] sm:$0xff]
    %v5967 = vld [vmem:[%s2 + $0x38] sm:$0xff]
    %v5968 = vld [vmem:[%s2 + $0x40] sm:$0xff]
    %v5969 = vld [vmem:[%s2 + $0x48] sm:$0xff]
    %v5970 = vld [vmem:[%s2 + $0x50] sm:$0xff]
    %v5971 = vld [vmem:[%s2 + $0x58] sm:$0xff]
    %v5972 = vld [vmem:[%s2 + $0x60] sm:$0xff]
    %v5973 = vld [vmem:[%s2 + $0x68] sm:$0xff]
    %v5974 = vld [vmem:[%s2 + $0x70] sm:$0xff]
    %v5975 = vld [vmem:[%s2 + $0x78] sm:$0xff]
    %v5976 = vld [vmem:[%s2 + $0x80] sm:$0xff]
    %v5977 = vld [vmem:[%s2 + $0x88] sm:$0xff]
    %v5978 = vld [vmem:[%s2 + $0x90] sm:$0xff]
    %v5979 = vld [vmem:[%s2 + $0x98] sm:$0xff]
    %v5980 = vld [vmem:[%s2 + $0xa0] sm:$0xff]
    %v5981 = vld [vmem:[%s2 + $0xa8] sm:$0xff]
    %v5982 = vld [vmem:[%s2 + $0xb0] sm:$0xff]
    %v5983 = vld [vmem:[%s2 + $0xb8] sm:$0xff]
    %v5984 = vld [vmem:[%s2 + $0xc0] sm:$0xff]
    %v5985 = vld [vmem:[%s2 + $0xc8] sm:$0xff]
    %v5986 = vld [vmem:[%s2 + $0xd0] sm:$0xff]
    %v5987 = vld [vmem:[%s2 + $0xd8] sm:$0xff]
    %v5988 = vld [vmem:[%s2 + $0xe0] sm:$0xff]
    %v5989 = vld [vmem:[%s2 + $0xe8] sm:$0xff]
    %v5990 = vld [vmem:[%s2 + $0xf0] sm:$0xff]
    %v5991 = vld [vmem:[%s2 + $0xf8] sm:$0xff]
    %v5992 = vld [vmem:[%s2 + $0x100] sm:$0xff]
    %v5993 = vld [vmem:[%s2 + $0x108] sm:$0xff]
    %v5994 = vld [vmem:[%s2 + $0x110] sm:$0xff]
    %v5995 = vld [vmem:[%s2 + $0x118] sm:$0xff]
    %v5996 = vld [vmem:[%s2 + $0x120] sm:$0xff]
    %v5997 = vld [vmem:[%s2 + $0x128] sm:$0xff]
    %v5998 = vld [vmem:[%s2 + $0x130] sm:$0xff]
    %v5999 = vld [vmem:[%s2 + $0x138] sm:$0xff]
    %v6000 = vld [vmem:[%s2 + $0x140] sm:$0xff]
    %v6001 = vld [vmem:[%s2 + $0x148] sm:$0xff]
    %v6002 = vld [vmem:[%s2 + $0x150] sm:$0xff]
    %v6003 = vld [vmem:[%s2 + $0x158] sm:$0xff]
    %v6004 = vld [vmem:[%s2 + $0x160] sm:$0xff]
    %v6005 = vld [vmem:[%s2 + $0x168] sm:$0xff]
    %v6006 = vld [vmem:[%s2 + $0x170] sm:$0xff]
    %v6007 = vld [vmem:[%s2 + $0x178] sm:$0xff]
    %v6008 = vld [vmem:[%s2 + $0x180] sm:$0xff]
    %v6009 = vld [vmem:[%s2 + $0x188] sm:$0xff]
    %v6010 = vld [vmem:[%s2 + $0x190] sm:$0xff]
    %v6011 = vld [vmem:[%s2 + $0x198] sm:$0xff]
    %v6012 = vld [vmem:[%s2 + $0x1a0] sm:$0xff]
    %v6013 = vld [vmem:[%s2 + $0x1a8] sm:$0xff]
    %v6014 = vld [vmem:[%s2 + $0x1b0] sm:$0xff]
    %v6015 = vld [vmem:[%s2 + $0x1b8] sm:$0xff]
    %v6016 = vld [vmem:[%s2 + $0x1c0] sm:$0xff]
    %v6017 = vld [vmem:[%s2 + $0x1c8] sm:$0xff]
    %v6018 = vld [vmem:[%s2 + $0x1d0] sm:$0xff]
    %v6019 = vld [vmem:[%s2 + $0x1d8] sm:$0xff]
    %v6020 = vld [vmem:[%s2 + $0x1e0] sm:$0xff]
    %v6021 = vld [vmem:[%s2 + $0x1e8] sm:$0xff]
    %v6022 = vld [vmem:[%s2 + $0x1f0] sm:$0xff]
    %v6023 = vld [vmem:[%s2 + $0x1f8] sm:$0xff]
    %v6024 = vld [vmem:[%s2 + $0x200] sm:$0xff]
    %v6025 = vld [vmem:[%s2 + $0x208] sm:$0xff]
    %v6026 = vld [vmem:[%s2 + $0x210] sm:$0xff]
    %v6027 = vld [vmem:[%s2 + $0x218] sm:$0xff]
    %v6028 = vld [vmem:[%s2 + $0x220] sm:$0xff]
    %v6029 = vld [vmem:[%s2 + $0x228] sm:$0xff]
    %v6030 = vld [vmem:[%s2 + $0x230] sm:$0xff]
    %v6031 = vld [vmem:[%s2 + $0x238] sm:$0xff]
    %v6032 = vld [vmem:[%s2 + $0x240] sm:$0xff]
    %v6033 = vld [vmem:[%s2 + $0x248] sm:$0xff]
    %v6034 = vld [vmem:[%s2 + $0x250] sm:$0xff]
    %v6035 = vld [vmem:[%s2 + $0x258] sm:$0xff]
    %v6036 = vld [vmem:[%s2 + $0x260] sm:$0xff]
    %v6037 = vld [vmem:[%s2 + $0x268] sm:$0xff]
    %v6038 = vld [vmem:[%s2 + $0x270] sm:$0xff]
    %v6039 = vld [vmem:[%s2 + $0x278] sm:$0xff]
    %v6040 = vld [vmem:[%s2 + $0x280] sm:$0xff]
    %v6041 = vld [vmem:[%s2 + $0x288] sm:$0xff]
    %v6042 = vld [vmem:[%s2 + $0x290] sm:$0xff]
    %v6043 = vld [vmem:[%s2 + $0x298] sm:$0xff]
    %v6044 = vld [vmem:[%s2 + $0x2a0] sm:$0xff]
    %v6045 = vld [vmem:[%s2 + $0x2a8] sm:$0xff]
    %v6046 = vld [vmem:[%s2 + $0x2b0] sm:$0xff]
    %v6047 = vld [vmem:[%s2 + $0x2b8] sm:$0xff]
    %v6048 = vld [vmem:[%s2 + $0x2c0] sm:$0xff]
    %v6049 = vld [vmem:[%s2 + $0x2c8] sm:$0xff]
    %v6050 = vld [vmem:[%s2 + $0x2d0] sm:$0xff]
    %v6051 = vld [vmem:[%s2 + $0x2d8] sm:$0xff]
    %v6052 = vld [vmem:[%s2 + $0x2e0] sm:$0xff]
    %v6053 = vld [vmem:[%s2 + $0x2e8] sm:$0xff]
    %v6054 = vld [vmem:[%s2 + $0x2f0] sm:$0xff]
    %v6055 = vld [vmem:[%s2 + $0x2f8] sm:$0xff]
    %v6056 = vld [vmem:[%s2 + $0x300] sm:$0xff]
    %v6057 = vld [vmem:[%s2 + $0x308] sm:$0xff]
    %v6058 = vld [vmem:[%s2 + $0x310] sm:$0xff]
    %v6059 = vld [vmem:[%s2 + $0x318] sm:$0xff]
    %v6060 = vld [vmem:[%s2 + $0x320] sm:$0xff]
    %v6061 = vld [vmem:[%s2 + $0x328] sm:$0xff]
    %v6062 = vld [vmem:[%s2 + $0x330] sm:$0xff]
    %v6063 = vld [vmem:[%s2 + $0x338] sm:$0xff]
    %v6064 = vld [vmem:[%s2 + $0x340] sm:$0xff]
    %v6065 = vld [vmem:[%s2 + $0x348] sm:$0xff]
    %v6066 = vld [vmem:[%s2 + $0x350] sm:$0xff]
    %v6067 = vld [vmem:[%s2 + $0x358] sm:$0xff]
    %v6068 = vld [vmem:[%s2 + $0x360] sm:$0xff]
    %v6069 = vld [vmem:[%s2 + $0x368] sm:$0xff]
    %v6070 = vld [vmem:[%s2 + $0x370] sm:$0xff]
    %v6071 = vld [vmem:[%s2 + $0x378] sm:$0xff]
    %v6072 = vld [vmem:[%s2 + $0x380] sm:$0xff]
    %v6073 = vld [vmem:[%s2 + $0x388] sm:$0xff]
    %v6074 = vld [vmem:[%s2 + $0x390] sm:$0xff]
    %v6075 = vld [vmem:[%s2 + $0x398] sm:$0xff]
    %v6076 = vld [vmem:[%s2 + $0x3a0] sm:$0xff]
    %v6077 = vld [vmem:[%s2 + $0x3a8] sm:$0xff]
    %v6078 = vld [vmem:[%s2 + $0x3b0] sm:$0xff]
    %v6079 = vld [vmem:[%s2 + $0x3b8] sm:$0xff]
    %v6080 = vld [vmem:[%s2 + $0x3c0] sm:$0xff]
    %v6081 = vld [vmem:[%s2 + $0x3c8] sm:$0xff]
    %v6082 = vld [vmem:[%s2 + $0x3d0] sm:$0xff]
    %v6083 = vld [vmem:[%s2 + $0x3d8] sm:$0xff]
    %v6084 = vld [vmem:[%s2 + $0x3e0] sm:$0xff]
    %v6085 = vld [vmem:[%s2 + $0x3e8] sm:$0xff]
    %v6086 = vld [vmem:[%s2 + $0x3f0] sm:$0xff]
    %v6087 = vld [vmem:[%s2 + $0x3f8] sm:$0xff]
    %6088 = vmatprep.subr.mxu0 0.0
    %6089 = vmatpush1.msra.mxu0 %v5975
    %6090 = vmatprep.subr.mxu0 0.0
    %6091 = vmatpush1.msra.mxu0 %v5974
    %6092 = vmatprep.subr.mxu0 0.0
    %6093 = vmatpush1.msra.mxu0 %v5973
    %6094 = vmatprep.subr.mxu0 0.0
    %6095 = vmatpush1.msra.mxu0 %v5972
    %6096 = vmatprep.subr.mxu0 0.0
    %6097 = vmatpush1.msra.mxu0 %v5971
    %6098 = vmatprep.subr.mxu0 0.0
    %6099 = vmatpush1.msra.mxu0 %v5970
    %6100 = vmatprep.subr.mxu0 0.0
    %6101 = vmatpush1.msra.mxu0 %v5969
    %6102 = vmatprep.subr.mxu0 0.0
    %6103 = vmatpush1.msra.mxu0 %v5968
    %6104 = vmatprep.subr.mxu0 0.0
    %6105 = vmatpush1.msra.mxu0 %v5967
    %6106 = vmatprep.subr.mxu0 0.0
    %6107 = vmatpush1.msra.mxu0 %v5966
    %6108 = vmatprep.subr.mxu0 0.0
    %6109 = vmatpush1.msra.mxu0 %v5965
    %6110 = vmatprep.subr.mxu0 0.0
    %6111 = vmatpush1.msra.mxu0 %v5964
    %6112 = vmatprep.subr.mxu0 0.0
    %6113 = vmatpush1.msra.mxu0 %v5963
    %6114 = vmatprep.subr.mxu0 0.0
    %6115 = vmatpush1.msra.mxu0 %v5962
    %6116 = vmatprep.subr.mxu0 0.0
    %6117 = vmatpush1.msra.mxu0 %v5961
    %6118 = vmatprep.subr.mxu0 0.0
    %6119 = vmatpush1.msra.mxu0 %v5960
    %6120 = vmatprep.subr.mxu0 0.0
    %6121 = vmatpush2.msra.mxu0 %v5991
    %6122 = vmatprep.subr.mxu0 0.0
    %6123 = vmatpush2.msra.mxu0 %v5990
    %6124 = vmatprep.subr.mxu0 0.0
    %6125 = vmatpush2.msra.mxu0 %v5989
    %6126 = vmatprep.subr.mxu0 0.0
    %6127 = vmatpush2.msra.mxu0 %v5988
    %6128 = vmatprep.subr.mxu0 0.0
    %6129 = vmatpush2.msra.mxu0 %v5987
    %6130 = vmatprep.subr.mxu0 0.0
    %6131 = vmatpush2.msra.mxu0 %v5986
    %6132 = vmatprep.subr.mxu0 0.0
    %6133 = vmatpush2.msra.mxu0 %v5985
    %6134 = vmatprep.subr.mxu0 0.0
    %6135 = vmatpush2.msra.mxu0 %v5984
    %6136 = vmatprep.subr.mxu0 0.0
    %6137 = vmatpush2.msra.mxu0 %v5983
    %6138 = vmatprep.subr.mxu0 0.0
    %6139 = vmatpush2.msra.mxu0 %v5982
    %6140 = vmatprep.subr.mxu0 0.0
    %6141 = vmatpush2.msra.mxu0 %v5981
    %6142 = vmatprep.subr.mxu0 0.0
    %6143 = vmatpush2.msra.mxu0 %v5980
    %6144 = vmatprep.subr.mxu0 0.0
    %6145 = vmatpush2.msra.mxu0 %v5979
    %6146 = vmatprep.subr.mxu0 0.0
    %6147 = vmatpush2.msra.mxu0 %v5978
    %6148 = vmatprep.subr.mxu0 0.0
    %6149 = vmatpush2.msra.mxu0 %v5977
    %6150 = vmatprep.subr.mxu0 0.0
    %6151 = vmatpush2.msra.mxu0 %v5976
    %6152 = vmatprep.mubr.f32.mxu0 %v5953
    %6153 = vmatmul.mubr.f32.gmra.mxu0 %v5952
    %v6154 = vpop.f32.mrf.mxu0
    %v6155 = vadd.f32 0.0, %v6154
    %v6156 = vpop.f32.mrf.mxu0
    %6157 = vdwg.mxu0
    %6158 = vmatprep.subr.mxu0 0.0
    %6159 = vmatpush1.msra.mxu0 %v6007
    %6160 = vmatprep.subr.mxu0 0.0
    %6161 = vmatpush1.msra.mxu0 %v6006
    %6162 = vmatprep.subr.mxu0 0.0
    %6163 = vmatpush1.msra.mxu0 %v6005
    %6164 = vmatprep.subr.mxu0 0.0
    %6165 = vmatpush1.msra.mxu0 %v6004
    %6166 = vmatprep.subr.mxu0 0.0
    %6167 = vmatpush1.msra.mxu0 %v6003
    %6168 = vmatprep.subr.mxu0 0.0
    %6169 = vmatpush1.msra.mxu0 %v6002
    %6170 = vmatprep.subr.mxu0 0.0
    %6171 = vmatpush1.msra.mxu0 %v6001
    %6172 = vmatprep.subr.mxu0 0.0
    %6173 = vmatpush1.msra.mxu0 %v6000
    %6174 = vmatprep.subr.mxu0 0.0
    %6175 = vmatpush1.msra.mxu0 %v5999
    %6176 = vmatprep.subr.mxu0 0.0
    %6177 = vmatpush1.msra.mxu0 %v5998
    %6178 = vmatprep.subr.mxu0 0.0
    %6179 = vmatpush1.msra.mxu0 %v5997
    %6180 = vmatprep.subr.mxu0 0.0
    %6181 = vmatpush1.msra.mxu0 %v5996
    %6182 = vmatprep.subr.mxu0 0.0
    %6183 = vmatpush1.msra.mxu0 %v5995
    %6184 = vmatprep.subr.mxu0 0.0
    %6185 = vmatpush1.msra.mxu0 %v5994
    %6186 = vmatprep.subr.mxu0 0.0
    %6187 = vmatpush1.msra.mxu0 %v5993
    %6188 = vmatprep.subr.mxu0 0.0
    %6189 = vmatpush1.msra.mxu0 %v5992
    %6190 = vmatprep.subr.mxu0 0.0
    %6191 = vmatpush2.msra.mxu0 %v6023
    %6192 = vmatprep.subr.mxu0 0.0
    %6193 = vmatpush2.msra.mxu0 %v6022
    %6194 = vmatprep.subr.mxu0 0.0
    %6195 = vmatpush2.msra.mxu0 %v6021
    %6196 = vmatprep.subr.mxu0 0.0
    %6197 = vmatpush2.msra.mxu0 %v6020
    %6198 = vmatprep.subr.mxu0 0.0
    %6199 = vmatpush2.msra.mxu0 %v6019
    %6200 = vmatprep.subr.mxu0 0.0
    %6201 = vmatpush2.msra.mxu0 %v6018
    %6202 = vmatprep.subr.mxu0 0.0
    %6203 = vmatpush2.msra.mxu0 %v6017
    %6204 = vmatprep.subr.mxu0 0.0
    %6205 = vmatpush2.msra.mxu0 %v6016
    %6206 = vmatprep.subr.mxu0 0.0
    %6207 = vmatpush2.msra.mxu0 %v6015
    %6208 = vmatprep.subr.mxu0 0.0
    %6209 = vmatpush2.msra.mxu0 %v6014
    %6210 = vmatprep.subr.mxu0 0.0
    %6211 = vmatpush2.msra.mxu0 %v6013
    %6212 = vmatprep.subr.mxu0 0.0
    %6213 = vmatpush2.msra.mxu0 %v6012
    %6214 = vmatprep.subr.mxu0 0.0
    %6215 = vmatpush2.msra.mxu0 %v6011
    %6216 = vmatprep.subr.mxu0 0.0
    %6217 = vmatpush2.msra.mxu0 %v6010
    %6218 = vmatprep.subr.mxu0 0.0
    %6219 = vmatpush2.msra.mxu0 %v6009
    %6220 = vmatprep.subr.mxu0 0.0
    %6221 = vmatpush2.msra.mxu0 %v6008
    %6222 = vmatprep.mubr.f32.mxu0 %v5955
    %6223 = vmatmul.mubr.f32.gmra.mxu0 %v5954
    %v6224 = vpop.f32.mrf.mxu0
    %v6225 = vadd.f32 %v6155, %v6224
    %v6226 = vpop.f32.mrf.mxu0
    %6227 = vdwg.mxu0
    %6228 = vmatprep.subr.mxu0 0.0
    %6229 = vmatpush1.msra.mxu0 %v6039
    %6230 = vmatprep.subr.mxu0 0.0
    %6231 = vmatpush1.msra.mxu0 %v6038
    %6232 = vmatprep.subr.mxu0 0.0
    %6233 = vmatpush1.msra.mxu0 %v6037
    %6234 = vmatprep.subr.mxu0 0.0
    %6235 = vmatpush1.msra.mxu0 %v6036
    %6236 = vmatprep.subr.mxu0 0.0
    %6237 = vmatpush1.msra.mxu0 %v6035
    %6238 = vmatprep.subr.mxu0 0.0
    %6239 = vmatpush1.msra.mxu0 %v6034
    %6240 = vmatprep.subr.mxu0 0.0
    %6241 = vmatpush1.msra.mxu0 %v6033
    %6242 = vmatprep.subr.mxu0 0.0
    %6243 = vmatpush1.msra.mxu0 %v6032
    %6244 = vmatprep.subr.mxu0 0.0
    %6245 = vmatpush1.msra.mxu0 %v6031
    %6246 = vmatprep.subr.mxu0 0.0
    %6247 = vmatpush1.msra.mxu0 %v6030
    %6248 = vmatprep.subr.mxu0 0.0
    %6249 = vmatpush1.msra.mxu0 %v6029
    %6250 = vmatprep.subr.mxu0 0.0
    %6251 = vmatpush1.msra.mxu0 %v6028
    %6252 = vmatprep.subr.mxu0 0.0
    %6253 = vmatpush1.msra.mxu0 %v6027
    %6254 = vmatprep.subr.mxu0 0.0
    %6255 = vmatpush1.msra.mxu0 %v6026
    %6256 = vmatprep.subr.mxu0 0.0
    %6257 = vmatpush1.msra.mxu0 %v6025
    %6258 = vmatprep.subr.mxu0 0.0
    %6259 = vmatpush1.msra.mxu0 %v6024
    %6260 = vmatprep.subr.mxu0 0.0
    %6261 = vmatpush2.msra.mxu0 %v6055
    %6262 = vmatprep.subr.mxu0 0.0
    %6263 = vmatpush2.msra.mxu0 %v6054
    %6264 = vmatprep.subr.mxu0 0.0
    %6265 = vmatpush2.msra.mxu0 %v6053
    %6266 = vmatprep.subr.mxu0 0.0
    %6267 = vmatpush2.msra.mxu0 %v6052
    %6268 = vmatprep.subr.mxu0 0.0
    %6269 = vmatpush2.msra.mxu0 %v6051
    %6270 = vmatprep.subr.mxu0 0.0
    %6271 = vmatpush2.msra.mxu0 %v6050
    %6272 = vmatprep.subr.mxu0 0.0
    %6273 = vmatpush2.msra.mxu0 %v6049
    %6274 = vmatprep.subr.mxu0 0.0
    %6275 = vmatpush2.msra.mxu0 %v6048
    %6276 = vmatprep.subr.mxu0 0.0
    %6277 = vmatpush2.msra.mxu0 %v6047
    %6278 = vmatprep.subr.mxu0 0.0
    %6279 = vmatpush2.msra.mxu0 %v6046
    %6280 = vmatprep.subr.mxu0 0.0
    %6281 = vmatpush2.msra.mxu0 %v6045
    %6282 = vmatprep.subr.mxu0 0.0
    %6283 = vmatpush2.msra.mxu0 %v6044
    %6284 = vmatprep.subr.mxu0 0.0
    %6285 = vmatpush2.msra.mxu0 %v6043
    %6286 = vmatprep.subr.mxu0 0.0
    %6287 = vmatpush2.msra.mxu0 %v6042
    %6288 = vmatprep.subr.mxu0 0.0
    %6289 = vmatpush2.msra.mxu0 %v6041
    %6290 = vmatprep.subr.mxu0 0.0
    %6291 = vmatpush2.msra.mxu0 %v6040
    %6292 = vmatprep.mubr.f32.mxu0 %v5957
    %6293 = vmatmul.mubr.f32.gmra.mxu0 %v5956
    %v6294 = vpop.f32.mrf.mxu0
    %v6295 = vadd.f32 %v6225, %v6294
    %v6296 = vpop.f32.mrf.mxu0
    %6297 = vdwg.mxu0
    %6298 = vmatprep.subr.mxu0 0.0
    %6299 = vmatpush1.msra.mxu0 %v6071
    %6300 = vmatprep.subr.mxu0 0.0
    %6301 = vmatpush1.msra.mxu0 %v6070
    %6302 = vmatprep.subr.mxu0 0.0
    %6303 = vmatpush1.msra.mxu0 %v6069
    %6304 = vmatprep.subr.mxu0 0.0
    %6305 = vmatpush1.msra.mxu0 %v6068
    %6306 = vmatprep.subr.mxu0 0.0
    %6307 = vmatpush1.msra.mxu0 %v6067
    %6308 = vmatprep.subr.mxu0 0.0
    %6309 = vmatpush1.msra.mxu0 %v6066
    %6310 = vmatprep.subr.mxu0 0.0
    %6311 = vmatpush1.msra.mxu0 %v6065
    %6312 = vmatprep.subr.mxu0 0.0
    %6313 = vmatpush1.msra.mxu0 %v6064
    %6314 = vmatprep.subr.mxu0 0.0
    %6315 = vmatpush1.msra.mxu0 %v6063
    %6316 = vmatprep.subr.mxu0 0.0
    %6317 = vmatpush1.msra.mxu0 %v6062
    %6318 = vmatprep.subr.mxu0 0.0
    %6319 = vmatpush1.msra.mxu0 %v6061
    %6320 = vmatprep.subr.mxu0 0.0
    %6321 = vmatpush1.msra.mxu0 %v6060
    %6322 = vmatprep.subr.mxu0 0.0
    %6323 = vmatpush1.msra.mxu0 %v6059
    %6324 = vmatprep.subr.mxu0 0.0
    %6325 = vmatpush1.msra.mxu0 %v6058
    %6326 = vmatprep.subr.mxu0 0.0
    %6327 = vmatpush1.msra.mxu0 %v6057
    %6328 = vmatprep.subr.mxu0 0.0
    %6329 = vmatpush1.msra.mxu0 %v6056
    %6330 = vmatprep.subr.mxu0 0.0
    %6331 = vmatpush2.msra.mxu0 %v6087
    %6332 = vmatprep.subr.mxu0 0.0
    %6333 = vmatpush2.msra.mxu0 %v6086
    %6334 = vmatprep.subr.mxu0 0.0
    %6335 = vmatpush2.msra.mxu0 %v6085
    %6336 = vmatprep.subr.mxu0 0.0
    %6337 = vmatpush2.msra.mxu0 %v6084
    %6338 = vmatprep.subr.mxu0 0.0
    %6339 = vmatpush2.msra.mxu0 %v6083
    %6340 = vmatprep.subr.mxu0 0.0
    %6341 = vmatpush2.msra.mxu0 %v6082
    %6342 = vmatprep.subr.mxu0 0.0
    %6343 = vmatpush2.msra.mxu0 %v6081
    %6344 = vmatprep.subr.mxu0 0.0
    %6345 = vmatpush2.msra.mxu0 %v6080
    %6346 = vmatprep.subr.mxu0 0.0
    %6347 = vmatpush2.msra.mxu0 %v6079
    %6348 = vmatprep.subr.mxu0 0.0
    %6349 = vmatpush2.msra.mxu0 %v6078
    %6350 = vmatprep.subr.mxu0 0.0
    %6351 = vmatpush2.msra.mxu0 %v6077
    %6352 = vmatprep.subr.mxu0 0.0
    %6353 = vmatpush2.msra.mxu0 %v6076
    %6354 = vmatprep.subr.mxu0 0.0
    %6355 = vmatpush2.msra.mxu0 %v6075
    %6356 = vmatprep.subr.mxu0 0.0
    %6357 = vmatpush2.msra.mxu0 %v6074
    %6358 = vmatprep.subr.mxu0 0.0
    %6359 = vmatpush2.msra.mxu0 %v6073
    %6360 = vmatprep.subr.mxu0 0.0
    %6361 = vmatpush2.msra.mxu0 %v6072
    %6362 = vmatprep.mubr.f32.mxu0 %v5959
    %6363 = vmatmul.mubr.f32.gmra.mxu0 %v5958
    %v6364 = vpop.f32.mrf.mxu0
    %v6365 = vadd.f32 %v6295, %v6364
    %v6366 = vpop.f32.mrf.mxu0
    %6367 = vdwg.mxu0
    %v6368 = vmul.f32 %v6365, 0.015625
    %v6369 = vld [vmem:[%s3] sm:$0x1]
    %v6371 = vlaneseq
    %v6372 = vshrl.u32 %v6371, 7
    %v6373 = vsub.s32 0, %v6372
    %v6374 = vrot.slane %v6369, %v6373
    %v6376 = vadd.f32 %v6368, %v6374
    %6377 = vst [vmem:[#allocation2] sm:$0x3] %v6376
    %6378 = vst [vmem:[#allocation4 - $0x2] sm:$0xc] %v6376
    // Predicated region
    $region18: #{siamese_forward.1} parent=1 // pred_check
      _
    $region19: #{siamese_forward.1} parent=1 // pred_check_branch
      %6380 = sbr.rel (0) target = $region21
    $region20: #{siamese_forward.1} parent=1 // pred_region
      %s6382 = ssub.s32 32, 32
      %6383 = vsyncadd [#allocation3], %s6382
      %s6385 = sshll.u32 [#allocation2], 4
      %s6386 = int_to_ptr.vmem [resolvable:$true] %s6385
      %6388 = dma.vmem_to_hbm [thread:$0]  %s6386, 32, %s4, [#allocation3]
    $region21: #{siamese_forward.1} parent=1 // pred_fallthru
      _
    // Predicated region
    $region22: #{siamese_forward.1} parent=1 // pred_check
      _
    $region23: #{siamese_forward.1} parent=1 // pred_check_branch
      %6390 = sbr.rel (0) target = $region25
    $region24: #{siamese_forward.1} parent=1 // pred_region
      %s6392 = ssub.s32 32, 32
      %6393 = vsyncadd [#allocation5], %s6392
      %s6395 = sshll.u32 [#allocation4], 4
      %s6396 = int_to_ptr.vmem [resolvable:$true] %s6395
      %6398 = dma.vmem_to_hbm [thread:$0]  %s6396, 32, %s5, [#allocation5]
    $region25: #{siamese_forward.1} parent=1 // pred_fallthru
      _
    // Predicated region
    $region26: #{siamese_forward.1} parent=1 // pred_check
      _
    $region27: #{siamese_forward.1} parent=1 // pred_check_branch
      %6400 = sbr.rel (0) target = $region29
    $region28: #{siamese_forward.1} parent=1 // pred_region
      %6401 = dma.done [#allocation3], 32
    $region29: #{siamese_forward.1} parent=1 // pred_fallthru
      _
    // Predicated region
    $region30: #{siamese_forward.1} parent=1 // pred_check
      _
    $region31: #{siamese_forward.1} parent=1 // pred_check_branch
      %6403 = sbr.rel (0) target = $region33
    $region32: #{siamese_forward.1} parent=1 // pred_region
      %6404 = dma.done [#allocation5], 32
    $region33: #{siamese_forward.1} parent=1 // pred_fallthru
      _
    %6405 = vsyncpa [#allocation3], 1
    %6406 = vsyncpa [#allocation5], 1

</llo_original>
